<compile_context>
chip_gen: v7x
topology: tpu7x:2x2x1
jax: 0.10.0
libtpu: 0.0.40
codegen_flags: <defaults>
</compile_context>

<pallas_src>
import functools

import jax
import jax.numpy as jnp
import numpy as np
from jax.experimental import pallas as pl
from jax.experimental.pallas import tpu as pltpu

D_IN = 512
D_HID = 512
D_OUT = 1000
D_OUT_PAD = 1024          # 1000 -> 1024 (multiple of 128) for lane-dense stores
NEG_SLOPE = 0.2


def _round_up(v, m):
    return -(-v // m) * m


def _leaky_relu(x):
    return jnp.where(x > 0, x, NEG_SLOPE * x)


def _make_kernel(linear=False):
    act = (lambda v: v) if linear else _leaky_relu

    def small_decoder_kernel(x_ref,
                             w1_ref, b1_ref,
                             w2_ref, b2_ref,
                             w3_ref, b3_ref,
                             wp_ref, bp_ref,
                             block_out_ref, pred_ref):
        # MXU matmuls take the (bf16) weight dtype; accumulation + elementwise
        # (bias add, LeakyReLU) stay in f32.
        cdt = w1_ref.dtype

        h = jnp.dot(x_ref[...], w1_ref[...], preferred_element_type=jnp.float32)
        h = act(h + b1_ref[...])
        h = jnp.dot(h.astype(cdt), w2_ref[...], preferred_element_type=jnp.float32)
        h = act(h + b2_ref[...])
        h = jnp.dot(h.astype(cdt), w3_ref[...], preferred_element_type=jnp.float32)
        h = h + b3_ref[...]

        block_out_ref[...] = h.astype(block_out_ref.dtype)

        p = jnp.dot(h.astype(cdt), wp_ref[...], preferred_element_type=jnp.float32)
        pred_ref[...] = (p + bp_ref[...]).astype(pred_ref.dtype)

    return small_decoder_kernel


def prepare_params(params, compute_dtype=jnp.bfloat16):
    """One-time parameter prep (keep OUT of the per-call hot path):
    pad the 1000-wide head to 1024 lanes, reshape biases to (1, D) f32,
    cast matmul weights to compute_dtype. Weights are (in_features, out_features)."""
    w1, b1, w2, b2, w3, b3, wp, bp = params
    wp_p = jnp.zeros((D_HID, D_OUT_PAD), wp.dtype).at[:, :D_OUT].set(wp)
    bp_p = jnp.zeros((1, D_OUT_PAD), jnp.float32).at[:, :D_OUT].set(bp.astype(jnp.float32))
    return (
        w1.astype(compute_dtype), b1.astype(jnp.float32).reshape(1, D_HID),
        w2.astype(compute_dtype), b2.astype(jnp.float32).reshape(1, D_HID),
        w3.astype(compute_dtype), b3.astype(jnp.float32).reshape(1, D_HID),
        wp_p.astype(compute_dtype), bp_p,
    )


def small_decoder_forward(x, prepared_params, *, tile_b=None, linear=False,
                          return_padded=False):
    """x: (B, 512). prepared_params: output of prepare_params().
    Returns (block_out (B,512), predicted (B,1000)) in x.dtype.
    return_padded=True returns predicted as (B,1024) (zero-padded, lane-dense)
    to avoid the post-kernel slice copy."""
    B = x.shape[0]
    out_dtype = x.dtype
    w1, b1, w2, b2, w3, b3, wp, bp = prepared_params
    compute_dtype = w1.dtype

    if tile_b is None:
        if B <= 16:
            tile_b = _round_up(max(B, 1), 8)
        else:
            # Aim for >=2 grid steps (v7x has 2 TensorCores); cap at 512 rows/step.
            tile_b = min(512, _round_up(-(-B // 2), 8))
    else:
        tile_b = _round_up(max(tile_b, 8), 8)

    B_pad = _round_up(B, tile_b)
    if B_pad != B:
        x = jnp.pad(x, ((0, B_pad - B), (0, 0)))
    if x.dtype != compute_dtype:
        x = x.astype(compute_dtype)  # bf16 into the first dot; halves x DMA

    grid = (B_pad // tile_b,)

    def row_spec(cols):
        return pl.BlockSpec((tile_b, cols), lambda i: (i, 0))

    def weight_spec(shape):
        # Grid-invariant block: single buffer (no need to double-buffer weights).
        return pl.BlockSpec(shape, lambda i: (0, 0), pipeline_mode=pl.Buffered(1))

    # VMEM budget: single-buffered weights/biases + double-buffered x/output
    # tiles + headroom for f32 intermediates.
    w_item = jnp.dtype(compute_dtype).itemsize
    o_item = jnp.dtype(out_dtype).itemsize
    w_bytes = (D_IN * D_HID + 2 * D_HID * D_HID + D_HID * D_OUT_PAD) * w_item
    b_bytes = (3 * D_HID + D_OUT_PAD) * 4
    act_bytes = 2 * tile_b * (D_IN * w_item + D_HID * o_item + D_OUT_PAD * o_item)
    vmem_budget = int(w_bytes + b_bytes + act_bytes + (16 << 20))

    block_out, pred_pad = pl.pallas_call(
        _make_kernel(linear),
        out_shape=(
            jax.ShapeDtypeStruct((B_pad, D_HID), out_dtype),
            jax.ShapeDtypeStruct((B_pad, D_OUT_PAD), out_dtype),
        ),
        grid_spec=pltpu.PrefetchScalarGridSpec(
            num_scalar_prefetch=0,
            grid=grid,
            in_specs=[
                row_spec(D_IN),                   # x
                weight_spec((D_IN, D_HID)),       # w1
                weight_spec((1, D_HID)),          # b1
                weight_spec((D_HID, D_HID)),      # w2
                weight_spec((1, D_HID)),          # b2
                weight_spec((D_HID, D_HID)),      # w3
                weight_spec((1, D_HID)),          # b3
                weight_spec((D_HID, D_OUT_PAD)),  # wp (padded to 1024 lanes)
                weight_spec((1, D_OUT_PAD)),      # bp (padded to 1024 lanes)
            ],
            out_specs=[
                row_spec(D_HID),
                row_spec(D_OUT_PAD),
            ],
        ),
        compiler_params=pltpu.CompilerParams(
            dimension_semantics=("parallel",),
            vmem_limit_bytes=vmem_budget,
        ),
    )(x, w1, b1, w2, b2, w3, b3, wp, bp)

    if B_pad != B:
        block_out = block_out[:B]
        pred_pad = pred_pad[:B]
    if return_padded:
        return block_out, pred_pad
    # NOTE: this slice is an extra XLA copy; pass return_padded=True if the
    # consumer can use the 1024-wide (zero-padded) layout directly.
    return block_out, pred_pad[:, :D_OUT]


def init_params(key):
    """PyTorch nn.Linear-style init (uniform +-1/sqrt(fan_in)); weights stored
    as (in_features, out_features) so the kernel computes x @ W + b."""
    def linear(key, fan_in, fan_out):
        kw, kb = jax.random.split(key)
        bound = 1.0 / np.sqrt(fan_in)
        w = jax.random.uniform(kw, (fan_in, fan_out), jnp.float32, -bound, bound)
        b = jax.random.uniform(kb, (fan_out,), jnp.float32, -bound, bound)
        return w, b

    k1, k2, k3, kp = jax.random.split(key, 4)
    w1, b1 = linear(k1, D_IN, D_HID)
    w2, b2 = linear(k2, D_HID, D_HID)
    w3, b3 = linear(k3, D_HID, D_HID)
    wp, bp = linear(kp, D_HID, D_OUT)
    return (w1, b1, w2, b2, w3, b3, wp, bp)


def reference_forward(x, params, compute_dtype=jnp.bfloat16):
    """Pure-JAX reference using the same dtype recipe as the kernel
    (bf16 MXU inputs, f32 accumulation / elementwise)."""
    w1, b1, w2, b2, w3, b3, wp, bp = params
    cdt = compute_dtype

    def dense(h, w, b):
        return (jnp.dot(h.astype(cdt), w.astype(cdt),
                        preferred_element_type=jnp.float32)
                + b.astype(jnp.float32))

    h = _leaky_relu(dense(x, w1, b1))
    h = _leaky_relu(dense(h, w2, b2))
    block_out = dense(h, w3, b3)
    pred = dense(block_out, wp, bp)
    return block_out.astype(x.dtype), pred.astype(x.dtype)


if __name__ == "__main__":
    key = jax.random.PRNGKey(0)
    k_param, k_x = jax.random.split(key)

    raw_params = init_params(k_param)
    prepared = prepare_params(raw_params, compute_dtype=jnp.bfloat16)

    B = 16
    x = jax.random.normal(k_x, (B, D_IN), jnp.float32)

    fwd = jax.jit(small_decoder_forward)
    block_out, predicted = fwd(x, prepared)
    jax.block_until_ready((block_out, predicted))

    assert block_out.shape == (B, D_HID)
    assert predicted.shape == (B, D_OUT)

    ref_block, ref_pred = reference_forward(x, raw_params, jnp.bfloat16)
    np.testing.assert_allclose(np.asarray(block_out), np.asarray(ref_block),
                               rtol=2e-3, atol=2e-3)
    np.testing.assert_allclose(np.asarray(predicted), np.asarray(ref_pred),
                               rtol=2e-3, atol=2e-3)

    print("KERNEL_OK")
</pallas_src>

<mosaic_0001>
module attributes {stable_mosaic.version = 11 : i64} {
  func.func @small_decoder_kernel(%arg0: i32, %arg1: memref<16x512xbf16, #tpu.memory_space<vmem>>, %arg2: memref<512x512xbf16, #tpu.memory_space<vmem>>, %arg3: memref<1x512xf32, #tpu.memory_space<vmem>>, %arg4: memref<512x512xbf16, #tpu.memory_space<vmem>>, %arg5: memref<1x512xf32, #tpu.memory_space<vmem>>, %arg6: memref<512x512xbf16, #tpu.memory_space<vmem>>, %arg7: memref<1x512xf32, #tpu.memory_space<vmem>>, %arg8: memref<512x1024xbf16, #tpu.memory_space<vmem>>, %arg9: memref<1x1024xf32, #tpu.memory_space<vmem>>, %arg10: memref<16x512xf32, #tpu.memory_space<vmem>>, %arg11: memref<16x1024xf32, #tpu.memory_space<vmem>>) attributes {dimension_semantics = [#tpu.dimension_semantics<parallel>], iteration_bounds = array<i64: 1>, scalar_prefetch = 0 : i64, scratch_operands = 0 : i64, tpu.core_type = #tpu.core_type<tc>, window_params = [{transform_indices = @transform_0, window_bounds = array<i64: 16, 512>}, {pipeline_mode = #tpu.pipeline_mode<synchronous>, transform_indices = @transform_1, window_bounds = array<i64: 512, 512>}, {pipeline_mode = #tpu.pipeline_mode<synchronous>, transform_indices = @transform_2, window_bounds = array<i64: 1, 512>}, {pipeline_mode = #tpu.pipeline_mode<synchronous>, transform_indices = @transform_3, window_bounds = array<i64: 512, 512>}, {pipeline_mode = #tpu.pipeline_mode<synchronous>, transform_indices = @transform_4, window_bounds = array<i64: 1, 512>}, {pipeline_mode = #tpu.pipeline_mode<synchronous>, transform_indices = @transform_5, window_bounds = array<i64: 512, 512>}, {pipeline_mode = #tpu.pipeline_mode<synchronous>, transform_indices = @transform_6, window_bounds = array<i64: 1, 512>}, {pipeline_mode = #tpu.pipeline_mode<synchronous>, transform_indices = @transform_7, window_bounds = array<i64: 512, 1024>}, {pipeline_mode = #tpu.pipeline_mode<synchronous>, transform_indices = @transform_8, window_bounds = array<i64: 1, 1024>}, {transform_indices = @transform_9, window_bounds = array<i64: 16, 512>}, {transform_indices = @transform_10, window_bounds = array<i64: 16, 1024>}]} {
    %c0 = arith.constant 0 : index
    %c0_0 = arith.constant 0 : index
    %0 = vector.load %arg1[%c0, %c0_0] : memref<16x512xbf16, #tpu.memory_space<vmem>>, vector<16x512xbf16>
    %c0_1 = arith.constant 0 : index
    %c0_2 = arith.constant 0 : index
    %1 = vector.load %arg2[%c0_1, %c0_2] : memref<512x512xbf16, #tpu.memory_space<vmem>>, vector<512x512xbf16>
    %cst = arith.constant dense<0.000000e+00> : vector<16x512xf32>
    %2 = tpu.matmul %0, %1, %cst {dimension_numbers = #tpu.dot_dimension_numbers<[1], [0], [0], [1], [0, 0, 1, 1], [], []>} : vector<16x512xbf16>, vector<512x512xbf16>, vector<16x512xf32> -> vector<16x512xf32>
    %c0_3 = arith.constant 0 : index
    %c0_4 = arith.constant 0 : index
    %3 = vector.load %arg3[%c0_3, %c0_4] : memref<1x512xf32, #tpu.memory_space<vmem>>, vector<1x512xf32>
    %4 = vector.broadcast %3 : vector<1x512xf32> to vector<16x512xf32>
    %5 = arith.addf %2, %4 : vector<16x512xf32>
    %cst_5 = arith.constant 0.000000e+00 : f32
    %6 = vector.broadcast %cst_5 : f32 to vector<16x512xf32>
    %7 = arith.cmpf ogt, %5, %6 : vector<16x512xf32>
    %cst_6 = arith.constant 2.000000e-01 : f32
    %8 = vector.broadcast %cst_6 : f32 to vector<16x512xf32>
    %9 = arith.mulf %8, %5 : vector<16x512xf32>
    %10 = arith.select %7, %5, %9 : vector<16x512xi1>, vector<16x512xf32>
    %11 = arith.truncf %10 : vector<16x512xf32> to vector<16x512xbf16>
    %c0_7 = arith.constant 0 : index
    %c0_8 = arith.constant 0 : index
    %12 = vector.load %arg4[%c0_7, %c0_8] : memref<512x512xbf16, #tpu.memory_space<vmem>>, vector<512x512xbf16>
    %cst_9 = arith.constant dense<0.000000e+00> : vector<16x512xf32>
    %13 = tpu.matmul %11, %12, %cst_9 {dimension_numbers = #tpu.dot_dimension_numbers<[1], [0], [0], [1], [0, 0, 1, 1], [], []>} : vector<16x512xbf16>, vector<512x512xbf16>, vector<16x512xf32> -> vector<16x512xf32>
    %c0_10 = arith.constant 0 : index
    %c0_11 = arith.constant 0 : index
    %14 = vector.load %arg5[%c0_10, %c0_11] : memref<1x512xf32, #tpu.memory_space<vmem>>, vector<1x512xf32>
    %15 = vector.broadcast %14 : vector<1x512xf32> to vector<16x512xf32>
    %16 = arith.addf %13, %15 : vector<16x512xf32>
    %cst_12 = arith.constant 0.000000e+00 : f32
    %17 = vector.broadcast %cst_12 : f32 to vector<16x512xf32>
    %18 = arith.cmpf ogt, %16, %17 : vector<16x512xf32>
    %cst_13 = arith.constant 2.000000e-01 : f32
    %19 = vector.broadcast %cst_13 : f32 to vector<16x512xf32>
    %20 = arith.mulf %19, %16 : vector<16x512xf32>
    %21 = arith.select %18, %16, %20 : vector<16x512xi1>, vector<16x512xf32>
    %22 = arith.truncf %21 : vector<16x512xf32> to vector<16x512xbf16>
    %c0_14 = arith.constant 0 : index
    %c0_15 = arith.constant 0 : index
    %23 = vector.load %arg6[%c0_14, %c0_15] : memref<512x512xbf16, #tpu.memory_space<vmem>>, vector<512x512xbf16>
    %cst_16 = arith.constant dense<0.000000e+00> : vector<16x512xf32>
    %24 = tpu.matmul %22, %23, %cst_16 {dimension_numbers = #tpu.dot_dimension_numbers<[1], [0], [0], [1], [0, 0, 1, 1], [], []>} : vector<16x512xbf16>, vector<512x512xbf16>, vector<16x512xf32> -> vector<16x512xf32>
    %c0_17 = arith.constant 0 : index
    %c0_18 = arith.constant 0 : index
    %25 = vector.load %arg7[%c0_17, %c0_18] : memref<1x512xf32, #tpu.memory_space<vmem>>, vector<1x512xf32>
    %26 = vector.broadcast %25 : vector<1x512xf32> to vector<16x512xf32>
    %27 = arith.addf %24, %26 : vector<16x512xf32>
    %c0_19 = arith.constant 0 : index
    %c0_20 = arith.constant 0 : index
    %28 = vector.load %arg10[%c0_19, %c0_20] : memref<16x512xf32, #tpu.memory_space<vmem>>, vector<16x512xf32>
    tpu.vector_store %arg10[%c0_19, %c0_20], %27 {strides = array<i32>} : memref<16x512xf32, #tpu.memory_space<vmem>>, vector<16x512xf32>,
    %29 = arith.truncf %27 : vector<16x512xf32> to vector<16x512xbf16>
    %c0_21 = arith.constant 0 : index
    %c0_22 = arith.constant 0 : index
    %30 = vector.load %arg8[%c0_21, %c0_22] : memref<512x1024xbf16, #tpu.memory_space<vmem>>, vector<512x1024xbf16>
    %cst_23 = arith.constant dense<0.000000e+00> : vector<16x1024xf32>
    %31 = tpu.matmul %29, %30, %cst_23 {dimension_numbers = #tpu.dot_dimension_numbers<[1], [0], [0], [1], [0, 0, 1, 1], [], []>} : vector<16x512xbf16>, vector<512x1024xbf16>, vector<16x1024xf32> -> vector<16x1024xf32>
    %c0_24 = arith.constant 0 : index
    %c0_25 = arith.constant 0 : index
    %32 = vector.load %arg9[%c0_24, %c0_25] : memref<1x1024xf32, #tpu.memory_space<vmem>>, vector<1x1024xf32>
    %33 = vector.broadcast %32 : vector<1x1024xf32> to vector<16x1024xf32>
    %34 = arith.addf %31, %33 : vector<16x1024xf32>
    %c0_26 = arith.constant 0 : index
    %c0_27 = arith.constant 0 : index
    %35 = vector.load %arg11[%c0_26, %c0_27] : memref<16x1024xf32, #tpu.memory_space<vmem>>, vector<16x1024xf32>
    tpu.vector_store %arg11[%c0_26, %c0_27], %34 {strides = array<i32>} : memref<16x1024xf32, #tpu.memory_space<vmem>>, vector<16x1024xf32>,
    return
  }
  func.func @transform_0(%arg0: i32) -> (i32, i32) {
    %c0_i32 = arith.constant 0 : i32
    %c0_i32_0 = arith.constant 0 : i32
    return %arg0, %c0_i32 : i32, i32
  }
  func.func @transform_1(%arg0: i32) -> (i32, i32) {
    %c0_i32 = arith.constant 0 : i32
    %c0_i32_0 = arith.constant 0 : i32
    %c0_i32_1 = arith.constant 0 : i32
    return %c0_i32, %c0_i32_0 : i32, i32
  }
  func.func @transform_2(%arg0: i32) -> (i32, i32) {
    %c0_i32 = arith.constant 0 : i32
    %c0_i32_0 = arith.constant 0 : i32
    %c0_i32_1 = arith.constant 0 : i32
    return %c0_i32, %c0_i32_0 : i32, i32
  }
  func.func @transform_3(%arg0: i32) -> (i32, i32) {
    %c0_i32 = arith.constant 0 : i32
    %c0_i32_0 = arith.constant 0 : i32
    %c0_i32_1 = arith.constant 0 : i32
    return %c0_i32, %c0_i32_0 : i32, i32
  }
  func.func @transform_4(%arg0: i32) -> (i32, i32) {
    %c0_i32 = arith.constant 0 : i32
    %c0_i32_0 = arith.constant 0 : i32
    %c0_i32_1 = arith.constant 0 : i32
    return %c0_i32, %c0_i32_0 : i32, i32
  }
  func.func @transform_5(%arg0: i32) -> (i32, i32) {
    %c0_i32 = arith.constant 0 : i32
    %c0_i32_0 = arith.constant 0 : i32
    %c0_i32_1 = arith.constant 0 : i32
    return %c0_i32, %c0_i32_0 : i32, i32
  }
  func.func @transform_6(%arg0: i32) -> (i32, i32) {
    %c0_i32 = arith.constant 0 : i32
    %c0_i32_0 = arith.constant 0 : i32
    %c0_i32_1 = arith.constant 0 : i32
    return %c0_i32, %c0_i32_0 : i32, i32
  }
  func.func @transform_7(%arg0: i32) -> (i32, i32) {
    %c0_i32 = arith.constant 0 : i32
    %c0_i32_0 = arith.constant 0 : i32
    %c0_i32_1 = arith.constant 0 : i32
    return %c0_i32, %c0_i32_0 : i32, i32
  }
  func.func @transform_8(%arg0: i32) -> (i32, i32) {
    %c0_i32 = arith.constant 0 : i32
    %c0_i32_0 = arith.constant 0 : i32
    %c0_i32_1 = arith.constant 0 : i32
    return %c0_i32, %c0_i32_0 : i32, i32
  }
  func.func @transform_9(%arg0: i32) -> (i32, i32) {
    %c0_i32 = arith.constant 0 : i32
    %c0_i32_0 = arith.constant 0 : i32
    return %arg0, %c0_i32 : i32, i32
  }
  func.func @transform_10(%arg0: i32) -> (i32, i32) {
    %c0_i32 = arith.constant 0 : i32
    %c0_i32_0 = arith.constant 0 : i32
    return %arg0, %c0_i32 : i32, i32
  }
}

</mosaic_0001>

<llo_original>
// kernel: small_decoder_forward.1
$region0: #{small_decoder_forward.1}
  #allocation0 [shape = 'u32[]', space=smem, size = 0x4, offset = 0x4, fixed_abs, tag = 'smem constant byte address 0x4 - core index']
  #allocation1 [shape = 'u32[144,128]{1,0:T(1,128)}', space=vmem, size = 0x12000, scoped, tag = 'internal scratch']
  %s0 = inlined_call_operand.vmem [shape: bf16[16,512], index: 0, kind: input, shape index: {}]
  %s1 = inlined_call_operand.hbm [shape: bf16[512,512], index: 1, kind: input, shape index: {}]
  %s2 = inlined_call_operand.vmem [shape: f32[1,512], index: 2, kind: input, shape index: {}]
  %s3 = inlined_call_operand.hbm [shape: bf16[512,512], index: 3, kind: input, shape index: {}]
  %s4 = inlined_call_operand.vmem [shape: f32[1,512], index: 4, kind: input, shape index: {}]
  %s5 = inlined_call_operand.hbm [shape: bf16[512,512], index: 5, kind: input, shape index: {}]
  %s6 = inlined_call_operand.vmem [shape: f32[1,512], index: 6, kind: input, shape index: {}]
  %s7 = inlined_call_operand.hbm [shape: bf16[512,1024], index: 7, kind: input, shape index: {}]
  %s8 = inlined_call_operand.vmem [shape: f32[1,1024], index: 8, kind: input, shape index: {}]
  %s9 = inlined_call_operand.hbm [shape: f32[16,512], index: 9, kind: output, shape index: {0}]
  %s10 = inlined_call_operand.hbm [shape: f32[16,1024], index: 10, kind: output, shape index: {1}]
  %11 = xla_tuple %s9, %s10
  %s12 = sld [smem:[#allocation0]]
  $region70: #{small_decoder_forward.1} parent=0
    _
  %s14 = ssub.s32 1, %s12
  %s15 = scalar_select 0, %s14, %s12
  $region1: #{small_decoder_forward.1} parent=0
    #allocation2 [shape = 'u8[524288]{0}', space=vmem, size = 0x80000, scoped, tag = 'input window, operand 1, single buffered']
    #allocation3 [shape = 's32[1]{0}', space=sflag, size = 0x4, scoped, tag = 'scoped memory for small_decoder_forward.1']
    #allocation4 [shape = 's32[1]{0}', space=sflag, size = 0x4, scoped, tag = 'scoped memory for small_decoder_forward.1']
    #allocation5 [shape = 'u8[524288]{0}', space=vmem, size = 0x80000, scoped, tag = 'input window, operand 3, single buffered']
    #allocation6 [shape = 's32[1]{0}', space=sflag, size = 0x4, scoped, tag = 'scoped memory for small_decoder_forward.1']
    #allocation7 [shape = 'u8[524288]{0}', space=vmem, size = 0x80000, scoped, tag = 'input window, operand 5, single buffered']
    #allocation8 [shape = 'u8[1048576]{0}', space=vmem, size = 0x100000, scoped, tag = 'input window, operand 7, single buffered']
    #allocation9 [shape = 's32[1]{0}', space=sflag, size = 0x4, scoped, tag = 'scoped memory for small_decoder_forward.1']
    #allocation10 [shape = 'u8[32768]{0}', space=vmem, size = 0x8000, scoped, tag = 'output window, operand 0, single buffered']
    #allocation11 [shape = 'u8[65536]{0}', space=vmem, size = 0x10000, scoped, tag = 'output window, operand 1, single buffered']
    #allocation12 [shape = 's32[1]{0}', space=sflag, size = 0x4, scoped, tag = 'scoped memory for small_decoder_forward.1']
    %16 = vsyncpa [#allocation3], 0
    %17 = vsyncpa [#allocation6], 0
    %18 = vsyncpa [#allocation9], 0
    %19 = vsyncpa [#allocation4], 0
    %20 = vsyncpa [#allocation12], 0
    // Predicated region
    $region2: #{small_decoder_forward.1} parent=1 // pred_check
      _
    $region3: #{small_decoder_forward.1} parent=1 // pred_check_branch
      %22 = sbr.rel (0) target = $region5
    $region4: #{small_decoder_forward.1} parent=1 // pred_region
      _
    $region5: #{small_decoder_forward.1} parent=1 // pred_fallthru
      _
    // Predicated region
    $region6: #{small_decoder_forward.1} parent=1 // pred_check
      _
    $region7: #{small_decoder_forward.1} parent=1 // pred_check_branch
      %24 = sbr.rel (0) target = $region9
    $region8: #{small_decoder_forward.1} parent=1 // pred_region
      %s26 = ssub.s32 16384, 16384
      %27 = vsyncadd [#allocation3], %s26
      %s28 = sshll.u32 [#allocation2], 4
      %s29 = int_to_ptr.vmem [resolvable:$true] %s28
      %34 = dma.hbm_to_vmem [thread:$0]  %s1, 16384, %s29, [#allocation3], 256, 256, 16
    $region9: #{small_decoder_forward.1} parent=1 // pred_fallthru
      _
    // Predicated region
    $region10: #{small_decoder_forward.1} parent=1 // pred_check
      _
    $region11: #{small_decoder_forward.1} parent=1 // pred_check_branch
      %36 = sbr.rel (0) target = $region13
    $region12: #{small_decoder_forward.1} parent=1 // pred_region
      _
    $region13: #{small_decoder_forward.1} parent=1 // pred_fallthru
      _
    // Predicated region
    $region14: #{small_decoder_forward.1} parent=1 // pred_check
      _
    $region15: #{small_decoder_forward.1} parent=1 // pred_check_branch
      %38 = sbr.rel (0) target = $region17
    $region16: #{small_decoder_forward.1} parent=1 // pred_region
      %s40 = ssub.s32 16384, 16384
      %41 = vsyncadd [#allocation6], %s40
      %s42 = sshll.u32 [#allocation5], 4
      %s43 = int_to_ptr.vmem [resolvable:$true] %s42
      %48 = dma.hbm_to_vmem [thread:$0]  %s3, 16384, %s43, [#allocation6], 256, 256, 16
    $region17: #{small_decoder_forward.1} parent=1 // pred_fallthru
      _
    // Predicated region
    $region18: #{small_decoder_forward.1} parent=1 // pred_check
      _
    $region19: #{small_decoder_forward.1} parent=1 // pred_check_branch
      %50 = sbr.rel (0) target = $region21
    $region20: #{small_decoder_forward.1} parent=1 // pred_region
      _
    $region21: #{small_decoder_forward.1} parent=1 // pred_fallthru
      _
    // Predicated region
    $region22: #{small_decoder_forward.1} parent=1 // pred_check
      _
    $region23: #{small_decoder_forward.1} parent=1 // pred_check_branch
      %52 = sbr.rel (0) target = $region25
    $region24: #{small_decoder_forward.1} parent=1 // pred_region
      %s54 = ssub.s32 16384, 16384
      %55 = vsyncadd [#allocation6], %s54
      %s56 = sshll.u32 [#allocation7], 4
      %s57 = int_to_ptr.vmem [resolvable:$true] %s56
      %62 = dma.hbm_to_vmem [thread:$0]  %s5, 16384, %s57, [#allocation6], 256, 256, 16
    $region25: #{small_decoder_forward.1} parent=1 // pred_fallthru
      _
    // Predicated region
    $region26: #{small_decoder_forward.1} parent=1 // pred_check
      _
    $region27: #{small_decoder_forward.1} parent=1 // pred_check_branch
      %64 = sbr.rel (0) target = $region29
    $region28: #{small_decoder_forward.1} parent=1 // pred_region
      _
    $region29: #{small_decoder_forward.1} parent=1 // pred_fallthru
      _
    // Predicated region
    $region30: #{small_decoder_forward.1} parent=1 // pred_check
      _
    $region31: #{small_decoder_forward.1} parent=1 // pred_check_branch
      %66 = sbr.rel (0) target = $region33
    $region32: #{small_decoder_forward.1} parent=1 // pred_region
      %s68 = ssub.s32 32768, 32768
      %69 = vsyncadd [#allocation9], %s68
      %s70 = sshll.u32 [#allocation8], 4
      %s71 = int_to_ptr.vmem [resolvable:$true] %s70
      %76 = dma.hbm_to_vmem [thread:$0]  %s7, 32768, %s71, [#allocation9], 512, 512, 32
    $region33: #{small_decoder_forward.1} parent=1 // pred_fallthru
      _
    // Predicated region
    $region34: #{small_decoder_forward.1} parent=1 // pred_check
      _
    $region35: #{small_decoder_forward.1} parent=1 // pred_check_branch
      %78 = sbr.rel (0) target = $region37
    $region36: #{small_decoder_forward.1} parent=1 // pred_region
      _
    $region37: #{small_decoder_forward.1} parent=1 // pred_fallthru
      _
    // Predicated region
    $region38: #{small_decoder_forward.1} parent=1 // pred_check
      _
    $region39: #{small_decoder_forward.1} parent=1 // pred_check_branch
      %80 = sbr.rel (0) target = $region41
    $region40: #{small_decoder_forward.1} parent=1 // pred_region
      %81 = dma.done [#allocation3], 16384
    $region41: #{small_decoder_forward.1} parent=1 // pred_fallthru
      _
    // Predicated region
    $region42: #{small_decoder_forward.1} parent=1 // pred_check
      _
    $region43: #{small_decoder_forward.1} parent=1 // pred_check_branch
      %83 = sbr.rel (0) target = $region45
    $region44: #{small_decoder_forward.1} parent=1 // pred_region
      %84 = dma.done [#allocation6], 16384
    $region45: #{small_decoder_forward.1} parent=1 // pred_fallthru
      _
    // Predicated region
    $region46: #{small_decoder_forward.1} parent=1 // pred_check
      _
    $region47: #{small_decoder_forward.1} parent=1 // pred_check_branch
      %86 = sbr.rel (0) target = $region49
    $region48: #{small_decoder_forward.1} parent=1 // pred_region
      %87 = dma.done [#allocation6], 16384
    $region49: #{small_decoder_forward.1} parent=1 // pred_fallthru
      _
    // Predicated region
    $region50: #{small_decoder_forward.1} parent=1 // pred_check
      _
    $region51: #{small_decoder_forward.1} parent=1 // pred_check_branch
      %89 = sbr.rel (0) target = $region53
    $region52: #{small_decoder_forward.1} parent=1 // pred_region
      %90 = dma.done [#allocation9], 32768
    $region53: #{small_decoder_forward.1} parent=1 // pred_fallthru
      _
    %v91 = vld [vmem:[%s0] sm:$0xff]
    %v92 = vld [vmem:[%s0 + $0x8] sm:$0xff]
    %v93 = vld [vmem:[%s0 + $0x10] sm:$0xff]
    %v94 = vld [vmem:[%s0 + $0x18] sm:$0xff]
    %v95 = vld [vmem:[#allocation2] sm:$0xff]
    %v96 = vld [vmem:[#allocation2 + $0x8] sm:$0xff]
    %v97 = vld [vmem:[#allocation2 + $0x10] sm:$0xff]
    %v98 = vld [vmem:[#allocation2 + $0x18] sm:$0xff]
    %v99 = vld [vmem:[#allocation2 + $0x20] sm:$0xff]
    %v100 = vld [vmem:[#allocation2 + $0x28] sm:$0xff]
    %v101 = vld [vmem:[#allocation2 + $0x30] sm:$0xff]
    %v102 = vld [vmem:[#allocation2 + $0x38] sm:$0xff]
    %v103 = vld [vmem:[#allocation2 + $0x40] sm:$0xff]
    %v104 = vld [vmem:[#allocation2 + $0x48] sm:$0xff]
    %v105 = vld [vmem:[#allocation2 + $0x50] sm:$0xff]
    %v106 = vld [vmem:[#allocation2 + $0x58] sm:$0xff]
    %v107 = vld [vmem:[#allocation2 + $0x60] sm:$0xff]
    %v108 = vld [vmem:[#allocation2 + $0x68] sm:$0xff]
    %v109 = vld [vmem:[#allocation2 + $0x70] sm:$0xff]
    %v110 = vld [vmem:[#allocation2 + $0x78] sm:$0xff]
    %v111 = vld [vmem:[#allocation2 + $0x80] sm:$0xff]
    %v112 = vld [vmem:[#allocation2 + $0x88] sm:$0xff]
    %v113 = vld [vmem:[#allocation2 + $0x90] sm:$0xff]
    %v114 = vld [vmem:[#allocation2 + $0x98] sm:$0xff]
    %v115 = vld [vmem:[#allocation2 + $0xa0] sm:$0xff]
    %v116 = vld [vmem:[#allocation2 + $0xa8] sm:$0xff]
    %v117 = vld [vmem:[#allocation2 + $0xb0] sm:$0xff]
    %v118 = vld [vmem:[#allocation2 + $0xb8] sm:$0xff]
    %v119 = vld [vmem:[#allocation2 + $0xc0] sm:$0xff]
    %v120 = vld [vmem:[#allocation2 + $0xc8] sm:$0xff]
    %v121 = vld [vmem:[#allocation2 + $0xd0] sm:$0xff]
    %v122 = vld [vmem:[#allocation2 + $0xd8] sm:$0xff]
    %v123 = vld [vmem:[#allocation2 + $0xe0] sm:$0xff]
    %v124 = vld [vmem:[#allocation2 + $0xe8] sm:$0xff]
    %v125 = vld [vmem:[#allocation2 + $0xf0] sm:$0xff]
    %v126 = vld [vmem:[#allocation2 + $0xf8] sm:$0xff]
    %v127 = vld [vmem:[#allocation2 + $0x100] sm:$0xff]
    %v128 = vld [vmem:[#allocation2 + $0x108] sm:$0xff]
    %v129 = vld [vmem:[#allocation2 + $0x110] sm:$0xff]
    %v130 = vld [vmem:[#allocation2 + $0x118] sm:$0xff]
    %v131 = vld [vmem:[#allocation2 + $0x120] sm:$0xff]
    %v132 = vld [vmem:[#allocation2 + $0x128] sm:$0xff]
    %v133 = vld [vmem:[#allocation2 + $0x130] sm:$0xff]
    %v134 = vld [vmem:[#allocation2 + $0x138] sm:$0xff]
    %v135 = vld [vmem:[#allocation2 + $0x140] sm:$0xff]
    %v136 = vld [vmem:[#allocation2 + $0x148] sm:$0xff]
    %v137 = vld [vmem:[#allocation2 + $0x150] sm:$0xff]
    %v138 = vld [vmem:[#allocation2 + $0x158] sm:$0xff]
    %v139 = vld [vmem:[#allocation2 + $0x160] sm:$0xff]
    %v140 = vld [vmem:[#allocation2 + $0x168] sm:$0xff]
    %v141 = vld [vmem:[#allocation2 + $0x170] sm:$0xff]
    %v142 = vld [vmem:[#allocation2 + $0x178] sm:$0xff]
    %v143 = vld [vmem:[#allocation2 + $0x180] sm:$0xff]
    %v144 = vld [vmem:[#allocation2 + $0x188] sm:$0xff]
    %v145 = vld [vmem:[#allocation2 + $0x190] sm:$0xff]
    %v146 = vld [vmem:[#allocation2 + $0x198] sm:$0xff]
    %v147 = vld [vmem:[#allocation2 + $0x1a0] sm:$0xff]
    %v148 = vld [vmem:[#allocation2 + $0x1a8] sm:$0xff]
    %v149 = vld [vmem:[#allocation2 + $0x1b0] sm:$0xff]
    %v150 = vld [vmem:[#allocation2 + $0x1b8] sm:$0xff]
    %v151 = vld [vmem:[#allocation2 + $0x1c0] sm:$0xff]
    %v152 = vld [vmem:[#allocation2 + $0x1c8] sm:$0xff]
    %v153 = vld [vmem:[#allocation2 + $0x1d0] sm:$0xff]
    %v154 = vld [vmem:[#allocation2 + $0x1d8] sm:$0xff]
    %v155 = vld [vmem:[#allocation2 + $0x1e0] sm:$0xff]
    %v156 = vld [vmem:[#allocation2 + $0x1e8] sm:$0xff]
    %v157 = vld [vmem:[#allocation2 + $0x1f0] sm:$0xff]
    %v158 = vld [vmem:[#allocation2 + $0x1f8] sm:$0xff]
    %v159 = vld [vmem:[#allocation2 + $0x200] sm:$0xff]
    %v160 = vld [vmem:[#allocation2 + $0x208] sm:$0xff]
    %v161 = vld [vmem:[#allocation2 + $0x210] sm:$0xff]
    %v162 = vld [vmem:[#allocation2 + $0x218] sm:$0xff]
    %v163 = vld [vmem:[#allocation2 + $0x220] sm:$0xff]
    %v164 = vld [vmem:[#allocation2 + $0x228] sm:$0xff]
    %v165 = vld [vmem:[#allocation2 + $0x230] sm:$0xff]
    %v166 = vld [vmem:[#allocation2 + $0x238] sm:$0xff]
    %v167 = vld [vmem:[#allocation2 + $0x240] sm:$0xff]
    %v168 = vld [vmem:[#allocation2 + $0x248] sm:$0xff]
    %v169 = vld [vmem:[#allocation2 + $0x250] sm:$0xff]
    %v170 = vld [vmem:[#allocation2 + $0x258] sm:$0xff]
    %v171 = vld [vmem:[#allocation2 + $0x260] sm:$0xff]
    %v172 = vld [vmem:[#allocation2 + $0x268] sm:$0xff]
    %v173 = vld [vmem:[#allocation2 + $0x270] sm:$0xff]
    %v174 = vld [vmem:[#allocation2 + $0x278] sm:$0xff]
    %v175 = vld [vmem:[#allocation2 + $0x280] sm:$0xff]
    %v176 = vld [vmem:[#allocation2 + $0x288] sm:$0xff]
    %v177 = vld [vmem:[#allocation2 + $0x290] sm:$0xff]
    %v178 = vld [vmem:[#allocation2 + $0x298] sm:$0xff]
    %v179 = vld [vmem:[#allocation2 + $0x2a0] sm:$0xff]
    %v180 = vld [vmem:[#allocation2 + $0x2a8] sm:$0xff]
    %v181 = vld [vmem:[#allocation2 + $0x2b0] sm:$0xff]
    %v182 = vld [vmem:[#allocation2 + $0x2b8] sm:$0xff]
    %v183 = vld [vmem:[#allocation2 + $0x2c0] sm:$0xff]
    %v184 = vld [vmem:[#allocation2 + $0x2c8] sm:$0xff]
    %v185 = vld [vmem:[#allocation2 + $0x2d0] sm:$0xff]
    %v186 = vld [vmem:[#allocation2 + $0x2d8] sm:$0xff]
    %v187 = vld [vmem:[#allocation2 + $0x2e0] sm:$0xff]
    %v188 = vld [vmem:[#allocation2 + $0x2e8] sm:$0xff]
    %v189 = vld [vmem:[#allocation2 + $0x2f0] sm:$0xff]
    %v190 = vld [vmem:[#allocation2 + $0x2f8] sm:$0xff]
    %v191 = vld [vmem:[#allocation2 + $0x300] sm:$0xff]
    %v192 = vld [vmem:[#allocation2 + $0x308] sm:$0xff]
    %v193 = vld [vmem:[#allocation2 + $0x310] sm:$0xff]
    %v194 = vld [vmem:[#allocation2 + $0x318] sm:$0xff]
    %v195 = vld [vmem:[#allocation2 + $0x320] sm:$0xff]
    %v196 = vld [vmem:[#allocation2 + $0x328] sm:$0xff]
    %v197 = vld [vmem:[#allocation2 + $0x330] sm:$0xff]
    %v198 = vld [vmem:[#allocation2 + $0x338] sm:$0xff]
    %v199 = vld [vmem:[#allocation2 + $0x340] sm:$0xff]
    %v200 = vld [vmem:[#allocation2 + $0x348] sm:$0xff]
    %v201 = vld [vmem:[#allocation2 + $0x350] sm:$0xff]
    %v202 = vld [vmem:[#allocation2 + $0x358] sm:$0xff]
    %v203 = vld [vmem:[#allocation2 + $0x360] sm:$0xff]
    %v204 = vld [vmem:[#allocation2 + $0x368] sm:$0xff]
    %v205 = vld [vmem:[#allocation2 + $0x370] sm:$0xff]
    %v206 = vld [vmem:[#allocation2 + $0x378] sm:$0xff]
    %v207 = vld [vmem:[#allocation2 + $0x380] sm:$0xff]
    %v208 = vld [vmem:[#allocation2 + $0x388] sm:$0xff]
    %v209 = vld [vmem:[#allocation2 + $0x390] sm:$0xff]
    %v210 = vld [vmem:[#allocation2 + $0x398] sm:$0xff]
    %v211 = vld [vmem:[#allocation2 + $0x3a0] sm:$0xff]
    %v212 = vld [vmem:[#allocation2 + $0x3a8] sm:$0xff]
    %v213 = vld [vmem:[#allocation2 + $0x3b0] sm:$0xff]
    %v214 = vld [vmem:[#allocation2 + $0x3b8] sm:$0xff]
    %v215 = vld [vmem:[#allocation2 + $0x3c0] sm:$0xff]
    %v216 = vld [vmem:[#allocation2 + $0x3c8] sm:$0xff]
    %v217 = vld [vmem:[#allocation2 + $0x3d0] sm:$0xff]
    %v218 = vld [vmem:[#allocation2 + $0x3d8] sm:$0xff]
    %v219 = vld [vmem:[#allocation2 + $0x3e0] sm:$0xff]
    %v220 = vld [vmem:[#allocation2 + $0x3e8] sm:$0xff]
    %v221 = vld [vmem:[#allocation2 + $0x3f0] sm:$0xff]
    %v222 = vld [vmem:[#allocation2 + $0x3f8] sm:$0xff]
    %v223 = vld [vmem:[%s2] sm:$0xf]
    %v225 = vlaneseq
    %v226 = vshrl.u32 %v225, 7
    %v227 = vsub.s32 0, %v226
    %v228 = vrot.slane %v223, %v227
    %v229 = vlaneseq
    %v230 = vshrl.u32 %v229, 7
    %v231 = vsub.s32 1, %v230
    %v232 = vrot.slane %v223, %v231
    %v233 = vlaneseq
    %v234 = vshrl.u32 %v233, 7
    %v235 = vsub.s32 2, %v234
    %v236 = vrot.slane %v223, %v235
    %v237 = vlaneseq
    %v238 = vshrl.u32 %v237, 7
    %v239 = vsub.s32 3, %v238
    %v240 = vrot.slane %v223, %v239
    %v249 = vunpack.c.l.b16 %v91
    %v250 = vunpack.c.h.b16 %v91
    %v251 = vunpack.c.l.b16 %v92
    %v252 = vunpack.c.h.b16 %v92
    %v253 = vunpack.c.l.b16 %v93
    %v254 = vunpack.c.h.b16 %v93
    %v255 = vunpack.c.l.b16 %v94
    %v256 = vunpack.c.h.b16 %v94
    %v257 = vpack.c.b16 %v253, %v249
    %v258 = vpack.c.b16 %v254, %v250
    %v259 = vpack.c.b16 %v255, %v251
    %v260 = vpack.c.b16 %v256, %v252
    %v393 = vunpack.c.l.b16 %v95
    %v394 = vunpack.c.h.b16 %v95
    %v395 = vunpack.c.l.b16 %v96
    %v396 = vunpack.c.h.b16 %v96
    %v397 = vunpack.c.l.b16 %v97
    %v398 = vunpack.c.h.b16 %v97
    %v399 = vunpack.c.l.b16 %v98
    %v400 = vunpack.c.h.b16 %v98
    %v401 = vunpack.c.l.b16 %v99
    %v402 = vunpack.c.h.b16 %v99
    %v403 = vunpack.c.l.b16 %v100
    %v404 = vunpack.c.h.b16 %v100
    %v405 = vunpack.c.l.b16 %v101
    %v406 = vunpack.c.h.b16 %v101
    %v407 = vunpack.c.l.b16 %v102
    %v408 = vunpack.c.h.b16 %v102
    %v409 = vunpack.c.l.b16 %v103
    %v410 = vunpack.c.h.b16 %v103
    %v411 = vunpack.c.l.b16 %v104
    %v412 = vunpack.c.h.b16 %v104
    %v413 = vunpack.c.l.b16 %v105
    %v414 = vunpack.c.h.b16 %v105
    %v415 = vunpack.c.l.b16 %v106
    %v416 = vunpack.c.h.b16 %v106
    %v417 = vunpack.c.l.b16 %v107
    %v418 = vunpack.c.h.b16 %v107
    %v419 = vunpack.c.l.b16 %v108
    %v420 = vunpack.c.h.b16 %v108
    %v421 = vunpack.c.l.b16 %v109
    %v422 = vunpack.c.h.b16 %v109
    %v423 = vunpack.c.l.b16 %v110
    %v424 = vunpack.c.h.b16 %v110
    %v425 = vunpack.c.l.b16 %v111
    %v426 = vunpack.c.h.b16 %v111
    %v427 = vunpack.c.l.b16 %v112
    %v428 = vunpack.c.h.b16 %v112
    %v429 = vunpack.c.l.b16 %v113
    %v430 = vunpack.c.h.b16 %v113
    %v431 = vunpack.c.l.b16 %v114
    %v432 = vunpack.c.h.b16 %v114
    %v433 = vunpack.c.l.b16 %v115
    %v434 = vunpack.c.h.b16 %v115
    %v435 = vunpack.c.l.b16 %v116
    %v436 = vunpack.c.h.b16 %v116
    %v437 = vunpack.c.l.b16 %v117
    %v438 = vunpack.c.h.b16 %v117
    %v439 = vunpack.c.l.b16 %v118
    %v440 = vunpack.c.h.b16 %v118
    %v441 = vunpack.c.l.b16 %v119
    %v442 = vunpack.c.h.b16 %v119
    %v443 = vunpack.c.l.b16 %v120
    %v444 = vunpack.c.h.b16 %v120
    %v445 = vunpack.c.l.b16 %v121
    %v446 = vunpack.c.h.b16 %v121
    %v447 = vunpack.c.l.b16 %v122
    %v448 = vunpack.c.h.b16 %v122
    %v449 = vunpack.c.l.b16 %v123
    %v450 = vunpack.c.h.b16 %v123
    %v451 = vunpack.c.l.b16 %v124
    %v452 = vunpack.c.h.b16 %v124
    %v453 = vunpack.c.l.b16 %v125
    %v454 = vunpack.c.h.b16 %v125
    %v455 = vunpack.c.l.b16 %v126
    %v456 = vunpack.c.h.b16 %v126
    %v457 = vunpack.c.l.b16 %v127
    %v458 = vunpack.c.h.b16 %v127
    %v459 = vunpack.c.l.b16 %v128
    %v460 = vunpack.c.h.b16 %v128
    %v461 = vunpack.c.l.b16 %v129
    %v462 = vunpack.c.h.b16 %v129
    %v463 = vunpack.c.l.b16 %v130
    %v464 = vunpack.c.h.b16 %v130
    %v465 = vunpack.c.l.b16 %v131
    %v466 = vunpack.c.h.b16 %v131
    %v467 = vunpack.c.l.b16 %v132
    %v468 = vunpack.c.h.b16 %v132
    %v469 = vunpack.c.l.b16 %v133
    %v470 = vunpack.c.h.b16 %v133
    %v471 = vunpack.c.l.b16 %v134
    %v472 = vunpack.c.h.b16 %v134
    %v473 = vunpack.c.l.b16 %v135
    %v474 = vunpack.c.h.b16 %v135
    %v475 = vunpack.c.l.b16 %v136
    %v476 = vunpack.c.h.b16 %v136
    %v477 = vunpack.c.l.b16 %v137
    %v478 = vunpack.c.h.b16 %v137
    %v479 = vunpack.c.l.b16 %v138
    %v480 = vunpack.c.h.b16 %v138
    %v481 = vunpack.c.l.b16 %v139
    %v482 = vunpack.c.h.b16 %v139
    %v483 = vunpack.c.l.b16 %v140
    %v484 = vunpack.c.h.b16 %v140
    %v485 = vunpack.c.l.b16 %v141
    %v486 = vunpack.c.h.b16 %v141
    %v487 = vunpack.c.l.b16 %v142
    %v488 = vunpack.c.h.b16 %v142
    %v489 = vunpack.c.l.b16 %v143
    %v490 = vunpack.c.h.b16 %v143
    %v491 = vunpack.c.l.b16 %v144
    %v492 = vunpack.c.h.b16 %v144
    %v493 = vunpack.c.l.b16 %v145
    %v494 = vunpack.c.h.b16 %v145
    %v495 = vunpack.c.l.b16 %v146
    %v496 = vunpack.c.h.b16 %v146
    %v497 = vunpack.c.l.b16 %v147
    %v498 = vunpack.c.h.b16 %v147
    %v499 = vunpack.c.l.b16 %v148
    %v500 = vunpack.c.h.b16 %v148
    %v501 = vunpack.c.l.b16 %v149
    %v502 = vunpack.c.h.b16 %v149
    %v503 = vunpack.c.l.b16 %v150
    %v504 = vunpack.c.h.b16 %v150
    %v505 = vunpack.c.l.b16 %v151
    %v506 = vunpack.c.h.b16 %v151
    %v507 = vunpack.c.l.b16 %v152
    %v508 = vunpack.c.h.b16 %v152
    %v509 = vunpack.c.l.b16 %v153
    %v510 = vunpack.c.h.b16 %v153
    %v511 = vunpack.c.l.b16 %v154
    %v512 = vunpack.c.h.b16 %v154
    %v513 = vunpack.c.l.b16 %v155
    %v514 = vunpack.c.h.b16 %v155
    %v515 = vunpack.c.l.b16 %v156
    %v516 = vunpack.c.h.b16 %v156
    %v517 = vunpack.c.l.b16 %v157
    %v518 = vunpack.c.h.b16 %v157
    %v519 = vunpack.c.l.b16 %v158
    %v520 = vunpack.c.h.b16 %v158
    %v521 = vunpack.c.l.b16 %v159
    %v522 = vunpack.c.h.b16 %v159
    %v523 = vunpack.c.l.b16 %v160
    %v524 = vunpack.c.h.b16 %v160
    %v525 = vunpack.c.l.b16 %v161
    %v526 = vunpack.c.h.b16 %v161
    %v527 = vunpack.c.l.b16 %v162
    %v528 = vunpack.c.h.b16 %v162
    %v529 = vunpack.c.l.b16 %v163
    %v530 = vunpack.c.h.b16 %v163
    %v531 = vunpack.c.l.b16 %v164
    %v532 = vunpack.c.h.b16 %v164
    %v533 = vunpack.c.l.b16 %v165
    %v534 = vunpack.c.h.b16 %v165
    %v535 = vunpack.c.l.b16 %v166
    %v536 = vunpack.c.h.b16 %v166
    %v537 = vunpack.c.l.b16 %v167
    %v538 = vunpack.c.h.b16 %v167
    %v539 = vunpack.c.l.b16 %v168
    %v540 = vunpack.c.h.b16 %v168
    %v541 = vunpack.c.l.b16 %v169
    %v542 = vunpack.c.h.b16 %v169
    %v543 = vunpack.c.l.b16 %v170
    %v544 = vunpack.c.h.b16 %v170
    %v545 = vunpack.c.l.b16 %v171
    %v546 = vunpack.c.h.b16 %v171
    %v547 = vunpack.c.l.b16 %v172
    %v548 = vunpack.c.h.b16 %v172
    %v549 = vunpack.c.l.b16 %v173
    %v550 = vunpack.c.h.b16 %v173
    %v551 = vunpack.c.l.b16 %v174
    %v552 = vunpack.c.h.b16 %v174
    %v553 = vunpack.c.l.b16 %v175
    %v554 = vunpack.c.h.b16 %v175
    %v555 = vunpack.c.l.b16 %v176
    %v556 = vunpack.c.h.b16 %v176
    %v557 = vunpack.c.l.b16 %v177
    %v558 = vunpack.c.h.b16 %v177
    %v559 = vunpack.c.l.b16 %v178
    %v560 = vunpack.c.h.b16 %v178
    %v561 = vunpack.c.l.b16 %v179
    %v562 = vunpack.c.h.b16 %v179
    %v563 = vunpack.c.l.b16 %v180
    %v564 = vunpack.c.h.b16 %v180
    %v565 = vunpack.c.l.b16 %v181
    %v566 = vunpack.c.h.b16 %v181
    %v567 = vunpack.c.l.b16 %v182
    %v568 = vunpack.c.h.b16 %v182
    %v569 = vunpack.c.l.b16 %v183
    %v570 = vunpack.c.h.b16 %v183
    %v571 = vunpack.c.l.b16 %v184
    %v572 = vunpack.c.h.b16 %v184
    %v573 = vunpack.c.l.b16 %v185
    %v574 = vunpack.c.h.b16 %v185
    %v575 = vunpack.c.l.b16 %v186
    %v576 = vunpack.c.h.b16 %v186
    %v577 = vunpack.c.l.b16 %v187
    %v578 = vunpack.c.h.b16 %v187
    %v579 = vunpack.c.l.b16 %v188
    %v580 = vunpack.c.h.b16 %v188
    %v581 = vunpack.c.l.b16 %v189
    %v582 = vunpack.c.h.b16 %v189
    %v583 = vunpack.c.l.b16 %v190
    %v584 = vunpack.c.h.b16 %v190
    %v585 = vunpack.c.l.b16 %v191
    %v586 = vunpack.c.h.b16 %v191
    %v587 = vunpack.c.l.b16 %v192
    %v588 = vunpack.c.h.b16 %v192
    %v589 = vunpack.c.l.b16 %v193
    %v590 = vunpack.c.h.b16 %v193
    %v591 = vunpack.c.l.b16 %v194
    %v592 = vunpack.c.h.b16 %v194
    %v593 = vunpack.c.l.b16 %v195
    %v594 = vunpack.c.h.b16 %v195
    %v595 = vunpack.c.l.b16 %v196
    %v596 = vunpack.c.h.b16 %v196
    %v597 = vunpack.c.l.b16 %v197
    %v598 = vunpack.c.h.b16 %v197
    %v599 = vunpack.c.l.b16 %v198
    %v600 = vunpack.c.h.b16 %v198
    %v601 = vunpack.c.l.b16 %v199
    %v602 = vunpack.c.h.b16 %v199
    %v603 = vunpack.c.l.b16 %v200
    %v604 = vunpack.c.h.b16 %v200
    %v605 = vunpack.c.l.b16 %v201
    %v606 = vunpack.c.h.b16 %v201
    %v607 = vunpack.c.l.b16 %v202
    %v608 = vunpack.c.h.b16 %v202
    %v609 = vunpack.c.l.b16 %v203
    %v610 = vunpack.c.h.b16 %v203
    %v611 = vunpack.c.l.b16 %v204
    %v612 = vunpack.c.h.b16 %v204
    %v613 = vunpack.c.l.b16 %v205
    %v614 = vunpack.c.h.b16 %v205
    %v615 = vunpack.c.l.b16 %v206
    %v616 = vunpack.c.h.b16 %v206
    %v617 = vunpack.c.l.b16 %v207
    %v618 = vunpack.c.h.b16 %v207
    %v619 = vunpack.c.l.b16 %v208
    %v620 = vunpack.c.h.b16 %v208
    %v621 = vunpack.c.l.b16 %v209
    %v622 = vunpack.c.h.b16 %v209
    %v623 = vunpack.c.l.b16 %v210
    %v624 = vunpack.c.h.b16 %v210
    %v625 = vunpack.c.l.b16 %v211
    %v626 = vunpack.c.h.b16 %v211
    %v627 = vunpack.c.l.b16 %v212
    %v628 = vunpack.c.h.b16 %v212
    %v629 = vunpack.c.l.b16 %v213
    %v630 = vunpack.c.h.b16 %v213
    %v631 = vunpack.c.l.b16 %v214
    %v632 = vunpack.c.h.b16 %v214
    %v633 = vunpack.c.l.b16 %v215
    %v634 = vunpack.c.h.b16 %v215
    %v635 = vunpack.c.l.b16 %v216
    %v636 = vunpack.c.h.b16 %v216
    %v637 = vunpack.c.l.b16 %v217
    %v638 = vunpack.c.h.b16 %v217
    %v639 = vunpack.c.l.b16 %v218
    %v640 = vunpack.c.h.b16 %v218
    %v641 = vunpack.c.l.b16 %v219
    %v642 = vunpack.c.h.b16 %v219
    %v643 = vunpack.c.l.b16 %v220
    %v644 = vunpack.c.h.b16 %v220
    %v645 = vunpack.c.l.b16 %v221
    %v646 = vunpack.c.h.b16 %v221
    %v647 = vunpack.c.l.b16 %v222
    %v648 = vunpack.c.h.b16 %v222
    %v649 = vpack.c.b16 %v397, %v393
    %v650 = vpack.c.b16 %v398, %v394
    %v651 = vpack.c.b16 %v399, %v395
    %v652 = vpack.c.b16 %v400, %v396
    %v653 = vpack.c.b16 %v405, %v401
    %v654 = vpack.c.b16 %v406, %v402
    %v655 = vpack.c.b16 %v407, %v403
    %v656 = vpack.c.b16 %v408, %v404
    %v657 = vpack.c.b16 %v413, %v409
    %v658 = vpack.c.b16 %v414, %v410
    %v659 = vpack.c.b16 %v415, %v411
    %v660 = vpack.c.b16 %v416, %v412
    %v661 = vpack.c.b16 %v421, %v417
    %v662 = vpack.c.b16 %v422, %v418
    %v663 = vpack.c.b16 %v423, %v419
    %v664 = vpack.c.b16 %v424, %v420
    %v665 = vpack.c.b16 %v429, %v425
    %v666 = vpack.c.b16 %v430, %v426
    %v667 = vpack.c.b16 %v431, %v427
    %v668 = vpack.c.b16 %v432, %v428
    %v669 = vpack.c.b16 %v437, %v433
    %v670 = vpack.c.b16 %v438, %v434
    %v671 = vpack.c.b16 %v439, %v435
    %v672 = vpack.c.b16 %v440, %v436
    %v673 = vpack.c.b16 %v445, %v441
    %v674 = vpack.c.b16 %v446, %v442
    %v675 = vpack.c.b16 %v447, %v443
    %v676 = vpack.c.b16 %v448, %v444
    %v677 = vpack.c.b16 %v453, %v449
    %v678 = vpack.c.b16 %v454, %v450
    %v679 = vpack.c.b16 %v455, %v451
    %v680 = vpack.c.b16 %v456, %v452
    %v681 = vpack.c.b16 %v461, %v457
    %v682 = vpack.c.b16 %v462, %v458
    %v683 = vpack.c.b16 %v463, %v459
    %v684 = vpack.c.b16 %v464, %v460
    %v685 = vpack.c.b16 %v469, %v465
    %v686 = vpack.c.b16 %v470, %v466
    %v687 = vpack.c.b16 %v471, %v467
    %v688 = vpack.c.b16 %v472, %v468
    %v689 = vpack.c.b16 %v477, %v473
    %v690 = vpack.c.b16 %v478, %v474
    %v691 = vpack.c.b16 %v479, %v475
    %v692 = vpack.c.b16 %v480, %v476
    %v693 = vpack.c.b16 %v485, %v481
    %v694 = vpack.c.b16 %v486, %v482
    %v695 = vpack.c.b16 %v487, %v483
    %v696 = vpack.c.b16 %v488, %v484
    %v697 = vpack.c.b16 %v493, %v489
    %v698 = vpack.c.b16 %v494, %v490
    %v699 = vpack.c.b16 %v495, %v491
    %v700 = vpack.c.b16 %v496, %v492
    %v701 = vpack.c.b16 %v501, %v497
    %v702 = vpack.c.b16 %v502, %v498
    %v703 = vpack.c.b16 %v503, %v499
    %v704 = vpack.c.b16 %v504, %v500
    %v705 = vpack.c.b16 %v509, %v505
    %v706 = vpack.c.b16 %v510, %v506
    %v707 = vpack.c.b16 %v511, %v507
    %v708 = vpack.c.b16 %v512, %v508
    %v709 = vpack.c.b16 %v517, %v513
    %v710 = vpack.c.b16 %v518, %v514
    %v711 = vpack.c.b16 %v519, %v515
    %v712 = vpack.c.b16 %v520, %v516
    %v713 = vpack.c.b16 %v525, %v521
    %v714 = vpack.c.b16 %v526, %v522
    %v715 = vpack.c.b16 %v527, %v523
    %v716 = vpack.c.b16 %v528, %v524
    %v717 = vpack.c.b16 %v533, %v529
    %v718 = vpack.c.b16 %v534, %v530
    %v719 = vpack.c.b16 %v535, %v531
    %v720 = vpack.c.b16 %v536, %v532
    %v721 = vpack.c.b16 %v541, %v537
    %v722 = vpack.c.b16 %v542, %v538
    %v723 = vpack.c.b16 %v543, %v539
    %v724 = vpack.c.b16 %v544, %v540
    %v725 = vpack.c.b16 %v549, %v545
    %v726 = vpack.c.b16 %v550, %v546
    %v727 = vpack.c.b16 %v551, %v547
    %v728 = vpack.c.b16 %v552, %v548
    %v729 = vpack.c.b16 %v557, %v553
    %v730 = vpack.c.b16 %v558, %v554
    %v731 = vpack.c.b16 %v559, %v555
    %v732 = vpack.c.b16 %v560, %v556
    %v733 = vpack.c.b16 %v565, %v561
    %v734 = vpack.c.b16 %v566, %v562
    %v735 = vpack.c.b16 %v567, %v563
    %v736 = vpack.c.b16 %v568, %v564
    %v737 = vpack.c.b16 %v573, %v569
    %v738 = vpack.c.b16 %v574, %v570
    %v739 = vpack.c.b16 %v575, %v571
    %v740 = vpack.c.b16 %v576, %v572
    %v741 = vpack.c.b16 %v581, %v577
    %v742 = vpack.c.b16 %v582, %v578
    %v743 = vpack.c.b16 %v583, %v579
    %v744 = vpack.c.b16 %v584, %v580
    %v745 = vpack.c.b16 %v589, %v585
    %v746 = vpack.c.b16 %v590, %v586
    %v747 = vpack.c.b16 %v591, %v587
    %v748 = vpack.c.b16 %v592, %v588
    %v749 = vpack.c.b16 %v597, %v593
    %v750 = vpack.c.b16 %v598, %v594
    %v751 = vpack.c.b16 %v599, %v595
    %v752 = vpack.c.b16 %v600, %v596
    %v753 = vpack.c.b16 %v605, %v601
    %v754 = vpack.c.b16 %v606, %v602
    %v755 = vpack.c.b16 %v607, %v603
    %v756 = vpack.c.b16 %v608, %v604
    %v757 = vpack.c.b16 %v613, %v609
    %v758 = vpack.c.b16 %v614, %v610
    %v759 = vpack.c.b16 %v615, %v611
    %v760 = vpack.c.b16 %v616, %v612
    %v761 = vpack.c.b16 %v621, %v617
    %v762 = vpack.c.b16 %v622, %v618
    %v763 = vpack.c.b16 %v623, %v619
    %v764 = vpack.c.b16 %v624, %v620
    %v765 = vpack.c.b16 %v629, %v625
    %v766 = vpack.c.b16 %v630, %v626
    %v767 = vpack.c.b16 %v631, %v627
    %v768 = vpack.c.b16 %v632, %v628
    %v769 = vpack.c.b16 %v637, %v633
    %v770 = vpack.c.b16 %v638, %v634
    %v771 = vpack.c.b16 %v639, %v635
    %v772 = vpack.c.b16 %v640, %v636
    %v773 = vpack.c.b16 %v645, %v641
    %v774 = vpack.c.b16 %v646, %v642
    %v775 = vpack.c.b16 %v647, %v643
    %v776 = vpack.c.b16 %v648, %v644
    %905 = vmatprep.subr.bf16.mxu0 %v650
    %906 = vmatpush1.bf16.msra.mxu0 %v649
    %907 = vmatprep.subr.bf16.mxu0 %v654
    %908 = vmatpush1.bf16.msra.mxu0 %v653
    %909 = vmatprep.subr.bf16.mxu0 %v658
    %910 = vmatpush1.bf16.msra.mxu0 %v657
    %911 = vmatprep.subr.bf16.mxu0 %v662
    %912 = vmatpush1.bf16.msra.mxu0 %v661
    %913 = vmatprep.subr.bf16.mxu0 %v666
    %914 = vmatpush1.bf16.msra.mxu0 %v665
    %915 = vmatprep.subr.bf16.mxu0 %v670
    %916 = vmatpush1.bf16.msra.mxu0 %v669
    %917 = vmatprep.subr.bf16.mxu0 %v674
    %918 = vmatpush1.bf16.msra.mxu0 %v673
    %919 = vmatprep.subr.bf16.mxu0 %v678
    %920 = vmatpush1.bf16.msra.mxu0 %v677
    %921 = vmatprep.subr.bf16.mxu0 %v682
    %922 = vmatpush1.bf16.msra.mxu0 %v681
    %923 = vmatprep.subr.bf16.mxu0 %v686
    %924 = vmatpush1.bf16.msra.mxu0 %v685
    %925 = vmatprep.subr.bf16.mxu0 %v690
    %926 = vmatpush1.bf16.msra.mxu0 %v689
    %927 = vmatprep.subr.bf16.mxu0 %v694
    %928 = vmatpush1.bf16.msra.mxu0 %v693
    %929 = vmatprep.subr.bf16.mxu0 %v698
    %930 = vmatpush1.bf16.msra.mxu0 %v697
    %931 = vmatprep.subr.bf16.mxu0 %v702
    %932 = vmatpush1.bf16.msra.mxu0 %v701
    %933 = vmatprep.subr.bf16.mxu0 %v706
    %934 = vmatpush1.bf16.msra.mxu0 %v705
    %935 = vmatprep.subr.bf16.mxu0 %v710
    %936 = vmatpush1.bf16.msra.mxu0 %v709
    %937 = vmatprep.mubr.bf16.mxu0 %v258
    %938 = vmatmul.mubr.bf16.gmra.mrb[0].mxu0 %v257
    %v939 = vpop.f32.mrb[0].mxu0
    %v940 = vadd.f32 %v228, %v939
    %v941 = vpop.f32.mrb[0].mxu0
    %v942 = vadd.f32 %v232, %v941
    %v943 = vpop.f32.mrb[0].mxu0
    %v944 = vadd.f32 %v228, %v943
    %v945 = vpop.f32.mrb[0].mxu0
    %v946 = vadd.f32 %v232, %v945
    %947 = vdwg.mxu0
    %948 = vmatprep.subr.bf16.mxu0 %v714
    %949 = vmatpush1.bf16.msra.mxu0 %v713
    %950 = vmatprep.subr.bf16.mxu0 %v718
    %951 = vmatpush1.bf16.msra.mxu0 %v717
    %952 = vmatprep.subr.bf16.mxu0 %v722
    %953 = vmatpush1.bf16.msra.mxu0 %v721
    %954 = vmatprep.subr.bf16.mxu0 %v726
    %955 = vmatpush1.bf16.msra.mxu0 %v725
    %956 = vmatprep.subr.bf16.mxu0 %v730
    %957 = vmatpush1.bf16.msra.mxu0 %v729
    %958 = vmatprep.subr.bf16.mxu0 %v734
    %959 = vmatpush1.bf16.msra.mxu0 %v733
    %960 = vmatprep.subr.bf16.mxu0 %v738
    %961 = vmatpush1.bf16.msra.mxu0 %v737
    %962 = vmatprep.subr.bf16.mxu0 %v742
    %963 = vmatpush1.bf16.msra.mxu0 %v741
    %964 = vmatprep.subr.bf16.mxu0 %v746
    %965 = vmatpush1.bf16.msra.mxu0 %v745
    %966 = vmatprep.subr.bf16.mxu0 %v750
    %967 = vmatpush1.bf16.msra.mxu0 %v749
    %968 = vmatprep.subr.bf16.mxu0 %v754
    %969 = vmatpush1.bf16.msra.mxu0 %v753
    %970 = vmatprep.subr.bf16.mxu0 %v758
    %971 = vmatpush1.bf16.msra.mxu0 %v757
    %972 = vmatprep.subr.bf16.mxu0 %v762
    %973 = vmatpush1.bf16.msra.mxu0 %v761
    %974 = vmatprep.subr.bf16.mxu0 %v766
    %975 = vmatpush1.bf16.msra.mxu0 %v765
    %976 = vmatprep.subr.bf16.mxu0 %v770
    %977 = vmatpush1.bf16.msra.mxu0 %v769
    %978 = vmatprep.subr.bf16.mxu0 %v774
    %979 = vmatpush1.bf16.msra.mxu0 %v773
    %980 = vmatprep.mubr.bf16.mxu0 %v260
    %981 = vmatmul.mubr.bf16.gmra.mrb[0].mxu0 %v259
    %v982 = vpop.f32.mrb[0].mxu0
    %v983 = vadd.f32 %v940, %v982
    %v984 = vpop.f32.mrb[0].mxu0
    %v985 = vadd.f32 %v942, %v984
    %v986 = vpop.f32.mrb[0].mxu0
    %v987 = vadd.f32 %v944, %v986
    %v988 = vpop.f32.mrb[0].mxu0
    %v989 = vadd.f32 %v946, %v988
    %990 = vdwg.mxu0
    %991 = vmatprep.subr.bf16.mxu0 %v652
    %992 = vmatpush1.bf16.msra.mxu0 %v651
    %993 = vmatprep.subr.bf16.mxu0 %v656
    %994 = vmatpush1.bf16.msra.mxu0 %v655
    %995 = vmatprep.subr.bf16.mxu0 %v660
    %996 = vmatpush1.bf16.msra.mxu0 %v659
    %997 = vmatprep.subr.bf16.mxu0 %v664
    %998 = vmatpush1.bf16.msra.mxu0 %v663
    %999 = vmatprep.subr.bf16.mxu0 %v668
    %1000 = vmatpush1.bf16.msra.mxu0 %v667
    %1001 = vmatprep.subr.bf16.mxu0 %v672
    %1002 = vmatpush1.bf16.msra.mxu0 %v671
    %1003 = vmatprep.subr.bf16.mxu0 %v676
    %1004 = vmatpush1.bf16.msra.mxu0 %v675
    %1005 = vmatprep.subr.bf16.mxu0 %v680
    %1006 = vmatpush1.bf16.msra.mxu0 %v679
    %1007 = vmatprep.subr.bf16.mxu0 %v684
    %1008 = vmatpush1.bf16.msra.mxu0 %v683
    %1009 = vmatprep.subr.bf16.mxu0 %v688
    %1010 = vmatpush1.bf16.msra.mxu0 %v687
    %1011 = vmatprep.subr.bf16.mxu0 %v692
    %1012 = vmatpush1.bf16.msra.mxu0 %v691
    %1013 = vmatprep.subr.bf16.mxu0 %v696
    %1014 = vmatpush1.bf16.msra.mxu0 %v695
    %1015 = vmatprep.subr.bf16.mxu0 %v700
    %1016 = vmatpush1.bf16.msra.mxu0 %v699
    %1017 = vmatprep.subr.bf16.mxu0 %v704
    %1018 = vmatpush1.bf16.msra.mxu0 %v703
    %1019 = vmatprep.subr.bf16.mxu0 %v708
    %1020 = vmatpush1.bf16.msra.mxu0 %v707
    %1021 = vmatprep.subr.bf16.mxu0 %v712
    %1022 = vmatpush1.bf16.msra.mxu0 %v711
    %1023 = vmatprep.mubr.bf16.mxu0 %v258
    %1024 = vmatmul.mubr.bf16.gmra.mrb[0].mxu0 %v257
    %v1025 = vpop.f32.mrb[0].mxu0
    %v1026 = vadd.f32 %v236, %v1025
    %v1027 = vpop.f32.mrb[0].mxu0
    %v1028 = vadd.f32 %v240, %v1027
    %v1029 = vpop.f32.mrb[0].mxu0
    %v1030 = vadd.f32 %v236, %v1029
    %v1031 = vpop.f32.mrb[0].mxu0
    %v1032 = vadd.f32 %v240, %v1031
    %1033 = vdwg.mxu0
    %1034 = vmatprep.subr.bf16.mxu0 %v716
    %1035 = vmatpush1.bf16.msra.mxu0 %v715
    %1036 = vmatprep.subr.bf16.mxu0 %v720
    %1037 = vmatpush1.bf16.msra.mxu0 %v719
    %1038 = vmatprep.subr.bf16.mxu0 %v724
    %1039 = vmatpush1.bf16.msra.mxu0 %v723
    %1040 = vmatprep.subr.bf16.mxu0 %v728
    %1041 = vmatpush1.bf16.msra.mxu0 %v727
    %1042 = vmatprep.subr.bf16.mxu0 %v732
    %1043 = vmatpush1.bf16.msra.mxu0 %v731
    %1044 = vmatprep.subr.bf16.mxu0 %v736
    %1045 = vmatpush1.bf16.msra.mxu0 %v735
    %1046 = vmatprep.subr.bf16.mxu0 %v740
    %1047 = vmatpush1.bf16.msra.mxu0 %v739
    %1048 = vmatprep.subr.bf16.mxu0 %v744
    %1049 = vmatpush1.bf16.msra.mxu0 %v743
    %1050 = vmatprep.subr.bf16.mxu0 %v748
    %1051 = vmatpush1.bf16.msra.mxu0 %v747
    %1052 = vmatprep.subr.bf16.mxu0 %v752
    %1053 = vmatpush1.bf16.msra.mxu0 %v751
    %1054 = vmatprep.subr.bf16.mxu0 %v756
    %1055 = vmatpush1.bf16.msra.mxu0 %v755
    %1056 = vmatprep.subr.bf16.mxu0 %v760
    %1057 = vmatpush1.bf16.msra.mxu0 %v759
    %1058 = vmatprep.subr.bf16.mxu0 %v764
    %1059 = vmatpush1.bf16.msra.mxu0 %v763
    %1060 = vmatprep.subr.bf16.mxu0 %v768
    %1061 = vmatpush1.bf16.msra.mxu0 %v767
    %1062 = vmatprep.subr.bf16.mxu0 %v772
    %1063 = vmatpush1.bf16.msra.mxu0 %v771
    %1064 = vmatprep.subr.bf16.mxu0 %v776
    %1065 = vmatpush1.bf16.msra.mxu0 %v775
    %1066 = vmatprep.mubr.bf16.mxu0 %v260
    %1067 = vmatmul.mubr.bf16.gmra.mrb[0].mxu0 %v259
    %v1068 = vpop.f32.mrb[0].mxu0
    %v1069 = vadd.f32 %v1026, %v1068
    %v1070 = vpop.f32.mrb[0].mxu0
    %v1071 = vadd.f32 %v1028, %v1070
    %v1072 = vpop.f32.mrb[0].mxu0
    %v1073 = vadd.f32 %v1030, %v1072
    %v1074 = vpop.f32.mrb[0].mxu0
    %v1075 = vadd.f32 %v1032, %v1074
    %1076 = vdwg.mxu0
    %vm1077 = vcmp.gt.f32.partialorder %v983, 0.0
    %vm1078 = vcmp.gt.f32.partialorder %v985, 0.0
    %vm1079 = vcmp.gt.f32.partialorder %v1069, 0.0
    %vm1080 = vcmp.gt.f32.partialorder %v1071, 0.0
    %vm1081 = vcmp.gt.f32.partialorder %v987, 0.0
    %vm1082 = vcmp.gt.f32.partialorder %v989, 0.0
    %vm1083 = vcmp.gt.f32.partialorder %v1073, 0.0
    %vm1084 = vcmp.gt.f32.partialorder %v1075, 0.0
    %v1085 = vmul.f32 %v983, 0.2
    %v1086 = vmul.f32 %v985, 0.2
    %v1087 = vmul.f32 %v1069, 0.2
    %v1088 = vmul.f32 %v1071, 0.2
    %v1089 = vmul.f32 %v987, 0.2
    %v1090 = vmul.f32 %v989, 0.2
    %v1091 = vmul.f32 %v1073, 0.2
    %v1092 = vmul.f32 %v1075, 0.2
    %v1093 = vsel %vm1077, %v983, %v1085
    %v1094 = vsel %vm1078, %v985, %v1086
    %v1095 = vsel %vm1079, %v1069, %v1087
    %v1096 = vsel %vm1080, %v1071, %v1088
    %v1097 = vsel %vm1081, %v987, %v1089
    %v1098 = vsel %vm1082, %v989, %v1090
    %v1099 = vsel %vm1083, %v1073, %v1091
    %v1100 = vsel %vm1084, %v1075, %v1092
    %v1101 = vpack.c.bf16 %v1097, %v1093
    %v1102 = vpack.c.bf16 %v1098, %v1094
    %v1103 = vpack.c.bf16 %v1099, %v1095
    %v1104 = vpack.c.bf16 %v1100, %v1096
    %v1105 = vld [vmem:[#allocation5] sm:$0xff]
    %v1106 = vld [vmem:[#allocation5 + $0x8] sm:$0xff]
    %v1107 = vld [vmem:[#allocation5 + $0x10] sm:$0xff]
    %v1108 = vld [vmem:[#allocation5 + $0x18] sm:$0xff]
    %v1109 = vld [vmem:[#allocation5 + $0x20] sm:$0xff]
    %v1110 = vld [vmem:[#allocation5 + $0x28] sm:$0xff]
    %v1111 = vld [vmem:[#allocation5 + $0x30] sm:$0xff]
    %v1112 = vld [vmem:[#allocation5 + $0x38] sm:$0xff]
    %v1113 = vld [vmem:[#allocation5 + $0x40] sm:$0xff]
    %v1114 = vld [vmem:[#allocation5 + $0x48] sm:$0xff]
    %v1115 = vld [vmem:[#allocation5 + $0x50] sm:$0xff]
    %v1116 = vld [vmem:[#allocation5 + $0x58] sm:$0xff]
    %v1117 = vld [vmem:[#allocation5 + $0x60] sm:$0xff]
    %v1118 = vld [vmem:[#allocation5 + $0x68] sm:$0xff]
    %v1119 = vld [vmem:[#allocation5 + $0x70] sm:$0xff]
    %v1120 = vld [vmem:[#allocation5 + $0x78] sm:$0xff]
    %v1121 = vld [vmem:[#allocation5 + $0x80] sm:$0xff]
    %v1122 = vld [vmem:[#allocation5 + $0x88] sm:$0xff]
    %v1123 = vld [vmem:[#allocation5 + $0x90] sm:$0xff]
    %v1124 = vld [vmem:[#allocation5 + $0x98] sm:$0xff]
    %v1125 = vld [vmem:[#allocation5 + $0xa0] sm:$0xff]
    %v1126 = vld [vmem:[#allocation5 + $0xa8] sm:$0xff]
    %v1127 = vld [vmem:[#allocation5 + $0xb0] sm:$0xff]
    %v1128 = vld [vmem:[#allocation5 + $0xb8] sm:$0xff]
    %v1129 = vld [vmem:[#allocation5 + $0xc0] sm:$0xff]
    %v1130 = vld [vmem:[#allocation5 + $0xc8] sm:$0xff]
    %v1131 = vld [vmem:[#allocation5 + $0xd0] sm:$0xff]
    %v1132 = vld [vmem:[#allocation5 + $0xd8] sm:$0xff]
    %v1133 = vld [vmem:[#allocation5 + $0xe0] sm:$0xff]
    %v1134 = vld [vmem:[#allocation5 + $0xe8] sm:$0xff]
    %v1135 = vld [vmem:[#allocation5 + $0xf0] sm:$0xff]
    %v1136 = vld [vmem:[#allocation5 + $0xf8] sm:$0xff]
    %v1137 = vld [vmem:[#allocation5 + $0x100] sm:$0xff]
    %v1138 = vld [vmem:[#allocation5 + $0x108] sm:$0xff]
    %v1139 = vld [vmem:[#allocation5 + $0x110] sm:$0xff]
    %v1140 = vld [vmem:[#allocation5 + $0x118] sm:$0xff]
    %v1141 = vld [vmem:[#allocation5 + $0x120] sm:$0xff]
    %v1142 = vld [vmem:[#allocation5 + $0x128] sm:$0xff]
    %v1143 = vld [vmem:[#allocation5 + $0x130] sm:$0xff]
    %v1144 = vld [vmem:[#allocation5 + $0x138] sm:$0xff]
    %v1145 = vld [vmem:[#allocation5 + $0x140] sm:$0xff]
    %v1146 = vld [vmem:[#allocation5 + $0x148] sm:$0xff]
    %v1147 = vld [vmem:[#allocation5 + $0x150] sm:$0xff]
    %v1148 = vld [vmem:[#allocation5 + $0x158] sm:$0xff]
    %v1149 = vld [vmem:[#allocation5 + $0x160] sm:$0xff]
    %v1150 = vld [vmem:[#allocation5 + $0x168] sm:$0xff]
    %v1151 = vld [vmem:[#allocation5 + $0x170] sm:$0xff]
    %v1152 = vld [vmem:[#allocation5 + $0x178] sm:$0xff]
    %v1153 = vld [vmem:[#allocation5 + $0x180] sm:$0xff]
    %v1154 = vld [vmem:[#allocation5 + $0x188] sm:$0xff]
    %v1155 = vld [vmem:[#allocation5 + $0x190] sm:$0xff]
    %v1156 = vld [vmem:[#allocation5 + $0x198] sm:$0xff]
    %v1157 = vld [vmem:[#allocation5 + $0x1a0] sm:$0xff]
    %v1158 = vld [vmem:[#allocation5 + $0x1a8] sm:$0xff]
    %v1159 = vld [vmem:[#allocation5 + $0x1b0] sm:$0xff]
    %v1160 = vld [vmem:[#allocation5 + $0x1b8] sm:$0xff]
    %v1161 = vld [vmem:[#allocation5 + $0x1c0] sm:$0xff]
    %v1162 = vld [vmem:[#allocation5 + $0x1c8] sm:$0xff]
    %v1163 = vld [vmem:[#allocation5 + $0x1d0] sm:$0xff]
    %v1164 = vld [vmem:[#allocation5 + $0x1d8] sm:$0xff]
    %v1165 = vld [vmem:[#allocation5 + $0x1e0] sm:$0xff]
    %v1166 = vld [vmem:[#allocation5 + $0x1e8] sm:$0xff]
    %v1167 = vld [vmem:[#allocation5 + $0x1f0] sm:$0xff]
    %v1168 = vld [vmem:[#allocation5 + $0x1f8] sm:$0xff]
    %v1169 = vld [vmem:[#allocation5 + $0x200] sm:$0xff]
    %v1170 = vld [vmem:[#allocation5 + $0x208] sm:$0xff]
    %v1171 = vld [vmem:[#allocation5 + $0x210] sm:$0xff]
    %v1172 = vld [vmem:[#allocation5 + $0x218] sm:$0xff]
    %v1173 = vld [vmem:[#allocation5 + $0x220] sm:$0xff]
    %v1174 = vld [vmem:[#allocation5 + $0x228] sm:$0xff]
    %v1175 = vld [vmem:[#allocation5 + $0x230] sm:$0xff]
    %v1176 = vld [vmem:[#allocation5 + $0x238] sm:$0xff]
    %v1177 = vld [vmem:[#allocation5 + $0x240] sm:$0xff]
    %v1178 = vld [vmem:[#allocation5 + $0x248] sm:$0xff]
    %v1179 = vld [vmem:[#allocation5 + $0x250] sm:$0xff]
    %v1180 = vld [vmem:[#allocation5 + $0x258] sm:$0xff]
    %v1181 = vld [vmem:[#allocation5 + $0x260] sm:$0xff]
    %v1182 = vld [vmem:[#allocation5 + $0x268] sm:$0xff]
    %v1183 = vld [vmem:[#allocation5 + $0x270] sm:$0xff]
    %v1184 = vld [vmem:[#allocation5 + $0x278] sm:$0xff]
    %v1185 = vld [vmem:[#allocation5 + $0x280] sm:$0xff]
    %v1186 = vld [vmem:[#allocation5 + $0x288] sm:$0xff]
    %v1187 = vld [vmem:[#allocation5 + $0x290] sm:$0xff]
    %v1188 = vld [vmem:[#allocation5 + $0x298] sm:$0xff]
    %v1189 = vld [vmem:[#allocation5 + $0x2a0] sm:$0xff]
    %v1190 = vld [vmem:[#allocation5 + $0x2a8] sm:$0xff]
    %v1191 = vld [vmem:[#allocation5 + $0x2b0] sm:$0xff]
    %v1192 = vld [vmem:[#allocation5 + $0x2b8] sm:$0xff]
    %v1193 = vld [vmem:[#allocation5 + $0x2c0] sm:$0xff]
    %v1194 = vld [vmem:[#allocation5 + $0x2c8] sm:$0xff]
    %v1195 = vld [vmem:[#allocation5 + $0x2d0] sm:$0xff]
    %v1196 = vld [vmem:[#allocation5 + $0x2d8] sm:$0xff]
    %v1197 = vld [vmem:[#allocation5 + $0x2e0] sm:$0xff]
    %v1198 = vld [vmem:[#allocation5 + $0x2e8] sm:$0xff]
    %v1199 = vld [vmem:[#allocation5 + $0x2f0] sm:$0xff]
    %v1200 = vld [vmem:[#allocation5 + $0x2f8] sm:$0xff]
    %v1201 = vld [vmem:[#allocation5 + $0x300] sm:$0xff]
    %v1202 = vld [vmem:[#allocation5 + $0x308] sm:$0xff]
    %v1203 = vld [vmem:[#allocation5 + $0x310] sm:$0xff]
    %v1204 = vld [vmem:[#allocation5 + $0x318] sm:$0xff]
    %v1205 = vld [vmem:[#allocation5 + $0x320] sm:$0xff]
    %v1206 = vld [vmem:[#allocation5 + $0x328] sm:$0xff]
    %v1207 = vld [vmem:[#allocation5 + $0x330] sm:$0xff]
    %v1208 = vld [vmem:[#allocation5 + $0x338] sm:$0xff]
    %v1209 = vld [vmem:[#allocation5 + $0x340] sm:$0xff]
    %v1210 = vld [vmem:[#allocation5 + $0x348] sm:$0xff]
    %v1211 = vld [vmem:[#allocation5 + $0x350] sm:$0xff]
    %v1212 = vld [vmem:[#allocation5 + $0x358] sm:$0xff]
    %v1213 = vld [vmem:[#allocation5 + $0x360] sm:$0xff]
    %v1214 = vld [vmem:[#allocation5 + $0x368] sm:$0xff]
    %v1215 = vld [vmem:[#allocation5 + $0x370] sm:$0xff]
    %v1216 = vld [vmem:[#allocation5 + $0x378] sm:$0xff]
    %v1217 = vld [vmem:[#allocation5 + $0x380] sm:$0xff]
    %v1218 = vld [vmem:[#allocation5 + $0x388] sm:$0xff]
    %v1219 = vld [vmem:[#allocation5 + $0x390] sm:$0xff]
    %v1220 = vld [vmem:[#allocation5 + $0x398] sm:$0xff]
    %v1221 = vld [vmem:[#allocation5 + $0x3a0] sm:$0xff]
    %v1222 = vld [vmem:[#allocation5 + $0x3a8] sm:$0xff]
    %v1223 = vld [vmem:[#allocation5 + $0x3b0] sm:$0xff]
    %v1224 = vld [vmem:[#allocation5 + $0x3b8] sm:$0xff]
    %v1225 = vld [vmem:[#allocation5 + $0x3c0] sm:$0xff]
    %v1226 = vld [vmem:[#allocation5 + $0x3c8] sm:$0xff]
    %v1227 = vld [vmem:[#allocation5 + $0x3d0] sm:$0xff]
    %v1228 = vld [vmem:[#allocation5 + $0x3d8] sm:$0xff]
    %v1229 = vld [vmem:[#allocation5 + $0x3e0] sm:$0xff]
    %v1230 = vld [vmem:[#allocation5 + $0x3e8] sm:$0xff]
    %v1231 = vld [vmem:[#allocation5 + $0x3f0] sm:$0xff]
    %v1232 = vld [vmem:[#allocation5 + $0x3f8] sm:$0xff]
    %v1233 = vld [vmem:[%s4] sm:$0xf]
    %v1235 = vlaneseq
    %v1236 = vshrl.u32 %v1235, 7
    %v1237 = vsub.s32 0, %v1236
    %v1238 = vrot.slane %v1233, %v1237
    %v1239 = vlaneseq
    %v1240 = vshrl.u32 %v1239, 7
    %v1241 = vsub.s32 1, %v1240
    %v1242 = vrot.slane %v1233, %v1241
    %v1243 = vlaneseq
    %v1244 = vshrl.u32 %v1243, 7
    %v1245 = vsub.s32 2, %v1244
    %v1246 = vrot.slane %v1233, %v1245
    %v1247 = vlaneseq
    %v1248 = vshrl.u32 %v1247, 7
    %v1249 = vsub.s32 3, %v1248
    %v1250 = vrot.slane %v1233, %v1249
    %v1383 = vunpack.c.l.b16 %v1105
    %v1384 = vunpack.c.h.b16 %v1105
    %v1385 = vunpack.c.l.b16 %v1106
    %v1386 = vunpack.c.h.b16 %v1106
    %v1387 = vunpack.c.l.b16 %v1107
    %v1388 = vunpack.c.h.b16 %v1107
    %v1389 = vunpack.c.l.b16 %v1108
    %v1390 = vunpack.c.h.b16 %v1108
    %v1391 = vunpack.c.l.b16 %v1109
    %v1392 = vunpack.c.h.b16 %v1109
    %v1393 = vunpack.c.l.b16 %v1110
    %v1394 = vunpack.c.h.b16 %v1110
    %v1395 = vunpack.c.l.b16 %v1111
    %v1396 = vunpack.c.h.b16 %v1111
    %v1397 = vunpack.c.l.b16 %v1112
    %v1398 = vunpack.c.h.b16 %v1112
    %v1399 = vunpack.c.l.b16 %v1113
    %v1400 = vunpack.c.h.b16 %v1113
    %v1401 = vunpack.c.l.b16 %v1114
    %v1402 = vunpack.c.h.b16 %v1114
    %v1403 = vunpack.c.l.b16 %v1115
    %v1404 = vunpack.c.h.b16 %v1115
    %v1405 = vunpack.c.l.b16 %v1116
    %v1406 = vunpack.c.h.b16 %v1116
    %v1407 = vunpack.c.l.b16 %v1117
    %v1408 = vunpack.c.h.b16 %v1117
    %v1409 = vunpack.c.l.b16 %v1118
    %v1410 = vunpack.c.h.b16 %v1118
    %v1411 = vunpack.c.l.b16 %v1119
    %v1412 = vunpack.c.h.b16 %v1119
    %v1413 = vunpack.c.l.b16 %v1120
    %v1414 = vunpack.c.h.b16 %v1120
    %v1415 = vunpack.c.l.b16 %v1121
    %v1416 = vunpack.c.h.b16 %v1121
    %v1417 = vunpack.c.l.b16 %v1122
    %v1418 = vunpack.c.h.b16 %v1122
    %v1419 = vunpack.c.l.b16 %v1123
    %v1420 = vunpack.c.h.b16 %v1123
    %v1421 = vunpack.c.l.b16 %v1124
    %v1422 = vunpack.c.h.b16 %v1124
    %v1423 = vunpack.c.l.b16 %v1125
    %v1424 = vunpack.c.h.b16 %v1125
    %v1425 = vunpack.c.l.b16 %v1126
    %v1426 = vunpack.c.h.b16 %v1126
    %v1427 = vunpack.c.l.b16 %v1127
    %v1428 = vunpack.c.h.b16 %v1127
    %v1429 = vunpack.c.l.b16 %v1128
    %v1430 = vunpack.c.h.b16 %v1128
    %v1431 = vunpack.c.l.b16 %v1129
    %v1432 = vunpack.c.h.b16 %v1129
    %v1433 = vunpack.c.l.b16 %v1130
    %v1434 = vunpack.c.h.b16 %v1130
    %v1435 = vunpack.c.l.b16 %v1131
    %v1436 = vunpack.c.h.b16 %v1131
    %v1437 = vunpack.c.l.b16 %v1132
    %v1438 = vunpack.c.h.b16 %v1132
    %v1439 = vunpack.c.l.b16 %v1133
    %v1440 = vunpack.c.h.b16 %v1133
    %v1441 = vunpack.c.l.b16 %v1134
    %v1442 = vunpack.c.h.b16 %v1134
    %v1443 = vunpack.c.l.b16 %v1135
    %v1444 = vunpack.c.h.b16 %v1135
    %v1445 = vunpack.c.l.b16 %v1136
    %v1446 = vunpack.c.h.b16 %v1136
    %v1447 = vunpack.c.l.b16 %v1137
    %v1448 = vunpack.c.h.b16 %v1137
    %v1449 = vunpack.c.l.b16 %v1138
    %v1450 = vunpack.c.h.b16 %v1138
    %v1451 = vunpack.c.l.b16 %v1139
    %v1452 = vunpack.c.h.b16 %v1139
    %v1453 = vunpack.c.l.b16 %v1140
    %v1454 = vunpack.c.h.b16 %v1140
    %v1455 = vunpack.c.l.b16 %v1141
    %v1456 = vunpack.c.h.b16 %v1141
    %v1457 = vunpack.c.l.b16 %v1142
    %v1458 = vunpack.c.h.b16 %v1142
    %v1459 = vunpack.c.l.b16 %v1143
    %v1460 = vunpack.c.h.b16 %v1143
    %v1461 = vunpack.c.l.b16 %v1144
    %v1462 = vunpack.c.h.b16 %v1144
    %v1463 = vunpack.c.l.b16 %v1145
    %v1464 = vunpack.c.h.b16 %v1145
    %v1465 = vunpack.c.l.b16 %v1146
    %v1466 = vunpack.c.h.b16 %v1146
    %v1467 = vunpack.c.l.b16 %v1147
    %v1468 = vunpack.c.h.b16 %v1147
    %v1469 = vunpack.c.l.b16 %v1148
    %v1470 = vunpack.c.h.b16 %v1148
    %v1471 = vunpack.c.l.b16 %v1149
    %v1472 = vunpack.c.h.b16 %v1149
    %v1473 = vunpack.c.l.b16 %v1150
    %v1474 = vunpack.c.h.b16 %v1150
    %v1475 = vunpack.c.l.b16 %v1151
    %v1476 = vunpack.c.h.b16 %v1151
    %v1477 = vunpack.c.l.b16 %v1152
    %v1478 = vunpack.c.h.b16 %v1152
    %v1479 = vunpack.c.l.b16 %v1153
    %v1480 = vunpack.c.h.b16 %v1153
    %v1481 = vunpack.c.l.b16 %v1154
    %v1482 = vunpack.c.h.b16 %v1154
    %v1483 = vunpack.c.l.b16 %v1155
    %v1484 = vunpack.c.h.b16 %v1155
    %v1485 = vunpack.c.l.b16 %v1156
    %v1486 = vunpack.c.h.b16 %v1156
    %v1487 = vunpack.c.l.b16 %v1157
    %v1488 = vunpack.c.h.b16 %v1157
    %v1489 = vunpack.c.l.b16 %v1158
    %v1490 = vunpack.c.h.b16 %v1158
    %v1491 = vunpack.c.l.b16 %v1159
    %v1492 = vunpack.c.h.b16 %v1159
    %v1493 = vunpack.c.l.b16 %v1160
    %v1494 = vunpack.c.h.b16 %v1160
    %v1495 = vunpack.c.l.b16 %v1161
    %v1496 = vunpack.c.h.b16 %v1161
    %v1497 = vunpack.c.l.b16 %v1162
    %v1498 = vunpack.c.h.b16 %v1162
    %v1499 = vunpack.c.l.b16 %v1163
    %v1500 = vunpack.c.h.b16 %v1163
    %v1501 = vunpack.c.l.b16 %v1164
    %v1502 = vunpack.c.h.b16 %v1164
    %v1503 = vunpack.c.l.b16 %v1165
    %v1504 = vunpack.c.h.b16 %v1165
    %v1505 = vunpack.c.l.b16 %v1166
    %v1506 = vunpack.c.h.b16 %v1166
    %v1507 = vunpack.c.l.b16 %v1167
    %v1508 = vunpack.c.h.b16 %v1167
    %v1509 = vunpack.c.l.b16 %v1168
    %v1510 = vunpack.c.h.b16 %v1168
    %v1511 = vunpack.c.l.b16 %v1169
    %v1512 = vunpack.c.h.b16 %v1169
    %v1513 = vunpack.c.l.b16 %v1170
    %v1514 = vunpack.c.h.b16 %v1170
    %v1515 = vunpack.c.l.b16 %v1171
    %v1516 = vunpack.c.h.b16 %v1171
    %v1517 = vunpack.c.l.b16 %v1172
    %v1518 = vunpack.c.h.b16 %v1172
    %v1519 = vunpack.c.l.b16 %v1173
    %v1520 = vunpack.c.h.b16 %v1173
    %v1521 = vunpack.c.l.b16 %v1174
    %v1522 = vunpack.c.h.b16 %v1174
    %v1523 = vunpack.c.l.b16 %v1175
    %v1524 = vunpack.c.h.b16 %v1175
    %v1525 = vunpack.c.l.b16 %v1176
    %v1526 = vunpack.c.h.b16 %v1176
    %v1527 = vunpack.c.l.b16 %v1177
    %v1528 = vunpack.c.h.b16 %v1177
    %v1529 = vunpack.c.l.b16 %v1178
    %v1530 = vunpack.c.h.b16 %v1178
    %v1531 = vunpack.c.l.b16 %v1179
    %v1532 = vunpack.c.h.b16 %v1179
    %v1533 = vunpack.c.l.b16 %v1180
    %v1534 = vunpack.c.h.b16 %v1180
    %v1535 = vunpack.c.l.b16 %v1181
    %v1536 = vunpack.c.h.b16 %v1181
    %v1537 = vunpack.c.l.b16 %v1182
    %v1538 = vunpack.c.h.b16 %v1182
    %v1539 = vunpack.c.l.b16 %v1183
    %v1540 = vunpack.c.h.b16 %v1183
    %v1541 = vunpack.c.l.b16 %v1184
    %v1542 = vunpack.c.h.b16 %v1184
    %v1543 = vunpack.c.l.b16 %v1185
    %v1544 = vunpack.c.h.b16 %v1185
    %v1545 = vunpack.c.l.b16 %v1186
    %v1546 = vunpack.c.h.b16 %v1186
    %v1547 = vunpack.c.l.b16 %v1187
    %v1548 = vunpack.c.h.b16 %v1187
    %v1549 = vunpack.c.l.b16 %v1188
    %v1550 = vunpack.c.h.b16 %v1188
    %v1551 = vunpack.c.l.b16 %v1189
    %v1552 = vunpack.c.h.b16 %v1189
    %v1553 = vunpack.c.l.b16 %v1190
    %v1554 = vunpack.c.h.b16 %v1190
    %v1555 = vunpack.c.l.b16 %v1191
    %v1556 = vunpack.c.h.b16 %v1191
    %v1557 = vunpack.c.l.b16 %v1192
    %v1558 = vunpack.c.h.b16 %v1192
    %v1559 = vunpack.c.l.b16 %v1193
    %v1560 = vunpack.c.h.b16 %v1193
    %v1561 = vunpack.c.l.b16 %v1194
    %v1562 = vunpack.c.h.b16 %v1194
    %v1563 = vunpack.c.l.b16 %v1195
    %v1564 = vunpack.c.h.b16 %v1195
    %v1565 = vunpack.c.l.b16 %v1196
    %v1566 = vunpack.c.h.b16 %v1196
    %v1567 = vunpack.c.l.b16 %v1197
    %v1568 = vunpack.c.h.b16 %v1197
    %v1569 = vunpack.c.l.b16 %v1198
    %v1570 = vunpack.c.h.b16 %v1198
    %v1571 = vunpack.c.l.b16 %v1199
    %v1572 = vunpack.c.h.b16 %v1199
    %v1573 = vunpack.c.l.b16 %v1200
    %v1574 = vunpack.c.h.b16 %v1200
    %v1575 = vunpack.c.l.b16 %v1201
    %v1576 = vunpack.c.h.b16 %v1201
    %v1577 = vunpack.c.l.b16 %v1202
    %v1578 = vunpack.c.h.b16 %v1202
    %v1579 = vunpack.c.l.b16 %v1203
    %v1580 = vunpack.c.h.b16 %v1203
    %v1581 = vunpack.c.l.b16 %v1204
    %v1582 = vunpack.c.h.b16 %v1204
    %v1583 = vunpack.c.l.b16 %v1205
    %v1584 = vunpack.c.h.b16 %v1205
    %v1585 = vunpack.c.l.b16 %v1206
    %v1586 = vunpack.c.h.b16 %v1206
    %v1587 = vunpack.c.l.b16 %v1207
    %v1588 = vunpack.c.h.b16 %v1207
    %v1589 = vunpack.c.l.b16 %v1208
    %v1590 = vunpack.c.h.b16 %v1208
    %v1591 = vunpack.c.l.b16 %v1209
    %v1592 = vunpack.c.h.b16 %v1209
    %v1593 = vunpack.c.l.b16 %v1210
    %v1594 = vunpack.c.h.b16 %v1210
    %v1595 = vunpack.c.l.b16 %v1211
    %v1596 = vunpack.c.h.b16 %v1211
    %v1597 = vunpack.c.l.b16 %v1212
    %v1598 = vunpack.c.h.b16 %v1212
    %v1599 = vunpack.c.l.b16 %v1213
    %v1600 = vunpack.c.h.b16 %v1213
    %v1601 = vunpack.c.l.b16 %v1214
    %v1602 = vunpack.c.h.b16 %v1214
    %v1603 = vunpack.c.l.b16 %v1215
    %v1604 = vunpack.c.h.b16 %v1215
    %v1605 = vunpack.c.l.b16 %v1216
    %v1606 = vunpack.c.h.b16 %v1216
    %v1607 = vunpack.c.l.b16 %v1217
    %v1608 = vunpack.c.h.b16 %v1217
    %v1609 = vunpack.c.l.b16 %v1218
    %v1610 = vunpack.c.h.b16 %v1218
    %v1611 = vunpack.c.l.b16 %v1219
    %v1612 = vunpack.c.h.b16 %v1219
    %v1613 = vunpack.c.l.b16 %v1220
    %v1614 = vunpack.c.h.b16 %v1220
    %v1615 = vunpack.c.l.b16 %v1221
    %v1616 = vunpack.c.h.b16 %v1221
    %v1617 = vunpack.c.l.b16 %v1222
    %v1618 = vunpack.c.h.b16 %v1222
    %v1619 = vunpack.c.l.b16 %v1223
    %v1620 = vunpack.c.h.b16 %v1223
    %v1621 = vunpack.c.l.b16 %v1224
    %v1622 = vunpack.c.h.b16 %v1224
    %v1623 = vunpack.c.l.b16 %v1225
    %v1624 = vunpack.c.h.b16 %v1225
    %v1625 = vunpack.c.l.b16 %v1226
    %v1626 = vunpack.c.h.b16 %v1226
    %v1627 = vunpack.c.l.b16 %v1227
    %v1628 = vunpack.c.h.b16 %v1227
    %v1629 = vunpack.c.l.b16 %v1228
    %v1630 = vunpack.c.h.b16 %v1228
    %v1631 = vunpack.c.l.b16 %v1229
    %v1632 = vunpack.c.h.b16 %v1229
    %v1633 = vunpack.c.l.b16 %v1230
    %v1634 = vunpack.c.h.b16 %v1230
    %v1635 = vunpack.c.l.b16 %v1231
    %v1636 = vunpack.c.h.b16 %v1231
    %v1637 = vunpack.c.l.b16 %v1232
    %v1638 = vunpack.c.h.b16 %v1232
    %v1639 = vpack.c.b16 %v1387, %v1383
    %v1640 = vpack.c.b16 %v1388, %v1384
    %v1641 = vpack.c.b16 %v1389, %v1385
    %v1642 = vpack.c.b16 %v1390, %v1386
    %v1643 = vpack.c.b16 %v1395, %v1391
    %v1644 = vpack.c.b16 %v1396, %v1392
    %v1645 = vpack.c.b16 %v1397, %v1393
    %v1646 = vpack.c.b16 %v1398, %v1394
    %v1647 = vpack.c.b16 %v1403, %v1399
    %v1648 = vpack.c.b16 %v1404, %v1400
    %v1649 = vpack.c.b16 %v1405, %v1401
    %v1650 = vpack.c.b16 %v1406, %v1402
    %v1651 = vpack.c.b16 %v1411, %v1407
    %v1652 = vpack.c.b16 %v1412, %v1408
    %v1653 = vpack.c.b16 %v1413, %v1409
    %v1654 = vpack.c.b16 %v1414, %v1410
    %v1655 = vpack.c.b16 %v1419, %v1415
    %v1656 = vpack.c.b16 %v1420, %v1416
    %v1657 = vpack.c.b16 %v1421, %v1417
    %v1658 = vpack.c.b16 %v1422, %v1418
    %v1659 = vpack.c.b16 %v1427, %v1423
    %v1660 = vpack.c.b16 %v1428, %v1424
    %v1661 = vpack.c.b16 %v1429, %v1425
    %v1662 = vpack.c.b16 %v1430, %v1426
    %v1663 = vpack.c.b16 %v1435, %v1431
    %v1664 = vpack.c.b16 %v1436, %v1432
    %v1665 = vpack.c.b16 %v1437, %v1433
    %v1666 = vpack.c.b16 %v1438, %v1434
    %v1667 = vpack.c.b16 %v1443, %v1439
    %v1668 = vpack.c.b16 %v1444, %v1440
    %v1669 = vpack.c.b16 %v1445, %v1441
    %v1670 = vpack.c.b16 %v1446, %v1442
    %v1671 = vpack.c.b16 %v1451, %v1447
    %v1672 = vpack.c.b16 %v1452, %v1448
    %v1673 = vpack.c.b16 %v1453, %v1449
    %v1674 = vpack.c.b16 %v1454, %v1450
    %v1675 = vpack.c.b16 %v1459, %v1455
    %v1676 = vpack.c.b16 %v1460, %v1456
    %v1677 = vpack.c.b16 %v1461, %v1457
    %v1678 = vpack.c.b16 %v1462, %v1458
    %v1679 = vpack.c.b16 %v1467, %v1463
    %v1680 = vpack.c.b16 %v1468, %v1464
    %v1681 = vpack.c.b16 %v1469, %v1465
    %v1682 = vpack.c.b16 %v1470, %v1466
    %v1683 = vpack.c.b16 %v1475, %v1471
    %v1684 = vpack.c.b16 %v1476, %v1472
    %v1685 = vpack.c.b16 %v1477, %v1473
    %v1686 = vpack.c.b16 %v1478, %v1474
    %v1687 = vpack.c.b16 %v1483, %v1479
    %v1688 = vpack.c.b16 %v1484, %v1480
    %v1689 = vpack.c.b16 %v1485, %v1481
    %v1690 = vpack.c.b16 %v1486, %v1482
    %v1691 = vpack.c.b16 %v1491, %v1487
    %v1692 = vpack.c.b16 %v1492, %v1488
    %v1693 = vpack.c.b16 %v1493, %v1489
    %v1694 = vpack.c.b16 %v1494, %v1490
    %v1695 = vpack.c.b16 %v1499, %v1495
    %v1696 = vpack.c.b16 %v1500, %v1496
    %v1697 = vpack.c.b16 %v1501, %v1497
    %v1698 = vpack.c.b16 %v1502, %v1498
    %v1699 = vpack.c.b16 %v1507, %v1503
    %v1700 = vpack.c.b16 %v1508, %v1504
    %v1701 = vpack.c.b16 %v1509, %v1505
    %v1702 = vpack.c.b16 %v1510, %v1506
    %v1703 = vpack.c.b16 %v1515, %v1511
    %v1704 = vpack.c.b16 %v1516, %v1512
    %v1705 = vpack.c.b16 %v1517, %v1513
    %v1706 = vpack.c.b16 %v1518, %v1514
    %v1707 = vpack.c.b16 %v1523, %v1519
    %v1708 = vpack.c.b16 %v1524, %v1520
    %v1709 = vpack.c.b16 %v1525, %v1521
    %v1710 = vpack.c.b16 %v1526, %v1522
    %v1711 = vpack.c.b16 %v1531, %v1527
    %v1712 = vpack.c.b16 %v1532, %v1528
    %v1713 = vpack.c.b16 %v1533, %v1529
    %v1714 = vpack.c.b16 %v1534, %v1530
    %v1715 = vpack.c.b16 %v1539, %v1535
    %v1716 = vpack.c.b16 %v1540, %v1536
    %v1717 = vpack.c.b16 %v1541, %v1537
    %v1718 = vpack.c.b16 %v1542, %v1538
    %v1719 = vpack.c.b16 %v1547, %v1543
    %v1720 = vpack.c.b16 %v1548, %v1544
    %v1721 = vpack.c.b16 %v1549, %v1545
    %v1722 = vpack.c.b16 %v1550, %v1546
    %v1723 = vpack.c.b16 %v1555, %v1551
    %v1724 = vpack.c.b16 %v1556, %v1552
    %v1725 = vpack.c.b16 %v1557, %v1553
    %v1726 = vpack.c.b16 %v1558, %v1554
    %v1727 = vpack.c.b16 %v1563, %v1559
    %v1728 = vpack.c.b16 %v1564, %v1560
    %v1729 = vpack.c.b16 %v1565, %v1561
    %v1730 = vpack.c.b16 %v1566, %v1562
    %v1731 = vpack.c.b16 %v1571, %v1567
    %v1732 = vpack.c.b16 %v1572, %v1568
    %v1733 = vpack.c.b16 %v1573, %v1569
    %v1734 = vpack.c.b16 %v1574, %v1570
    %v1735 = vpack.c.b16 %v1579, %v1575
    %v1736 = vpack.c.b16 %v1580, %v1576
    %v1737 = vpack.c.b16 %v1581, %v1577
    %v1738 = vpack.c.b16 %v1582, %v1578
    %v1739 = vpack.c.b16 %v1587, %v1583
    %v1740 = vpack.c.b16 %v1588, %v1584
    %v1741 = vpack.c.b16 %v1589, %v1585
    %v1742 = vpack.c.b16 %v1590, %v1586
    %v1743 = vpack.c.b16 %v1595, %v1591
    %v1744 = vpack.c.b16 %v1596, %v1592
    %v1745 = vpack.c.b16 %v1597, %v1593
    %v1746 = vpack.c.b16 %v1598, %v1594
    %v1747 = vpack.c.b16 %v1603, %v1599
    %v1748 = vpack.c.b16 %v1604, %v1600
    %v1749 = vpack.c.b16 %v1605, %v1601
    %v1750 = vpack.c.b16 %v1606, %v1602
    %v1751 = vpack.c.b16 %v1611, %v1607
    %v1752 = vpack.c.b16 %v1612, %v1608
    %v1753 = vpack.c.b16 %v1613, %v1609
    %v1754 = vpack.c.b16 %v1614, %v1610
    %v1755 = vpack.c.b16 %v1619, %v1615
    %v1756 = vpack.c.b16 %v1620, %v1616
    %v1757 = vpack.c.b16 %v1621, %v1617
    %v1758 = vpack.c.b16 %v1622, %v1618
    %v1759 = vpack.c.b16 %v1627, %v1623
    %v1760 = vpack.c.b16 %v1628, %v1624
    %v1761 = vpack.c.b16 %v1629, %v1625
    %v1762 = vpack.c.b16 %v1630, %v1626
    %v1763 = vpack.c.b16 %v1635, %v1631
    %v1764 = vpack.c.b16 %v1636, %v1632
    %v1765 = vpack.c.b16 %v1637, %v1633
    %v1766 = vpack.c.b16 %v1638, %v1634
    %1895 = vmatprep.subr.bf16.mxu0 %v1640
    %1896 = vmatpush1.bf16.msra.mxu0 %v1639
    %1897 = vmatprep.subr.bf16.mxu0 %v1644
    %1898 = vmatpush1.bf16.msra.mxu0 %v1643
    %1899 = vmatprep.subr.bf16.mxu0 %v1648
    %1900 = vmatpush1.bf16.msra.mxu0 %v1647
    %1901 = vmatprep.subr.bf16.mxu0 %v1652
    %1902 = vmatpush1.bf16.msra.mxu0 %v1651
    %1903 = vmatprep.subr.bf16.mxu0 %v1656
    %1904 = vmatpush1.bf16.msra.mxu0 %v1655
    %1905 = vmatprep.subr.bf16.mxu0 %v1660
    %1906 = vmatpush1.bf16.msra.mxu0 %v1659
    %1907 = vmatprep.subr.bf16.mxu0 %v1664
    %1908 = vmatpush1.bf16.msra.mxu0 %v1663
    %1909 = vmatprep.subr.bf16.mxu0 %v1668
    %1910 = vmatpush1.bf16.msra.mxu0 %v1667
    %1911 = vmatprep.subr.bf16.mxu0 %v1672
    %1912 = vmatpush1.bf16.msra.mxu0 %v1671
    %1913 = vmatprep.subr.bf16.mxu0 %v1676
    %1914 = vmatpush1.bf16.msra.mxu0 %v1675
    %1915 = vmatprep.subr.bf16.mxu0 %v1680
    %1916 = vmatpush1.bf16.msra.mxu0 %v1679
    %1917 = vmatprep.subr.bf16.mxu0 %v1684
    %1918 = vmatpush1.bf16.msra.mxu0 %v1683
    %1919 = vmatprep.subr.bf16.mxu0 %v1688
    %1920 = vmatpush1.bf16.msra.mxu0 %v1687
    %1921 = vmatprep.subr.bf16.mxu0 %v1692
    %1922 = vmatpush1.bf16.msra.mxu0 %v1691
    %1923 = vmatprep.subr.bf16.mxu0 %v1696
    %1924 = vmatpush1.bf16.msra.mxu0 %v1695
    %1925 = vmatprep.subr.bf16.mxu0 %v1700
    %1926 = vmatpush1.bf16.msra.mxu0 %v1699
    %1927 = vmatprep.mubr.bf16.mxu0 %v1102
    %1928 = vmatmul.mubr.bf16.gmra.mrb[0].mxu0 %v1101
    %v1929 = vpop.f32.mrb[0].mxu0
    %v1930 = vadd.f32 %v1238, %v1929
    %v1931 = vpop.f32.mrb[0].mxu0
    %v1932 = vadd.f32 %v1242, %v1931
    %v1933 = vpop.f32.mrb[0].mxu0
    %v1934 = vadd.f32 %v1238, %v1933
    %v1935 = vpop.f32.mrb[0].mxu0
    %v1936 = vadd.f32 %v1242, %v1935
    %1937 = vdwg.mxu0
    %1938 = vmatprep.subr.bf16.mxu0 %v1704
    %1939 = vmatpush1.bf16.msra.mxu0 %v1703
    %1940 = vmatprep.subr.bf16.mxu0 %v1708
    %1941 = vmatpush1.bf16.msra.mxu0 %v1707
    %1942 = vmatprep.subr.bf16.mxu0 %v1712
    %1943 = vmatpush1.bf16.msra.mxu0 %v1711
    %1944 = vmatprep.subr.bf16.mxu0 %v1716
    %1945 = vmatpush1.bf16.msra.mxu0 %v1715
    %1946 = vmatprep.subr.bf16.mxu0 %v1720
    %1947 = vmatpush1.bf16.msra.mxu0 %v1719
    %1948 = vmatprep.subr.bf16.mxu0 %v1724
    %1949 = vmatpush1.bf16.msra.mxu0 %v1723
    %1950 = vmatprep.subr.bf16.mxu0 %v1728
    %1951 = vmatpush1.bf16.msra.mxu0 %v1727
    %1952 = vmatprep.subr.bf16.mxu0 %v1732
    %1953 = vmatpush1.bf16.msra.mxu0 %v1731
    %1954 = vmatprep.subr.bf16.mxu0 %v1736
    %1955 = vmatpush1.bf16.msra.mxu0 %v1735
    %1956 = vmatprep.subr.bf16.mxu0 %v1740
    %1957 = vmatpush1.bf16.msra.mxu0 %v1739
    %1958 = vmatprep.subr.bf16.mxu0 %v1744
    %1959 = vmatpush1.bf16.msra.mxu0 %v1743
    %1960 = vmatprep.subr.bf16.mxu0 %v1748
    %1961 = vmatpush1.bf16.msra.mxu0 %v1747
    %1962 = vmatprep.subr.bf16.mxu0 %v1752
    %1963 = vmatpush1.bf16.msra.mxu0 %v1751
    %1964 = vmatprep.subr.bf16.mxu0 %v1756
    %1965 = vmatpush1.bf16.msra.mxu0 %v1755
    %1966 = vmatprep.subr.bf16.mxu0 %v1760
    %1967 = vmatpush1.bf16.msra.mxu0 %v1759
    %1968 = vmatprep.subr.bf16.mxu0 %v1764
    %1969 = vmatpush1.bf16.msra.mxu0 %v1763
    %1970 = vmatprep.mubr.bf16.mxu0 %v1104
    %1971 = vmatmul.mubr.bf16.gmra.mrb[0].mxu0 %v1103
    %v1972 = vpop.f32.mrb[0].mxu0
    %v1973 = vadd.f32 %v1930, %v1972
    %v1974 = vpop.f32.mrb[0].mxu0
    %v1975 = vadd.f32 %v1932, %v1974
    %v1976 = vpop.f32.mrb[0].mxu0
    %v1977 = vadd.f32 %v1934, %v1976
    %v1978 = vpop.f32.mrb[0].mxu0
    %v1979 = vadd.f32 %v1936, %v1978
    %1980 = vdwg.mxu0
    %1981 = vmatprep.subr.bf16.mxu0 %v1642
    %1982 = vmatpush1.bf16.msra.mxu0 %v1641
    %1983 = vmatprep.subr.bf16.mxu0 %v1646
    %1984 = vmatpush1.bf16.msra.mxu0 %v1645
    %1985 = vmatprep.subr.bf16.mxu0 %v1650
    %1986 = vmatpush1.bf16.msra.mxu0 %v1649
    %1987 = vmatprep.subr.bf16.mxu0 %v1654
    %1988 = vmatpush1.bf16.msra.mxu0 %v1653
    %1989 = vmatprep.subr.bf16.mxu0 %v1658
    %1990 = vmatpush1.bf16.msra.mxu0 %v1657
    %1991 = vmatprep.subr.bf16.mxu0 %v1662
    %1992 = vmatpush1.bf16.msra.mxu0 %v1661
    %1993 = vmatprep.subr.bf16.mxu0 %v1666
    %1994 = vmatpush1.bf16.msra.mxu0 %v1665
    %1995 = vmatprep.subr.bf16.mxu0 %v1670
    %1996 = vmatpush1.bf16.msra.mxu0 %v1669
    %1997 = vmatprep.subr.bf16.mxu0 %v1674
    %1998 = vmatpush1.bf16.msra.mxu0 %v1673
    %1999 = vmatprep.subr.bf16.mxu0 %v1678
    %2000 = vmatpush1.bf16.msra.mxu0 %v1677
    %2001 = vmatprep.subr.bf16.mxu0 %v1682
    %2002 = vmatpush1.bf16.msra.mxu0 %v1681
    %2003 = vmatprep.subr.bf16.mxu0 %v1686
    %2004 = vmatpush1.bf16.msra.mxu0 %v1685
    %2005 = vmatprep.subr.bf16.mxu0 %v1690
    %2006 = vmatpush1.bf16.msra.mxu0 %v1689
    %2007 = vmatprep.subr.bf16.mxu0 %v1694
    %2008 = vmatpush1.bf16.msra.mxu0 %v1693
    %2009 = vmatprep.subr.bf16.mxu0 %v1698
    %2010 = vmatpush1.bf16.msra.mxu0 %v1697
    %2011 = vmatprep.subr.bf16.mxu0 %v1702
    %2012 = vmatpush1.bf16.msra.mxu0 %v1701
    %2013 = vmatprep.mubr.bf16.mxu0 %v1102
    %2014 = vmatmul.mubr.bf16.gmra.mrb[0].mxu0 %v1101
    %v2015 = vpop.f32.mrb[0].mxu0
    %v2016 = vadd.f32 %v1246, %v2015
    %v2017 = vpop.f32.mrb[0].mxu0
    %v2018 = vadd.f32 %v1250, %v2017
    %v2019 = vpop.f32.mrb[0].mxu0
    %v2020 = vadd.f32 %v1246, %v2019
    %v2021 = vpop.f32.mrb[0].mxu0
    %v2022 = vadd.f32 %v1250, %v2021
    %2023 = vdwg.mxu0
    %2024 = vmatprep.subr.bf16.mxu0 %v1706
    %2025 = vmatpush1.bf16.msra.mxu0 %v1705
    %2026 = vmatprep.subr.bf16.mxu0 %v1710
    %2027 = vmatpush1.bf16.msra.mxu0 %v1709
    %2028 = vmatprep.subr.bf16.mxu0 %v1714
    %2029 = vmatpush1.bf16.msra.mxu0 %v1713
    %2030 = vmatprep.subr.bf16.mxu0 %v1718
    %2031 = vmatpush1.bf16.msra.mxu0 %v1717
    %2032 = vmatprep.subr.bf16.mxu0 %v1722
    %2033 = vmatpush1.bf16.msra.mxu0 %v1721
    %2034 = vmatprep.subr.bf16.mxu0 %v1726
    %2035 = vmatpush1.bf16.msra.mxu0 %v1725
    %2036 = vmatprep.subr.bf16.mxu0 %v1730
    %2037 = vmatpush1.bf16.msra.mxu0 %v1729
    %2038 = vmatprep.subr.bf16.mxu0 %v1734
    %2039 = vmatpush1.bf16.msra.mxu0 %v1733
    %2040 = vmatprep.subr.bf16.mxu0 %v1738
    %2041 = vmatpush1.bf16.msra.mxu0 %v1737
    %2042 = vmatprep.subr.bf16.mxu0 %v1742
    %2043 = vmatpush1.bf16.msra.mxu0 %v1741
    %2044 = vmatprep.subr.bf16.mxu0 %v1746
    %2045 = vmatpush1.bf16.msra.mxu0 %v1745
    %2046 = vmatprep.subr.bf16.mxu0 %v1750
    %2047 = vmatpush1.bf16.msra.mxu0 %v1749
    %2048 = vmatprep.subr.bf16.mxu0 %v1754
    %2049 = vmatpush1.bf16.msra.mxu0 %v1753
    %2050 = vmatprep.subr.bf16.mxu0 %v1758
    %2051 = vmatpush1.bf16.msra.mxu0 %v1757
    %2052 = vmatprep.subr.bf16.mxu0 %v1762
    %2053 = vmatpush1.bf16.msra.mxu0 %v1761
    %2054 = vmatprep.subr.bf16.mxu0 %v1766
    %2055 = vmatpush1.bf16.msra.mxu0 %v1765
    %2056 = vmatprep.mubr.bf16.mxu0 %v1104
    %2057 = vmatmul.mubr.bf16.gmra.mrb[0].mxu0 %v1103
    %v2058 = vpop.f32.mrb[0].mxu0
    %v2059 = vadd.f32 %v2016, %v2058
    %v2060 = vpop.f32.mrb[0].mxu0
    %v2061 = vadd.f32 %v2018, %v2060
    %v2062 = vpop.f32.mrb[0].mxu0
    %v2063 = vadd.f32 %v2020, %v2062
    %v2064 = vpop.f32.mrb[0].mxu0
    %v2065 = vadd.f32 %v2022, %v2064
    %2066 = vdwg.mxu0
    %vm2067 = vcmp.gt.f32.partialorder %v1973, 0.0
    %vm2068 = vcmp.gt.f32.partialorder %v1975, 0.0
    %vm2069 = vcmp.gt.f32.partialorder %v2059, 0.0
    %vm2070 = vcmp.gt.f32.partialorder %v2061, 0.0
    %vm2071 = vcmp.gt.f32.partialorder %v1977, 0.0
    %vm2072 = vcmp.gt.f32.partialorder %v1979, 0.0
    %vm2073 = vcmp.gt.f32.partialorder %v2063, 0.0
    %vm2074 = vcmp.gt.f32.partialorder %v2065, 0.0
    %v2075 = vmul.f32 %v1973, 0.2
    %v2076 = vmul.f32 %v1975, 0.2
    %v2077 = vmul.f32 %v2059, 0.2
    %v2078 = vmul.f32 %v2061, 0.2
    %v2079 = vmul.f32 %v1977, 0.2
    %v2080 = vmul.f32 %v1979, 0.2
    %v2081 = vmul.f32 %v2063, 0.2
    %v2082 = vmul.f32 %v2065, 0.2
    %v2083 = vsel %vm2067, %v1973, %v2075
    %v2084 = vsel %vm2068, %v1975, %v2076
    %v2085 = vsel %vm2069, %v2059, %v2077
    %v2086 = vsel %vm2070, %v2061, %v2078
    %v2087 = vsel %vm2071, %v1977, %v2079
    %v2088 = vsel %vm2072, %v1979, %v2080
    %v2089 = vsel %vm2073, %v2063, %v2081
    %v2090 = vsel %vm2074, %v2065, %v2082
    %v2091 = vpack.c.bf16 %v2087, %v2083
    %v2092 = vpack.c.bf16 %v2088, %v2084
    %v2093 = vpack.c.bf16 %v2089, %v2085
    %v2094 = vpack.c.bf16 %v2090, %v2086
    %v2095 = vld [vmem:[#allocation7] sm:$0xff]
    %v2096 = vld [vmem:[#allocation7 + $0x8] sm:$0xff]
    %v2097 = vld [vmem:[#allocation7 + $0x10] sm:$0xff]
    %v2098 = vld [vmem:[#allocation7 + $0x18] sm:$0xff]
    %v2099 = vld [vmem:[#allocation7 + $0x20] sm:$0xff]
    %v2100 = vld [vmem:[#allocation7 + $0x28] sm:$0xff]
    %v2101 = vld [vmem:[#allocation7 + $0x30] sm:$0xff]
    %v2102 = vld [vmem:[#allocation7 + $0x38] sm:$0xff]
    %v2103 = vld [vmem:[#allocation7 + $0x40] sm:$0xff]
    %v2104 = vld [vmem:[#allocation7 + $0x48] sm:$0xff]
    %v2105 = vld [vmem:[#allocation7 + $0x50] sm:$0xff]
    %v2106 = vld [vmem:[#allocation7 + $0x58] sm:$0xff]
    %v2107 = vld [vmem:[#allocation7 + $0x60] sm:$0xff]
    %v2108 = vld [vmem:[#allocation7 + $0x68] sm:$0xff]
    %v2109 = vld [vmem:[#allocation7 + $0x70] sm:$0xff]
    %v2110 = vld [vmem:[#allocation7 + $0x78] sm:$0xff]
    %v2111 = vld [vmem:[#allocation7 + $0x80] sm:$0xff]
    %v2112 = vld [vmem:[#allocation7 + $0x88] sm:$0xff]
    %v2113 = vld [vmem:[#allocation7 + $0x90] sm:$0xff]
    %v2114 = vld [vmem:[#allocation7 + $0x98] sm:$0xff]
    %v2115 = vld [vmem:[#allocation7 + $0xa0] sm:$0xff]
    %v2116 = vld [vmem:[#allocation7 + $0xa8] sm:$0xff]
    %v2117 = vld [vmem:[#allocation7 + $0xb0] sm:$0xff]
    %v2118 = vld [vmem:[#allocation7 + $0xb8] sm:$0xff]
    %v2119 = vld [vmem:[#allocation7 + $0xc0] sm:$0xff]
    %v2120 = vld [vmem:[#allocation7 + $0xc8] sm:$0xff]
    %v2121 = vld [vmem:[#allocation7 + $0xd0] sm:$0xff]
    %v2122 = vld [vmem:[#allocation7 + $0xd8] sm:$0xff]
    %v2123 = vld [vmem:[#allocation7 + $0xe0] sm:$0xff]
    %v2124 = vld [vmem:[#allocation7 + $0xe8] sm:$0xff]
    %v2125 = vld [vmem:[#allocation7 + $0xf0] sm:$0xff]
    %v2126 = vld [vmem:[#allocation7 + $0xf8] sm:$0xff]
    %v2127 = vld [vmem:[#allocation7 + $0x100] sm:$0xff]
    %v2128 = vld [vmem:[#allocation7 + $0x108] sm:$0xff]
    %v2129 = vld [vmem:[#allocation7 + $0x110] sm:$0xff]
    %v2130 = vld [vmem:[#allocation7 + $0x118] sm:$0xff]
    %v2131 = vld [vmem:[#allocation7 + $0x120] sm:$0xff]
    %v2132 = vld [vmem:[#allocation7 + $0x128] sm:$0xff]
    %v2133 = vld [vmem:[#allocation7 + $0x130] sm:$0xff]
    %v2134 = vld [vmem:[#allocation7 + $0x138] sm:$0xff]
    %v2135 = vld [vmem:[#allocation7 + $0x140] sm:$0xff]
    %v2136 = vld [vmem:[#allocation7 + $0x148] sm:$0xff]
    %v2137 = vld [vmem:[#allocation7 + $0x150] sm:$0xff]
    %v2138 = vld [vmem:[#allocation7 + $0x158] sm:$0xff]
    %v2139 = vld [vmem:[#allocation7 + $0x160] sm:$0xff]
    %v2140 = vld [vmem:[#allocation7 + $0x168] sm:$0xff]
    %v2141 = vld [vmem:[#allocation7 + $0x170] sm:$0xff]
    %v2142 = vld [vmem:[#allocation7 + $0x178] sm:$0xff]
    %v2143 = vld [vmem:[#allocation7 + $0x180] sm:$0xff]
    %v2144 = vld [vmem:[#allocation7 + $0x188] sm:$0xff]
    %v2145 = vld [vmem:[#allocation7 + $0x190] sm:$0xff]
    %v2146 = vld [vmem:[#allocation7 + $0x198] sm:$0xff]
    %v2147 = vld [vmem:[#allocation7 + $0x1a0] sm:$0xff]
    %v2148 = vld [vmem:[#allocation7 + $0x1a8] sm:$0xff]
    %v2149 = vld [vmem:[#allocation7 + $0x1b0] sm:$0xff]
    %v2150 = vld [vmem:[#allocation7 + $0x1b8] sm:$0xff]
    %v2151 = vld [vmem:[#allocation7 + $0x1c0] sm:$0xff]
    %v2152 = vld [vmem:[#allocation7 + $0x1c8] sm:$0xff]
    %v2153 = vld [vmem:[#allocation7 + $0x1d0] sm:$0xff]
    %v2154 = vld [vmem:[#allocation7 + $0x1d8] sm:$0xff]
    %v2155 = vld [vmem:[#allocation7 + $0x1e0] sm:$0xff]
    %v2156 = vld [vmem:[#allocation7 + $0x1e8] sm:$0xff]
    %v2157 = vld [vmem:[#allocation7 + $0x1f0] sm:$0xff]
    %v2158 = vld [vmem:[#allocation7 + $0x1f8] sm:$0xff]
    %v2159 = vld [vmem:[#allocation7 + $0x200] sm:$0xff]
    %v2160 = vld [vmem:[#allocation7 + $0x208] sm:$0xff]
    %v2161 = vld [vmem:[#allocation7 + $0x210] sm:$0xff]
    %v2162 = vld [vmem:[#allocation7 + $0x218] sm:$0xff]
    %v2163 = vld [vmem:[#allocation7 + $0x220] sm:$0xff]
    %v2164 = vld [vmem:[#allocation7 + $0x228] sm:$0xff]
    %v2165 = vld [vmem:[#allocation7 + $0x230] sm:$0xff]
    %v2166 = vld [vmem:[#allocation7 + $0x238] sm:$0xff]
    %v2167 = vld [vmem:[#allocation7 + $0x240] sm:$0xff]
    %v2168 = vld [vmem:[#allocation7 + $0x248] sm:$0xff]
    %v2169 = vld [vmem:[#allocation7 + $0x250] sm:$0xff]
    %v2170 = vld [vmem:[#allocation7 + $0x258] sm:$0xff]
    %v2171 = vld [vmem:[#allocation7 + $0x260] sm:$0xff]
    %v2172 = vld [vmem:[#allocation7 + $0x268] sm:$0xff]
    %v2173 = vld [vmem:[#allocation7 + $0x270] sm:$0xff]
    %v2174 = vld [vmem:[#allocation7 + $0x278] sm:$0xff]
    %v2175 = vld [vmem:[#allocation7 + $0x280] sm:$0xff]
    %v2176 = vld [vmem:[#allocation7 + $0x288] sm:$0xff]
    %v2177 = vld [vmem:[#allocation7 + $0x290] sm:$0xff]
    %v2178 = vld [vmem:[#allocation7 + $0x298] sm:$0xff]
    %v2179 = vld [vmem:[#allocation7 + $0x2a0] sm:$0xff]
    %v2180 = vld [vmem:[#allocation7 + $0x2a8] sm:$0xff]
    %v2181 = vld [vmem:[#allocation7 + $0x2b0] sm:$0xff]
    %v2182 = vld [vmem:[#allocation7 + $0x2b8] sm:$0xff]
    %v2183 = vld [vmem:[#allocation7 + $0x2c0] sm:$0xff]
    %v2184 = vld [vmem:[#allocation7 + $0x2c8] sm:$0xff]
    %v2185 = vld [vmem:[#allocation7 + $0x2d0] sm:$0xff]
    %v2186 = vld [vmem:[#allocation7 + $0x2d8] sm:$0xff]
    %v2187 = vld [vmem:[#allocation7 + $0x2e0] sm:$0xff]
    %v2188 = vld [vmem:[#allocation7 + $0x2e8] sm:$0xff]
    %v2189 = vld [vmem:[#allocation7 + $0x2f0] sm:$0xff]
    %v2190 = vld [vmem:[#allocation7 + $0x2f8] sm:$0xff]
    %v2191 = vld [vmem:[#allocation7 + $0x300] sm:$0xff]
    %v2192 = vld [vmem:[#allocation7 + $0x308] sm:$0xff]
    %v2193 = vld [vmem:[#allocation7 + $0x310] sm:$0xff]
    %v2194 = vld [vmem:[#allocation7 + $0x318] sm:$0xff]
    %v2195 = vld [vmem:[#allocation7 + $0x320] sm:$0xff]
    %v2196 = vld [vmem:[#allocation7 + $0x328] sm:$0xff]
    %v2197 = vld [vmem:[#allocation7 + $0x330] sm:$0xff]
    %v2198 = vld [vmem:[#allocation7 + $0x338] sm:$0xff]
    %v2199 = vld [vmem:[#allocation7 + $0x340] sm:$0xff]
    %v2200 = vld [vmem:[#allocation7 + $0x348] sm:$0xff]
    %v2201 = vld [vmem:[#allocation7 + $0x350] sm:$0xff]
    %v2202 = vld [vmem:[#allocation7 + $0x358] sm:$0xff]
    %v2203 = vld [vmem:[#allocation7 + $0x360] sm:$0xff]
    %v2204 = vld [vmem:[#allocation7 + $0x368] sm:$0xff]
    %v2205 = vld [vmem:[#allocation7 + $0x370] sm:$0xff]
    %v2206 = vld [vmem:[#allocation7 + $0x378] sm:$0xff]
    %v2207 = vld [vmem:[#allocation7 + $0x380] sm:$0xff]
    %v2208 = vld [vmem:[#allocation7 + $0x388] sm:$0xff]
    %v2209 = vld [vmem:[#allocation7 + $0x390] sm:$0xff]
    %v2210 = vld [vmem:[#allocation7 + $0x398] sm:$0xff]
    %v2211 = vld [vmem:[#allocation7 + $0x3a0] sm:$0xff]
    %v2212 = vld [vmem:[#allocation7 + $0x3a8] sm:$0xff]
    %v2213 = vld [vmem:[#allocation7 + $0x3b0] sm:$0xff]
    %v2214 = vld [vmem:[#allocation7 + $0x3b8] sm:$0xff]
    %v2215 = vld [vmem:[#allocation7 + $0x3c0] sm:$0xff]
    %v2216 = vld [vmem:[#allocation7 + $0x3c8] sm:$0xff]
    %v2217 = vld [vmem:[#allocation7 + $0x3d0] sm:$0xff]
    %v2218 = vld [vmem:[#allocation7 + $0x3d8] sm:$0xff]
    %v2219 = vld [vmem:[#allocation7 + $0x3e0] sm:$0xff]
    %v2220 = vld [vmem:[#allocation7 + $0x3e8] sm:$0xff]
    %v2221 = vld [vmem:[#allocation7 + $0x3f0] sm:$0xff]
    %v2222 = vld [vmem:[#allocation7 + $0x3f8] sm:$0xff]
    %v2223 = vld [vmem:[%s6] sm:$0xf]
    %v2225 = vlaneseq
    %v2226 = vshrl.u32 %v2225, 7
    %v2227 = vsub.s32 0, %v2226
    %v2228 = vrot.slane %v2223, %v2227
    %v2229 = vlaneseq
    %v2230 = vshrl.u32 %v2229, 7
    %v2231 = vsub.s32 1, %v2230
    %v2232 = vrot.slane %v2223, %v2231
    %v2233 = vlaneseq
    %v2234 = vshrl.u32 %v2233, 7
    %v2235 = vsub.s32 2, %v2234
    %v2236 = vrot.slane %v2223, %v2235
    %v2237 = vlaneseq
    %v2238 = vshrl.u32 %v2237, 7
    %v2239 = vsub.s32 3, %v2238
    %v2240 = vrot.slane %v2223, %v2239
    %v2373 = vunpack.c.l.b16 %v2095
    %v2374 = vunpack.c.h.b16 %v2095
    %v2375 = vunpack.c.l.b16 %v2096
    %v2376 = vunpack.c.h.b16 %v2096
    %v2377 = vunpack.c.l.b16 %v2097
    %v2378 = vunpack.c.h.b16 %v2097
    %v2379 = vunpack.c.l.b16 %v2098
    %v2380 = vunpack.c.h.b16 %v2098
    %v2381 = vunpack.c.l.b16 %v2099
    %v2382 = vunpack.c.h.b16 %v2099
    %v2383 = vunpack.c.l.b16 %v2100
    %v2384 = vunpack.c.h.b16 %v2100
    %v2385 = vunpack.c.l.b16 %v2101
    %v2386 = vunpack.c.h.b16 %v2101
    %v2387 = vunpack.c.l.b16 %v2102
    %v2388 = vunpack.c.h.b16 %v2102
    %v2389 = vunpack.c.l.b16 %v2103
    %v2390 = vunpack.c.h.b16 %v2103
    %v2391 = vunpack.c.l.b16 %v2104
    %v2392 = vunpack.c.h.b16 %v2104
    %v2393 = vunpack.c.l.b16 %v2105
    %v2394 = vunpack.c.h.b16 %v2105
    %v2395 = vunpack.c.l.b16 %v2106
    %v2396 = vunpack.c.h.b16 %v2106
    %v2397 = vunpack.c.l.b16 %v2107
    %v2398 = vunpack.c.h.b16 %v2107
    %v2399 = vunpack.c.l.b16 %v2108
    %v2400 = vunpack.c.h.b16 %v2108
    %v2401 = vunpack.c.l.b16 %v2109
    %v2402 = vunpack.c.h.b16 %v2109
    %v2403 = vunpack.c.l.b16 %v2110
    %v2404 = vunpack.c.h.b16 %v2110
    %v2405 = vunpack.c.l.b16 %v2111
    %v2406 = vunpack.c.h.b16 %v2111
    %v2407 = vunpack.c.l.b16 %v2112
    %v2408 = vunpack.c.h.b16 %v2112
    %v2409 = vunpack.c.l.b16 %v2113
    %v2410 = vunpack.c.h.b16 %v2113
    %v2411 = vunpack.c.l.b16 %v2114
    %v2412 = vunpack.c.h.b16 %v2114
    %v2413 = vunpack.c.l.b16 %v2115
    %v2414 = vunpack.c.h.b16 %v2115
    %v2415 = vunpack.c.l.b16 %v2116
    %v2416 = vunpack.c.h.b16 %v2116
    %v2417 = vunpack.c.l.b16 %v2117
    %v2418 = vunpack.c.h.b16 %v2117
    %v2419 = vunpack.c.l.b16 %v2118
    %v2420 = vunpack.c.h.b16 %v2118
    %v2421 = vunpack.c.l.b16 %v2119
    %v2422 = vunpack.c.h.b16 %v2119
    %v2423 = vunpack.c.l.b16 %v2120
    %v2424 = vunpack.c.h.b16 %v2120
    %v2425 = vunpack.c.l.b16 %v2121
    %v2426 = vunpack.c.h.b16 %v2121
    %v2427 = vunpack.c.l.b16 %v2122
    %v2428 = vunpack.c.h.b16 %v2122
    %v2429 = vunpack.c.l.b16 %v2123
    %v2430 = vunpack.c.h.b16 %v2123
    %v2431 = vunpack.c.l.b16 %v2124
    %v2432 = vunpack.c.h.b16 %v2124
    %v2433 = vunpack.c.l.b16 %v2125
    %v2434 = vunpack.c.h.b16 %v2125
    %v2435 = vunpack.c.l.b16 %v2126
    %v2436 = vunpack.c.h.b16 %v2126
    %v2437 = vunpack.c.l.b16 %v2127
    %v2438 = vunpack.c.h.b16 %v2127
    %v2439 = vunpack.c.l.b16 %v2128
    %v2440 = vunpack.c.h.b16 %v2128
    %v2441 = vunpack.c.l.b16 %v2129
    %v2442 = vunpack.c.h.b16 %v2129
    %v2443 = vunpack.c.l.b16 %v2130
    %v2444 = vunpack.c.h.b16 %v2130
    %v2445 = vunpack.c.l.b16 %v2131
    %v2446 = vunpack.c.h.b16 %v2131
    %v2447 = vunpack.c.l.b16 %v2132
    %v2448 = vunpack.c.h.b16 %v2132
    %v2449 = vunpack.c.l.b16 %v2133
    %v2450 = vunpack.c.h.b16 %v2133
    %v2451 = vunpack.c.l.b16 %v2134
    %v2452 = vunpack.c.h.b16 %v2134
    %v2453 = vunpack.c.l.b16 %v2135
    %v2454 = vunpack.c.h.b16 %v2135
    %v2455 = vunpack.c.l.b16 %v2136
    %v2456 = vunpack.c.h.b16 %v2136
    %v2457 = vunpack.c.l.b16 %v2137
    %v2458 = vunpack.c.h.b16 %v2137
    %v2459 = vunpack.c.l.b16 %v2138
    %v2460 = vunpack.c.h.b16 %v2138
    %v2461 = vunpack.c.l.b16 %v2139
    %v2462 = vunpack.c.h.b16 %v2139
    %v2463 = vunpack.c.l.b16 %v2140
    %v2464 = vunpack.c.h.b16 %v2140
    %v2465 = vunpack.c.l.b16 %v2141
    %v2466 = vunpack.c.h.b16 %v2141
    %v2467 = vunpack.c.l.b16 %v2142
    %v2468 = vunpack.c.h.b16 %v2142
    %v2469 = vunpack.c.l.b16 %v2143
    %v2470 = vunpack.c.h.b16 %v2143
    %v2471 = vunpack.c.l.b16 %v2144
    %v2472 = vunpack.c.h.b16 %v2144
    %v2473 = vunpack.c.l.b16 %v2145
    %v2474 = vunpack.c.h.b16 %v2145
    %v2475 = vunpack.c.l.b16 %v2146
    %v2476 = vunpack.c.h.b16 %v2146
    %v2477 = vunpack.c.l.b16 %v2147
    %v2478 = vunpack.c.h.b16 %v2147
    %v2479 = vunpack.c.l.b16 %v2148
    %v2480 = vunpack.c.h.b16 %v2148
    %v2481 = vunpack.c.l.b16 %v2149
    %v2482 = vunpack.c.h.b16 %v2149
    %v2483 = vunpack.c.l.b16 %v2150
    %v2484 = vunpack.c.h.b16 %v2150
    %v2485 = vunpack.c.l.b16 %v2151
    %v2486 = vunpack.c.h.b16 %v2151
    %v2487 = vunpack.c.l.b16 %v2152
    %v2488 = vunpack.c.h.b16 %v2152
    %v2489 = vunpack.c.l.b16 %v2153
    %v2490 = vunpack.c.h.b16 %v2153
    %v2491 = vunpack.c.l.b16 %v2154
    %v2492 = vunpack.c.h.b16 %v2154
    %v2493 = vunpack.c.l.b16 %v2155
    %v2494 = vunpack.c.h.b16 %v2155
    %v2495 = vunpack.c.l.b16 %v2156
    %v2496 = vunpack.c.h.b16 %v2156
    %v2497 = vunpack.c.l.b16 %v2157
    %v2498 = vunpack.c.h.b16 %v2157
    %v2499 = vunpack.c.l.b16 %v2158
    %v2500 = vunpack.c.h.b16 %v2158
    %v2501 = vunpack.c.l.b16 %v2159
    %v2502 = vunpack.c.h.b16 %v2159
    %v2503 = vunpack.c.l.b16 %v2160
    %v2504 = vunpack.c.h.b16 %v2160
    %v2505 = vunpack.c.l.b16 %v2161
    %v2506 = vunpack.c.h.b16 %v2161
    %v2507 = vunpack.c.l.b16 %v2162
    %v2508 = vunpack.c.h.b16 %v2162
    %v2509 = vunpack.c.l.b16 %v2163
    %v2510 = vunpack.c.h.b16 %v2163
    %v2511 = vunpack.c.l.b16 %v2164
    %v2512 = vunpack.c.h.b16 %v2164
    %v2513 = vunpack.c.l.b16 %v2165
    %v2514 = vunpack.c.h.b16 %v2165
    %v2515 = vunpack.c.l.b16 %v2166
    %v2516 = vunpack.c.h.b16 %v2166
    %v2517 = vunpack.c.l.b16 %v2167
    %v2518 = vunpack.c.h.b16 %v2167
    %v2519 = vunpack.c.l.b16 %v2168
    %v2520 = vunpack.c.h.b16 %v2168
    %v2521 = vunpack.c.l.b16 %v2169
    %v2522 = vunpack.c.h.b16 %v2169
    %v2523 = vunpack.c.l.b16 %v2170
    %v2524 = vunpack.c.h.b16 %v2170
    %v2525 = vunpack.c.l.b16 %v2171
    %v2526 = vunpack.c.h.b16 %v2171
    %v2527 = vunpack.c.l.b16 %v2172
    %v2528 = vunpack.c.h.b16 %v2172
    %v2529 = vunpack.c.l.b16 %v2173
    %v2530 = vunpack.c.h.b16 %v2173
    %v2531 = vunpack.c.l.b16 %v2174
    %v2532 = vunpack.c.h.b16 %v2174
    %v2533 = vunpack.c.l.b16 %v2175
    %v2534 = vunpack.c.h.b16 %v2175
    %v2535 = vunpack.c.l.b16 %v2176
    %v2536 = vunpack.c.h.b16 %v2176
    %v2537 = vunpack.c.l.b16 %v2177
    %v2538 = vunpack.c.h.b16 %v2177
    %v2539 = vunpack.c.l.b16 %v2178
    %v2540 = vunpack.c.h.b16 %v2178
    %v2541 = vunpack.c.l.b16 %v2179
    %v2542 = vunpack.c.h.b16 %v2179
    %v2543 = vunpack.c.l.b16 %v2180
    %v2544 = vunpack.c.h.b16 %v2180
    %v2545 = vunpack.c.l.b16 %v2181
    %v2546 = vunpack.c.h.b16 %v2181
    %v2547 = vunpack.c.l.b16 %v2182
    %v2548 = vunpack.c.h.b16 %v2182
    %v2549 = vunpack.c.l.b16 %v2183
    %v2550 = vunpack.c.h.b16 %v2183
    %v2551 = vunpack.c.l.b16 %v2184
    %v2552 = vunpack.c.h.b16 %v2184
    %v2553 = vunpack.c.l.b16 %v2185
    %v2554 = vunpack.c.h.b16 %v2185
    %v2555 = vunpack.c.l.b16 %v2186
    %v2556 = vunpack.c.h.b16 %v2186
    %v2557 = vunpack.c.l.b16 %v2187
    %v2558 = vunpack.c.h.b16 %v2187
    %v2559 = vunpack.c.l.b16 %v2188
    %v2560 = vunpack.c.h.b16 %v2188
    %v2561 = vunpack.c.l.b16 %v2189
    %v2562 = vunpack.c.h.b16 %v2189
    %v2563 = vunpack.c.l.b16 %v2190
    %v2564 = vunpack.c.h.b16 %v2190
    %v2565 = vunpack.c.l.b16 %v2191
    %v2566 = vunpack.c.h.b16 %v2191
    %v2567 = vunpack.c.l.b16 %v2192
    %v2568 = vunpack.c.h.b16 %v2192
    %v2569 = vunpack.c.l.b16 %v2193
    %v2570 = vunpack.c.h.b16 %v2193
    %v2571 = vunpack.c.l.b16 %v2194
    %v2572 = vunpack.c.h.b16 %v2194
    %v2573 = vunpack.c.l.b16 %v2195
    %v2574 = vunpack.c.h.b16 %v2195
    %v2575 = vunpack.c.l.b16 %v2196
    %v2576 = vunpack.c.h.b16 %v2196
    %v2577 = vunpack.c.l.b16 %v2197
    %v2578 = vunpack.c.h.b16 %v2197
    %v2579 = vunpack.c.l.b16 %v2198
    %v2580 = vunpack.c.h.b16 %v2198
    %v2581 = vunpack.c.l.b16 %v2199
    %v2582 = vunpack.c.h.b16 %v2199
    %v2583 = vunpack.c.l.b16 %v2200
    %v2584 = vunpack.c.h.b16 %v2200
    %v2585 = vunpack.c.l.b16 %v2201
    %v2586 = vunpack.c.h.b16 %v2201
    %v2587 = vunpack.c.l.b16 %v2202
    %v2588 = vunpack.c.h.b16 %v2202
    %v2589 = vunpack.c.l.b16 %v2203
    %v2590 = vunpack.c.h.b16 %v2203
    %v2591 = vunpack.c.l.b16 %v2204
    %v2592 = vunpack.c.h.b16 %v2204
    %v2593 = vunpack.c.l.b16 %v2205
    %v2594 = vunpack.c.h.b16 %v2205
    %v2595 = vunpack.c.l.b16 %v2206
    %v2596 = vunpack.c.h.b16 %v2206
    %v2597 = vunpack.c.l.b16 %v2207
    %v2598 = vunpack.c.h.b16 %v2207
    %v2599 = vunpack.c.l.b16 %v2208
    %v2600 = vunpack.c.h.b16 %v2208
    %v2601 = vunpack.c.l.b16 %v2209
    %v2602 = vunpack.c.h.b16 %v2209
    %v2603 = vunpack.c.l.b16 %v2210
    %v2604 = vunpack.c.h.b16 %v2210
    %v2605 = vunpack.c.l.b16 %v2211
    %v2606 = vunpack.c.h.b16 %v2211
    %v2607 = vunpack.c.l.b16 %v2212
    %v2608 = vunpack.c.h.b16 %v2212
    %v2609 = vunpack.c.l.b16 %v2213
    %v2610 = vunpack.c.h.b16 %v2213
    %v2611 = vunpack.c.l.b16 %v2214
    %v2612 = vunpack.c.h.b16 %v2214
    %v2613 = vunpack.c.l.b16 %v2215
    %v2614 = vunpack.c.h.b16 %v2215
    %v2615 = vunpack.c.l.b16 %v2216
    %v2616 = vunpack.c.h.b16 %v2216
    %v2617 = vunpack.c.l.b16 %v2217
    %v2618 = vunpack.c.h.b16 %v2217
    %v2619 = vunpack.c.l.b16 %v2218
    %v2620 = vunpack.c.h.b16 %v2218
    %v2621 = vunpack.c.l.b16 %v2219
    %v2622 = vunpack.c.h.b16 %v2219
    %v2623 = vunpack.c.l.b16 %v2220
    %v2624 = vunpack.c.h.b16 %v2220
    %v2625 = vunpack.c.l.b16 %v2221
    %v2626 = vunpack.c.h.b16 %v2221
    %v2627 = vunpack.c.l.b16 %v2222
    %v2628 = vunpack.c.h.b16 %v2222
    %v2629 = vpack.c.b16 %v2377, %v2373
    %v2630 = vpack.c.b16 %v2378, %v2374
    %v2631 = vpack.c.b16 %v2379, %v2375
    %v2632 = vpack.c.b16 %v2380, %v2376
    %v2633 = vpack.c.b16 %v2385, %v2381
    %v2634 = vpack.c.b16 %v2386, %v2382
    %v2635 = vpack.c.b16 %v2387, %v2383
    %v2636 = vpack.c.b16 %v2388, %v2384
    %v2637 = vpack.c.b16 %v2393, %v2389
    %v2638 = vpack.c.b16 %v2394, %v2390
    %v2639 = vpack.c.b16 %v2395, %v2391
    %v2640 = vpack.c.b16 %v2396, %v2392
    %v2641 = vpack.c.b16 %v2401, %v2397
    %v2642 = vpack.c.b16 %v2402, %v2398
    %v2643 = vpack.c.b16 %v2403, %v2399
    %v2644 = vpack.c.b16 %v2404, %v2400
    %v2645 = vpack.c.b16 %v2409, %v2405
    %v2646 = vpack.c.b16 %v2410, %v2406
    %v2647 = vpack.c.b16 %v2411, %v2407
    %v2648 = vpack.c.b16 %v2412, %v2408
    %v2649 = vpack.c.b16 %v2417, %v2413
    %v2650 = vpack.c.b16 %v2418, %v2414
    %v2651 = vpack.c.b16 %v2419, %v2415
    %v2652 = vpack.c.b16 %v2420, %v2416
    %v2653 = vpack.c.b16 %v2425, %v2421
    %v2654 = vpack.c.b16 %v2426, %v2422
    %v2655 = vpack.c.b16 %v2427, %v2423
    %v2656 = vpack.c.b16 %v2428, %v2424
    %v2657 = vpack.c.b16 %v2433, %v2429
    %v2658 = vpack.c.b16 %v2434, %v2430
    %v2659 = vpack.c.b16 %v2435, %v2431
    %v2660 = vpack.c.b16 %v2436, %v2432
    %v2661 = vpack.c.b16 %v2441, %v2437
    %v2662 = vpack.c.b16 %v2442, %v2438
    %v2663 = vpack.c.b16 %v2443, %v2439
    %v2664 = vpack.c.b16 %v2444, %v2440
    %v2665 = vpack.c.b16 %v2449, %v2445
    %v2666 = vpack.c.b16 %v2450, %v2446
    %v2667 = vpack.c.b16 %v2451, %v2447
    %v2668 = vpack.c.b16 %v2452, %v2448
    %v2669 = vpack.c.b16 %v2457, %v2453
    %v2670 = vpack.c.b16 %v2458, %v2454
    %v2671 = vpack.c.b16 %v2459, %v2455
    %v2672 = vpack.c.b16 %v2460, %v2456
    %v2673 = vpack.c.b16 %v2465, %v2461
    %v2674 = vpack.c.b16 %v2466, %v2462
    %v2675 = vpack.c.b16 %v2467, %v2463
    %v2676 = vpack.c.b16 %v2468, %v2464
    %v2677 = vpack.c.b16 %v2473, %v2469
    %v2678 = vpack.c.b16 %v2474, %v2470
    %v2679 = vpack.c.b16 %v2475, %v2471
    %v2680 = vpack.c.b16 %v2476, %v2472
    %v2681 = vpack.c.b16 %v2481, %v2477
    %v2682 = vpack.c.b16 %v2482, %v2478
    %v2683 = vpack.c.b16 %v2483, %v2479
    %v2684 = vpack.c.b16 %v2484, %v2480
    %v2685 = vpack.c.b16 %v2489, %v2485
    %v2686 = vpack.c.b16 %v2490, %v2486
    %v2687 = vpack.c.b16 %v2491, %v2487
    %v2688 = vpack.c.b16 %v2492, %v2488
    %v2689 = vpack.c.b16 %v2497, %v2493
    %v2690 = vpack.c.b16 %v2498, %v2494
    %v2691 = vpack.c.b16 %v2499, %v2495
    %v2692 = vpack.c.b16 %v2500, %v2496
    %v2693 = vpack.c.b16 %v2505, %v2501
    %v2694 = vpack.c.b16 %v2506, %v2502
    %v2695 = vpack.c.b16 %v2507, %v2503
    %v2696 = vpack.c.b16 %v2508, %v2504
    %v2697 = vpack.c.b16 %v2513, %v2509
    %v2698 = vpack.c.b16 %v2514, %v2510
    %v2699 = vpack.c.b16 %v2515, %v2511
    %v2700 = vpack.c.b16 %v2516, %v2512
    %v2701 = vpack.c.b16 %v2521, %v2517
    %v2702 = vpack.c.b16 %v2522, %v2518
    %v2703 = vpack.c.b16 %v2523, %v2519
    %v2704 = vpack.c.b16 %v2524, %v2520
    %v2705 = vpack.c.b16 %v2529, %v2525
    %v2706 = vpack.c.b16 %v2530, %v2526
    %v2707 = vpack.c.b16 %v2531, %v2527
    %v2708 = vpack.c.b16 %v2532, %v2528
    %v2709 = vpack.c.b16 %v2537, %v2533
    %v2710 = vpack.c.b16 %v2538, %v2534
    %v2711 = vpack.c.b16 %v2539, %v2535
    %v2712 = vpack.c.b16 %v2540, %v2536
    %v2713 = vpack.c.b16 %v2545, %v2541
    %v2714 = vpack.c.b16 %v2546, %v2542
    %v2715 = vpack.c.b16 %v2547, %v2543
    %v2716 = vpack.c.b16 %v2548, %v2544
    %v2717 = vpack.c.b16 %v2553, %v2549
    %v2718 = vpack.c.b16 %v2554, %v2550
    %v2719 = vpack.c.b16 %v2555, %v2551
    %v2720 = vpack.c.b16 %v2556, %v2552
    %v2721 = vpack.c.b16 %v2561, %v2557
    %v2722 = vpack.c.b16 %v2562, %v2558
    %v2723 = vpack.c.b16 %v2563, %v2559
    %v2724 = vpack.c.b16 %v2564, %v2560
    %v2725 = vpack.c.b16 %v2569, %v2565
    %v2726 = vpack.c.b16 %v2570, %v2566
    %v2727 = vpack.c.b16 %v2571, %v2567
    %v2728 = vpack.c.b16 %v2572, %v2568
    %v2729 = vpack.c.b16 %v2577, %v2573
    %v2730 = vpack.c.b16 %v2578, %v2574
    %v2731 = vpack.c.b16 %v2579, %v2575
    %v2732 = vpack.c.b16 %v2580, %v2576
    %v2733 = vpack.c.b16 %v2585, %v2581
    %v2734 = vpack.c.b16 %v2586, %v2582
    %v2735 = vpack.c.b16 %v2587, %v2583
    %v2736 = vpack.c.b16 %v2588, %v2584
    %v2737 = vpack.c.b16 %v2593, %v2589
    %v2738 = vpack.c.b16 %v2594, %v2590
    %v2739 = vpack.c.b16 %v2595, %v2591
    %v2740 = vpack.c.b16 %v2596, %v2592
    %v2741 = vpack.c.b16 %v2601, %v2597
    %v2742 = vpack.c.b16 %v2602, %v2598
    %v2743 = vpack.c.b16 %v2603, %v2599
    %v2744 = vpack.c.b16 %v2604, %v2600
    %v2745 = vpack.c.b16 %v2609, %v2605
    %v2746 = vpack.c.b16 %v2610, %v2606
    %v2747 = vpack.c.b16 %v2611, %v2607
    %v2748 = vpack.c.b16 %v2612, %v2608
    %v2749 = vpack.c.b16 %v2617, %v2613
    %v2750 = vpack.c.b16 %v2618, %v2614
    %v2751 = vpack.c.b16 %v2619, %v2615
    %v2752 = vpack.c.b16 %v2620, %v2616
    %v2753 = vpack.c.b16 %v2625, %v2621
    %v2754 = vpack.c.b16 %v2626, %v2622
    %v2755 = vpack.c.b16 %v2627, %v2623
    %v2756 = vpack.c.b16 %v2628, %v2624
    %2885 = vmatprep.subr.bf16.mxu0 %v2630
    %2886 = vmatpush1.bf16.msra.mxu0 %v2629
    %2887 = vmatprep.subr.bf16.mxu0 %v2634
    %2888 = vmatpush1.bf16.msra.mxu0 %v2633
    %2889 = vmatprep.subr.bf16.mxu0 %v2638
    %2890 = vmatpush1.bf16.msra.mxu0 %v2637
    %2891 = vmatprep.subr.bf16.mxu0 %v2642
    %2892 = vmatpush1.bf16.msra.mxu0 %v2641
    %2893 = vmatprep.subr.bf16.mxu0 %v2646
    %2894 = vmatpush1.bf16.msra.mxu0 %v2645
    %2895 = vmatprep.subr.bf16.mxu0 %v2650
    %2896 = vmatpush1.bf16.msra.mxu0 %v2649
    %2897 = vmatprep.subr.bf16.mxu0 %v2654
    %2898 = vmatpush1.bf16.msra.mxu0 %v2653
    %2899 = vmatprep.subr.bf16.mxu0 %v2658
    %2900 = vmatpush1.bf16.msra.mxu0 %v2657
    %2901 = vmatprep.subr.bf16.mxu0 %v2662
    %2902 = vmatpush1.bf16.msra.mxu0 %v2661
    %2903 = vmatprep.subr.bf16.mxu0 %v2666
    %2904 = vmatpush1.bf16.msra.mxu0 %v2665
    %2905 = vmatprep.subr.bf16.mxu0 %v2670
    %2906 = vmatpush1.bf16.msra.mxu0 %v2669
    %2907 = vmatprep.subr.bf16.mxu0 %v2674
    %2908 = vmatpush1.bf16.msra.mxu0 %v2673
    %2909 = vmatprep.subr.bf16.mxu0 %v2678
    %2910 = vmatpush1.bf16.msra.mxu0 %v2677
    %2911 = vmatprep.subr.bf16.mxu0 %v2682
    %2912 = vmatpush1.bf16.msra.mxu0 %v2681
    %2913 = vmatprep.subr.bf16.mxu0 %v2686
    %2914 = vmatpush1.bf16.msra.mxu0 %v2685
    %2915 = vmatprep.subr.bf16.mxu0 %v2690
    %2916 = vmatpush1.bf16.msra.mxu0 %v2689
    %2917 = vmatprep.mubr.bf16.mxu0 %v2092
    %2918 = vmatmul.mubr.bf16.gmra.mrb[0].mxu0 %v2091
    %v2919 = vpop.f32.mrb[0].mxu0
    %v2920 = vadd.f32 %v2228, %v2919
    %v2921 = vpop.f32.mrb[0].mxu0
    %v2922 = vadd.f32 %v2232, %v2921
    %v2923 = vpop.f32.mrb[0].mxu0
    %v2924 = vadd.f32 %v2228, %v2923
    %v2925 = vpop.f32.mrb[0].mxu0
    %v2926 = vadd.f32 %v2232, %v2925
    %2927 = vdwg.mxu0
    %2928 = vmatprep.subr.bf16.mxu0 %v2694
    %2929 = vmatpush1.bf16.msra.mxu0 %v2693
    %2930 = vmatprep.subr.bf16.mxu0 %v2698
    %2931 = vmatpush1.bf16.msra.mxu0 %v2697
    %2932 = vmatprep.subr.bf16.mxu0 %v2702
    %2933 = vmatpush1.bf16.msra.mxu0 %v2701
    %2934 = vmatprep.subr.bf16.mxu0 %v2706
    %2935 = vmatpush1.bf16.msra.mxu0 %v2705
    %2936 = vmatprep.subr.bf16.mxu0 %v2710
    %2937 = vmatpush1.bf16.msra.mxu0 %v2709
    %2938 = vmatprep.subr.bf16.mxu0 %v2714
    %2939 = vmatpush1.bf16.msra.mxu0 %v2713
    %2940 = vmatprep.subr.bf16.mxu0 %v2718
    %2941 = vmatpush1.bf16.msra.mxu0 %v2717
    %2942 = vmatprep.subr.bf16.mxu0 %v2722
    %2943 = vmatpush1.bf16.msra.mxu0 %v2721
    %2944 = vmatprep.subr.bf16.mxu0 %v2726
    %2945 = vmatpush1.bf16.msra.mxu0 %v2725
    %2946 = vmatprep.subr.bf16.mxu0 %v2730
    %2947 = vmatpush1.bf16.msra.mxu0 %v2729
    %2948 = vmatprep.subr.bf16.mxu0 %v2734
    %2949 = vmatpush1.bf16.msra.mxu0 %v2733
    %2950 = vmatprep.subr.bf16.mxu0 %v2738
    %2951 = vmatpush1.bf16.msra.mxu0 %v2737
    %2952 = vmatprep.subr.bf16.mxu0 %v2742
    %2953 = vmatpush1.bf16.msra.mxu0 %v2741
    %2954 = vmatprep.subr.bf16.mxu0 %v2746
    %2955 = vmatpush1.bf16.msra.mxu0 %v2745
    %2956 = vmatprep.subr.bf16.mxu0 %v2750
    %2957 = vmatpush1.bf16.msra.mxu0 %v2749
    %2958 = vmatprep.subr.bf16.mxu0 %v2754
    %2959 = vmatpush1.bf16.msra.mxu0 %v2753
    %2960 = vmatprep.mubr.bf16.mxu0 %v2094
    %2961 = vmatmul.mubr.bf16.gmra.mrb[0].mxu0 %v2093
    %v2962 = vpop.f32.mrb[0].mxu0
    %v2963 = vadd.f32 %v2920, %v2962
    %v2964 = vpop.f32.mrb[0].mxu0
    %v2965 = vadd.f32 %v2922, %v2964
    %v2966 = vpop.f32.mrb[0].mxu0
    %v2967 = vadd.f32 %v2924, %v2966
    %v2968 = vpop.f32.mrb[0].mxu0
    %v2969 = vadd.f32 %v2926, %v2968
    %2970 = vdwg.mxu0
    %2971 = vmatprep.subr.bf16.mxu0 %v2632
    %2972 = vmatpush1.bf16.msra.mxu0 %v2631
    %2973 = vmatprep.subr.bf16.mxu0 %v2636
    %2974 = vmatpush1.bf16.msra.mxu0 %v2635
    %2975 = vmatprep.subr.bf16.mxu0 %v2640
    %2976 = vmatpush1.bf16.msra.mxu0 %v2639
    %2977 = vmatprep.subr.bf16.mxu0 %v2644
    %2978 = vmatpush1.bf16.msra.mxu0 %v2643
    %2979 = vmatprep.subr.bf16.mxu0 %v2648
    %2980 = vmatpush1.bf16.msra.mxu0 %v2647
    %2981 = vmatprep.subr.bf16.mxu0 %v2652
    %2982 = vmatpush1.bf16.msra.mxu0 %v2651
    %2983 = vmatprep.subr.bf16.mxu0 %v2656
    %2984 = vmatpush1.bf16.msra.mxu0 %v2655
    %2985 = vmatprep.subr.bf16.mxu0 %v2660
    %2986 = vmatpush1.bf16.msra.mxu0 %v2659
    %2987 = vmatprep.subr.bf16.mxu0 %v2664
    %2988 = vmatpush1.bf16.msra.mxu0 %v2663
    %2989 = vmatprep.subr.bf16.mxu0 %v2668
    %2990 = vmatpush1.bf16.msra.mxu0 %v2667
    %2991 = vmatprep.subr.bf16.mxu0 %v2672
    %2992 = vmatpush1.bf16.msra.mxu0 %v2671
    %2993 = vmatprep.subr.bf16.mxu0 %v2676
    %2994 = vmatpush1.bf16.msra.mxu0 %v2675
    %2995 = vmatprep.subr.bf16.mxu0 %v2680
    %2996 = vmatpush1.bf16.msra.mxu0 %v2679
    %2997 = vmatprep.subr.bf16.mxu0 %v2684
    %2998 = vmatpush1.bf16.msra.mxu0 %v2683
    %2999 = vmatprep.subr.bf16.mxu0 %v2688
    %3000 = vmatpush1.bf16.msra.mxu0 %v2687
    %3001 = vmatprep.subr.bf16.mxu0 %v2692
    %3002 = vmatpush1.bf16.msra.mxu0 %v2691
    %3003 = vmatprep.mubr.bf16.mxu0 %v2092
    %3004 = vmatmul.mubr.bf16.gmra.mrb[0].mxu0 %v2091
    %v3005 = vpop.f32.mrb[0].mxu0
    %v3006 = vadd.f32 %v2236, %v3005
    %v3007 = vpop.f32.mrb[0].mxu0
    %v3008 = vadd.f32 %v2240, %v3007
    %v3009 = vpop.f32.mrb[0].mxu0
    %v3010 = vadd.f32 %v2236, %v3009
    %v3011 = vpop.f32.mrb[0].mxu0
    %v3012 = vadd.f32 %v2240, %v3011
    %3013 = vdwg.mxu0
    %3014 = vmatprep.subr.bf16.mxu0 %v2696
    %3015 = vmatpush1.bf16.msra.mxu0 %v2695
    %3016 = vmatprep.subr.bf16.mxu0 %v2700
    %3017 = vmatpush1.bf16.msra.mxu0 %v2699
    %3018 = vmatprep.subr.bf16.mxu0 %v2704
    %3019 = vmatpush1.bf16.msra.mxu0 %v2703
    %3020 = vmatprep.subr.bf16.mxu0 %v2708
    %3021 = vmatpush1.bf16.msra.mxu0 %v2707
    %3022 = vmatprep.subr.bf16.mxu0 %v2712
    %3023 = vmatpush1.bf16.msra.mxu0 %v2711
    %3024 = vmatprep.subr.bf16.mxu0 %v2716
    %3025 = vmatpush1.bf16.msra.mxu0 %v2715
    %3026 = vmatprep.subr.bf16.mxu0 %v2720
    %3027 = vmatpush1.bf16.msra.mxu0 %v2719
    %3028 = vmatprep.subr.bf16.mxu0 %v2724
    %3029 = vmatpush1.bf16.msra.mxu0 %v2723
    %3030 = vmatprep.subr.bf16.mxu0 %v2728
    %3031 = vmatpush1.bf16.msra.mxu0 %v2727
    %3032 = vmatprep.subr.bf16.mxu0 %v2732
    %3033 = vmatpush1.bf16.msra.mxu0 %v2731
    %3034 = vmatprep.subr.bf16.mxu0 %v2736
    %3035 = vmatpush1.bf16.msra.mxu0 %v2735
    %3036 = vmatprep.subr.bf16.mxu0 %v2740
    %3037 = vmatpush1.bf16.msra.mxu0 %v2739
    %3038 = vmatprep.subr.bf16.mxu0 %v2744
    %3039 = vmatpush1.bf16.msra.mxu0 %v2743
    %3040 = vmatprep.subr.bf16.mxu0 %v2748
    %3041 = vmatpush1.bf16.msra.mxu0 %v2747
    %3042 = vmatprep.subr.bf16.mxu0 %v2752
    %3043 = vmatpush1.bf16.msra.mxu0 %v2751
    %3044 = vmatprep.subr.bf16.mxu0 %v2756
    %3045 = vmatpush1.bf16.msra.mxu0 %v2755
    %3046 = vmatprep.mubr.bf16.mxu0 %v2094
    %3047 = vmatmul.mubr.bf16.gmra.mrb[0].mxu0 %v2093
    %v3048 = vpop.f32.mrb[0].mxu0
    %v3049 = vadd.f32 %v3006, %v3048
    %v3050 = vpop.f32.mrb[0].mxu0
    %v3051 = vadd.f32 %v3008, %v3050
    %v3052 = vpop.f32.mrb[0].mxu0
    %v3053 = vadd.f32 %v3010, %v3052
    %v3054 = vpop.f32.mrb[0].mxu0
    %v3055 = vadd.f32 %v3012, %v3054
    %3056 = vdwg.mxu0
    %3057 = vst [vmem:[#allocation10] sm:$0xff] %v2963
    %3058 = vst [vmem:[#allocation10 + $0x8] sm:$0xff] %v2965
    %3059 = vst [vmem:[#allocation10 + $0x10] sm:$0xff] %v3049
    %3060 = vst [vmem:[#allocation10 + $0x18] sm:$0xff] %v3051
    %3061 = vst [vmem:[#allocation10 + $0x20] sm:$0xff] %v2967
    %3062 = vst [vmem:[#allocation10 + $0x28] sm:$0xff] %v2969
    %3063 = vst [vmem:[#allocation10 + $0x30] sm:$0xff] %v3053
    %3064 = vst [vmem:[#allocation10 + $0x38] sm:$0xff] %v3055
    %v3065 = vpack.c.bf16 %v2967, %v2963
    %v3066 = vpack.c.bf16 %v2969, %v2965
    %v3067 = vpack.c.bf16 %v3053, %v3049
    %v3068 = vpack.c.bf16 %v3055, %v3051
    %v3069 = vld [vmem:[#allocation8] sm:$0xff]
    %v3070 = vld [vmem:[#allocation8 + $0x8] sm:$0xff]
    %v3071 = vld [vmem:[#allocation8 + $0x10] sm:$0xff]
    %v3072 = vld [vmem:[#allocation8 + $0x18] sm:$0xff]
    %v3073 = vld [vmem:[#allocation8 + $0x20] sm:$0xff]
    %v3074 = vld [vmem:[#allocation8 + $0x28] sm:$0xff]
    %v3075 = vld [vmem:[#allocation8 + $0x30] sm:$0xff]
    %v3076 = vld [vmem:[#allocation8 + $0x38] sm:$0xff]
    %v3077 = vld [vmem:[#allocation8 + $0x40] sm:$0xff]
    %v3078 = vld [vmem:[#allocation8 + $0x48] sm:$0xff]
    %v3079 = vld [vmem:[#allocation8 + $0x50] sm:$0xff]
    %v3080 = vld [vmem:[#allocation8 + $0x58] sm:$0xff]
    %v3081 = vld [vmem:[#allocation8 + $0x60] sm:$0xff]
    %v3082 = vld [vmem:[#allocation8 + $0x68] sm:$0xff]
    %v3083 = vld [vmem:[#allocation8 + $0x70] sm:$0xff]
    %v3084 = vld [vmem:[#allocation8 + $0x78] sm:$0xff]
    %v3085 = vld [vmem:[#allocation8 + $0x80] sm:$0xff]
    %v3086 = vld [vmem:[#allocation8 + $0x88] sm:$0xff]
    %v3087 = vld [vmem:[#allocation8 + $0x90] sm:$0xff]
    %v3088 = vld [vmem:[#allocation8 + $0x98] sm:$0xff]
    %v3089 = vld [vmem:[#allocation8 + $0xa0] sm:$0xff]
    %v3090 = vld [vmem:[#allocation8 + $0xa8] sm:$0xff]
    %v3091 = vld [vmem:[#allocation8 + $0xb0] sm:$0xff]
    %v3092 = vld [vmem:[#allocation8 + $0xb8] sm:$0xff]
    %v3093 = vld [vmem:[#allocation8 + $0xc0] sm:$0xff]
    %v3094 = vld [vmem:[#allocation8 + $0xc8] sm:$0xff]
    %v3095 = vld [vmem:[#allocation8 + $0xd0] sm:$0xff]
    %v3096 = vld [vmem:[#allocation8 + $0xd8] sm:$0xff]
    %v3097 = vld [vmem:[#allocation8 + $0xe0] sm:$0xff]
    %v3098 = vld [vmem:[#allocation8 + $0xe8] sm:$0xff]
    %v3099 = vld [vmem:[#allocation8 + $0xf0] sm:$0xff]
    %v3100 = vld [vmem:[#allocation8 + $0xf8] sm:$0xff]
    %v3101 = vld [vmem:[#allocation8 + $0x100] sm:$0xff]
    %v3102 = vld [vmem:[#allocation8 + $0x108] sm:$0xff]
    %v3103 = vld [vmem:[#allocation8 + $0x110] sm:$0xff]
    %v3104 = vld [vmem:[#allocation8 + $0x118] sm:$0xff]
    %v3105 = vld [vmem:[#allocation8 + $0x120] sm:$0xff]
    %v3106 = vld [vmem:[#allocation8 + $0x128] sm:$0xff]
    %v3107 = vld [vmem:[#allocation8 + $0x130] sm:$0xff]
    %v3108 = vld [vmem:[#allocation8 + $0x138] sm:$0xff]
    %v3109 = vld [vmem:[#allocation8 + $0x140] sm:$0xff]
    %v3110 = vld [vmem:[#allocation8 + $0x148] sm:$0xff]
    %v3111 = vld [vmem:[#allocation8 + $0x150] sm:$0xff]
    %v3112 = vld [vmem:[#allocation8 + $0x158] sm:$0xff]
    %v3113 = vld [vmem:[#allocation8 + $0x160] sm:$0xff]
    %v3114 = vld [vmem:[#allocation8 + $0x168] sm:$0xff]
    %v3115 = vld [vmem:[#allocation8 + $0x170] sm:$0xff]
    %v3116 = vld [vmem:[#allocation8 + $0x178] sm:$0xff]
    %v3117 = vld [vmem:[#allocation8 + $0x180] sm:$0xff]
    %v3118 = vld [vmem:[#allocation8 + $0x188] sm:$0xff]
    %v3119 = vld [vmem:[#allocation8 + $0x190] sm:$0xff]
    %v3120 = vld [vmem:[#allocation8 + $0x198] sm:$0xff]
    %v3121 = vld [vmem:[#allocation8 + $0x1a0] sm:$0xff]
    %v3122 = vld [vmem:[#allocation8 + $0x1a8] sm:$0xff]
    %v3123 = vld [vmem:[#allocation8 + $0x1b0] sm:$0xff]
    %v3124 = vld [vmem:[#allocation8 + $0x1b8] sm:$0xff]
    %v3125 = vld [vmem:[#allocation8 + $0x1c0] sm:$0xff]
    %v3126 = vld [vmem:[#allocation8 + $0x1c8] sm:$0xff]
    %v3127 = vld [vmem:[#allocation8 + $0x1d0] sm:$0xff]
    %v3128 = vld [vmem:[#allocation8 + $0x1d8] sm:$0xff]
    %v3129 = vld [vmem:[#allocation8 + $0x1e0] sm:$0xff]
    %v3130 = vld [vmem:[#allocation8 + $0x1e8] sm:$0xff]
    %v3131 = vld [vmem:[#allocation8 + $0x1f0] sm:$0xff]
    %v3132 = vld [vmem:[#allocation8 + $0x1f8] sm:$0xff]
    %v3133 = vld [vmem:[#allocation8 + $0x200] sm:$0xff]
    %v3134 = vld [vmem:[#allocation8 + $0x208] sm:$0xff]
    %v3135 = vld [vmem:[#allocation8 + $0x210] sm:$0xff]
    %v3136 = vld [vmem:[#allocation8 + $0x218] sm:$0xff]
    %v3137 = vld [vmem:[#allocation8 + $0x220] sm:$0xff]
    %v3138 = vld [vmem:[#allocation8 + $0x228] sm:$0xff]
    %v3139 = vld [vmem:[#allocation8 + $0x230] sm:$0xff]
    %v3140 = vld [vmem:[#allocation8 + $0x238] sm:$0xff]
    %v3141 = vld [vmem:[#allocation8 + $0x240] sm:$0xff]
    %v3142 = vld [vmem:[#allocation8 + $0x248] sm:$0xff]
    %v3143 = vld [vmem:[#allocation8 + $0x250] sm:$0xff]
    %v3144 = vld [vmem:[#allocation8 + $0x258] sm:$0xff]
    %v3145 = vld [vmem:[#allocation8 + $0x260] sm:$0xff]
    %v3146 = vld [vmem:[#allocation8 + $0x268] sm:$0xff]
    %v3147 = vld [vmem:[#allocation8 + $0x270] sm:$0xff]
    %v3148 = vld [vmem:[#allocation8 + $0x278] sm:$0xff]
    %v3149 = vld [vmem:[#allocation8 + $0x280] sm:$0xff]
    %v3150 = vld [vmem:[#allocation8 + $0x288] sm:$0xff]
    %v3151 = vld [vmem:[#allocation8 + $0x290] sm:$0xff]
    %v3152 = vld [vmem:[#allocation8 + $0x298] sm:$0xff]
    %v3153 = vld [vmem:[#allocation8 + $0x2a0] sm:$0xff]
    %v3154 = vld [vmem:[#allocation8 + $0x2a8] sm:$0xff]
    %v3155 = vld [vmem:[#allocation8 + $0x2b0] sm:$0xff]
    %v3156 = vld [vmem:[#allocation8 + $0x2b8] sm:$0xff]
    %v3157 = vld [vmem:[#allocation8 + $0x2c0] sm:$0xff]
    %v3158 = vld [vmem:[#allocation8 + $0x2c8] sm:$0xff]
    %v3159 = vld [vmem:[#allocation8 + $0x2d0] sm:$0xff]
    %v3160 = vld [vmem:[#allocation8 + $0x2d8] sm:$0xff]
    %v3161 = vld [vmem:[#allocation8 + $0x2e0] sm:$0xff]
    %v3162 = vld [vmem:[#allocation8 + $0x2e8] sm:$0xff]
    %v3163 = vld [vmem:[#allocation8 + $0x2f0] sm:$0xff]
    %v3164 = vld [vmem:[#allocation8 + $0x2f8] sm:$0xff]
    %v3165 = vld [vmem:[#allocation8 + $0x300] sm:$0xff]
    %v3166 = vld [vmem:[#allocation8 + $0x308] sm:$0xff]
    %v3167 = vld [vmem:[#allocation8 + $0x310] sm:$0xff]
    %v3168 = vld [vmem:[#allocation8 + $0x318] sm:$0xff]
    %v3169 = vld [vmem:[#allocation8 + $0x320] sm:$0xff]
    %v3170 = vld [vmem:[#allocation8 + $0x328] sm:$0xff]
    %v3171 = vld [vmem:[#allocation8 + $0x330] sm:$0xff]
    %v3172 = vld [vmem:[#allocation8 + $0x338] sm:$0xff]
    %v3173 = vld [vmem:[#allocation8 + $0x340] sm:$0xff]
    %v3174 = vld [vmem:[#allocation8 + $0x348] sm:$0xff]
    %v3175 = vld [vmem:[#allocation8 + $0x350] sm:$0xff]
    %v3176 = vld [vmem:[#allocation8 + $0x358] sm:$0xff]
    %v3177 = vld [vmem:[#allocation8 + $0x360] sm:$0xff]
    %v3178 = vld [vmem:[#allocation8 + $0x368] sm:$0xff]
    %v3179 = vld [vmem:[#allocation8 + $0x370] sm:$0xff]
    %v3180 = vld [vmem:[#allocation8 + $0x378] sm:$0xff]
    %v3181 = vld [vmem:[#allocation8 + $0x380] sm:$0xff]
    %v3182 = vld [vmem:[#allocation8 + $0x388] sm:$0xff]
    %v3183 = vld [vmem:[#allocation8 + $0x390] sm:$0xff]
    %v3184 = vld [vmem:[#allocation8 + $0x398] sm:$0xff]
    %v3185 = vld [vmem:[#allocation8 + $0x3a0] sm:$0xff]
    %v3186 = vld [vmem:[#allocation8 + $0x3a8] sm:$0xff]
    %v3187 = vld [vmem:[#allocation8 + $0x3b0] sm:$0xff]
    %v3188 = vld [vmem:[#allocation8 + $0x3b8] sm:$0xff]
    %v3189 = vld [vmem:[#allocation8 + $0x3c0] sm:$0xff]
    %v3190 = vld [vmem:[#allocation8 + $0x3c8] sm:$0xff]
    %v3191 = vld [vmem:[#allocation8 + $0x3d0] sm:$0xff]
    %v3192 = vld [vmem:[#allocation8 + $0x3d8] sm:$0xff]
    %v3193 = vld [vmem:[#allocation8 + $0x3e0] sm:$0xff]
    %v3194 = vld [vmem:[#allocation8 + $0x3e8] sm:$0xff]
    %v3195 = vld [vmem:[#allocation8 + $0x3f0] sm:$0xff]
    %v3196 = vld [vmem:[#allocation8 + $0x3f8] sm:$0xff]
    %v3197 = vld [vmem:[#allocation8 + $0x400] sm:$0xff]
    %v3198 = vld [vmem:[#allocation8 + $0x408] sm:$0xff]
    %v3199 = vld [vmem:[#allocation8 + $0x410] sm:$0xff]
    %v3200 = vld [vmem:[#allocation8 + $0x418] sm:$0xff]
    %v3201 = vld [vmem:[#allocation8 + $0x420] sm:$0xff]
    %v3202 = vld [vmem:[#allocation8 + $0x428] sm:$0xff]
    %v3203 = vld [vmem:[#allocation8 + $0x430] sm:$0xff]
    %v3204 = vld [vmem:[#allocation8 + $0x438] sm:$0xff]
    %v3205 = vld [vmem:[#allocation8 + $0x440] sm:$0xff]
    %v3206 = vld [vmem:[#allocation8 + $0x448] sm:$0xff]
    %v3207 = vld [vmem:[#allocation8 + $0x450] sm:$0xff]
    %v3208 = vld [vmem:[#allocation8 + $0x458] sm:$0xff]
    %v3209 = vld [vmem:[#allocation8 + $0x460] sm:$0xff]
    %v3210 = vld [vmem:[#allocation8 + $0x468] sm:$0xff]
    %v3211 = vld [vmem:[#allocation8 + $0x470] sm:$0xff]
    %v3212 = vld [vmem:[#allocation8 + $0x478] sm:$0xff]
    %v3213 = vld [vmem:[#allocation8 + $0x480] sm:$0xff]
    %v3214 = vld [vmem:[#allocation8 + $0x488] sm:$0xff]
    %v3215 = vld [vmem:[#allocation8 + $0x490] sm:$0xff]
    %v3216 = vld [vmem:[#allocation8 + $0x498] sm:$0xff]
    %v3217 = vld [vmem:[#allocation8 + $0x4a0] sm:$0xff]
    %v3218 = vld [vmem:[#allocation8 + $0x4a8] sm:$0xff]
    %v3219 = vld [vmem:[#allocation8 + $0x4b0] sm:$0xff]
    %v3220 = vld [vmem:[#allocation8 + $0x4b8] sm:$0xff]
    %v3221 = vld [vmem:[#allocation8 + $0x4c0] sm:$0xff]
    %v3222 = vld [vmem:[#allocation8 + $0x4c8] sm:$0xff]
    %v3223 = vld [vmem:[#allocation8 + $0x4d0] sm:$0xff]
    %v3224 = vld [vmem:[#allocation8 + $0x4d8] sm:$0xff]
    %v3225 = vld [vmem:[#allocation8 + $0x4e0] sm:$0xff]
    %v3226 = vld [vmem:[#allocation8 + $0x4e8] sm:$0xff]
    %v3227 = vld [vmem:[#allocation8 + $0x4f0] sm:$0xff]
    %v3228 = vld [vmem:[#allocation8 + $0x4f8] sm:$0xff]
    %v3229 = vld [vmem:[#allocation8 + $0x500] sm:$0xff]
    %v3230 = vld [vmem:[#allocation8 + $0x508] sm:$0xff]
    %v3231 = vld [vmem:[#allocation8 + $0x510] sm:$0xff]
    %v3232 = vld [vmem:[#allocation8 + $0x518] sm:$0xff]
    %v3233 = vld [vmem:[#allocation8 + $0x520] sm:$0xff]
    %v3234 = vld [vmem:[#allocation8 + $0x528] sm:$0xff]
    %v3235 = vld [vmem:[#allocation8 + $0x530] sm:$0xff]
    %v3236 = vld [vmem:[#allocation8 + $0x538] sm:$0xff]
    %v3237 = vld [vmem:[#allocation8 + $0x540] sm:$0xff]
    %v3238 = vld [vmem:[#allocation8 + $0x548] sm:$0xff]
    %v3239 = vld [vmem:[#allocation8 + $0x550] sm:$0xff]
    %v3240 = vld [vmem:[#allocation8 + $0x558] sm:$0xff]
    %v3241 = vld [vmem:[#allocation8 + $0x560] sm:$0xff]
    %v3242 = vld [vmem:[#allocation8 + $0x568] sm:$0xff]
    %v3243 = vld [vmem:[#allocation8 + $0x570] sm:$0xff]
    %v3244 = vld [vmem:[#allocation8 + $0x578] sm:$0xff]
    %v3245 = vld [vmem:[#allocation8 + $0x580] sm:$0xff]
    %v3246 = vld [vmem:[#allocation8 + $0x588] sm:$0xff]
    %v3247 = vld [vmem:[#allocation8 + $0x590] sm:$0xff]
    %v3248 = vld [vmem:[#allocation8 + $0x598] sm:$0xff]
    %v3249 = vld [vmem:[#allocation8 + $0x5a0] sm:$0xff]
    %v3250 = vld [vmem:[#allocation8 + $0x5a8] sm:$0xff]
    %v3251 = vld [vmem:[#allocation8 + $0x5b0] sm:$0xff]
    %v3252 = vld [vmem:[#allocation8 + $0x5b8] sm:$0xff]
    %v3253 = vld [vmem:[#allocation8 + $0x5c0] sm:$0xff]
    %v3254 = vld [vmem:[#allocation8 + $0x5c8] sm:$0xff]
    %v3255 = vld [vmem:[#allocation8 + $0x5d0] sm:$0xff]
    %v3256 = vld [vmem:[#allocation8 + $0x5d8] sm:$0xff]
    %v3257 = vld [vmem:[#allocation8 + $0x5e0] sm:$0xff]
    %v3258 = vld [vmem:[#allocation8 + $0x5e8] sm:$0xff]
    %v3259 = vld [vmem:[#allocation8 + $0x5f0] sm:$0xff]
    %v3260 = vld [vmem:[#allocation8 + $0x5f8] sm:$0xff]
    %v3261 = vld [vmem:[#allocation8 + $0x600] sm:$0xff]
    %v3262 = vld [vmem:[#allocation8 + $0x608] sm:$0xff]
    %v3263 = vld [vmem:[#allocation8 + $0x610] sm:$0xff]
    %v3264 = vld [vmem:[#allocation8 + $0x618] sm:$0xff]
    %v3265 = vld [vmem:[#allocation8 + $0x620] sm:$0xff]
    %v3266 = vld [vmem:[#allocation8 + $0x628] sm:$0xff]
    %v3267 = vld [vmem:[#allocation8 + $0x630] sm:$0xff]
    %v3268 = vld [vmem:[#allocation8 + $0x638] sm:$0xff]
    %v3269 = vld [vmem:[#allocation8 + $0x640] sm:$0xff]
    %v3270 = vld [vmem:[#allocation8 + $0x648] sm:$0xff]
    %v3271 = vld [vmem:[#allocation8 + $0x650] sm:$0xff]
    %v3272 = vld [vmem:[#allocation8 + $0x658] sm:$0xff]
    %v3273 = vld [vmem:[#allocation8 + $0x660] sm:$0xff]
    %v3274 = vld [vmem:[#allocation8 + $0x668] sm:$0xff]
    %v3275 = vld [vmem:[#allocation8 + $0x670] sm:$0xff]
    %v3276 = vld [vmem:[#allocation8 + $0x678] sm:$0xff]
    %v3277 = vld [vmem:[#allocation8 + $0x680] sm:$0xff]
    %v3278 = vld [vmem:[#allocation8 + $0x688] sm:$0xff]
    %v3279 = vld [vmem:[#allocation8 + $0x690] sm:$0xff]
    %v3280 = vld [vmem:[#allocation8 + $0x698] sm:$0xff]
    %v3281 = vld [vmem:[#allocation8 + $0x6a0] sm:$0xff]
    %v3282 = vld [vmem:[#allocation8 + $0x6a8] sm:$0xff]
    %v3283 = vld [vmem:[#allocation8 + $0x6b0] sm:$0xff]
    %v3284 = vld [vmem:[#allocation8 + $0x6b8] sm:$0xff]
    %v3285 = vld [vmem:[#allocation8 + $0x6c0] sm:$0xff]
    %v3286 = vld [vmem:[#allocation8 + $0x6c8] sm:$0xff]
    %v3287 = vld [vmem:[#allocation8 + $0x6d0] sm:$0xff]
    %v3288 = vld [vmem:[#allocation8 + $0x6d8] sm:$0xff]
    %v3289 = vld [vmem:[#allocation8 + $0x6e0] sm:$0xff]
    %v3290 = vld [vmem:[#allocation8 + $0x6e8] sm:$0xff]
    %v3291 = vld [vmem:[#allocation8 + $0x6f0] sm:$0xff]
    %v3292 = vld [vmem:[#allocation8 + $0x6f8] sm:$0xff]
    %v3293 = vld [vmem:[#allocation8 + $0x700] sm:$0xff]
    %v3294 = vld [vmem:[#allocation8 + $0x708] sm:$0xff]
    %v3295 = vld [vmem:[#allocation8 + $0x710] sm:$0xff]
    %v3296 = vld [vmem:[#allocation8 + $0x718] sm:$0xff]
    %v3297 = vld [vmem:[#allocation8 + $0x720] sm:$0xff]
    %v3298 = vld [vmem:[#allocation8 + $0x728] sm:$0xff]
    %v3299 = vld [vmem:[#allocation8 + $0x730] sm:$0xff]
    %v3300 = vld [vmem:[#allocation8 + $0x738] sm:$0xff]
    %v3301 = vld [vmem:[#allocation8 + $0x740] sm:$0xff]
    %v3302 = vld [vmem:[#allocation8 + $0x748] sm:$0xff]
    %v3303 = vld [vmem:[#allocation8 + $0x750] sm:$0xff]
    %v3304 = vld [vmem:[#allocation8 + $0x758] sm:$0xff]
    %v3305 = vld [vmem:[#allocation8 + $0x760] sm:$0xff]
    %v3306 = vld [vmem:[#allocation8 + $0x768] sm:$0xff]
    %v3307 = vld [vmem:[#allocation8 + $0x770] sm:$0xff]
    %v3308 = vld [vmem:[#allocation8 + $0x778] sm:$0xff]
    %v3309 = vld [vmem:[#allocation8 + $0x780] sm:$0xff]
    %v3310 = vld [vmem:[#allocation8 + $0x788] sm:$0xff]
    %v3311 = vld [vmem:[#allocation8 + $0x790] sm:$0xff]
    %v3312 = vld [vmem:[#allocation8 + $0x798] sm:$0xff]
    %v3313 = vld [vmem:[#allocation8 + $0x7a0] sm:$0xff]
    %v3314 = vld [vmem:[#allocation8 + $0x7a8] sm:$0xff]
    %v3315 = vld [vmem:[#allocation8 + $0x7b0] sm:$0xff]
    %v3316 = vld [vmem:[#allocation8 + $0x7b8] sm:$0xff]
    %v3317 = vld [vmem:[#allocation8 + $0x7c0] sm:$0xff]
    %v3318 = vld [vmem:[#allocation8 + $0x7c8] sm:$0xff]
    %v3319 = vld [vmem:[#allocation8 + $0x7d0] sm:$0xff]
    %v3320 = vld [vmem:[#allocation8 + $0x7d8] sm:$0xff]
    %v3321 = vld [vmem:[#allocation8 + $0x7e0] sm:$0xff]
    %v3322 = vld [vmem:[#allocation8 + $0x7e8] sm:$0xff]
    %v3323 = vld [vmem:[#allocation8 + $0x7f0] sm:$0xff]
    %v3324 = vld [vmem:[#allocation8 + $0x7f8] sm:$0xff]
    %v3325 = vld [vmem:[%s8] sm:$0xff]
    %v3327 = vlaneseq
    %v3328 = vshrl.u32 %v3327, 7
    %v3329 = vsub.s32 0, %v3328
    %v3330 = vrot.slane %v3325, %v3329
    %v3331 = vlaneseq
    %v3332 = vshrl.u32 %v3331, 7
    %v3333 = vsub.s32 1, %v3332
    %v3334 = vrot.slane %v3325, %v3333
    %v3335 = vlaneseq
    %v3336 = vshrl.u32 %v3335, 7
    %v3337 = vsub.s32 2, %v3336
    %v3338 = vrot.slane %v3325, %v3337
    %v3339 = vlaneseq
    %v3340 = vshrl.u32 %v3339, 7
    %v3341 = vsub.s32 3, %v3340
    %v3342 = vrot.slane %v3325, %v3341
    %v3343 = vlaneseq
    %v3344 = vshrl.u32 %v3343, 7
    %v3345 = vsub.s32 4, %v3344
    %v3346 = vrot.slane %v3325, %v3345
    %v3347 = vlaneseq
    %v3348 = vshrl.u32 %v3347, 7
    %v3349 = vsub.s32 5, %v3348
    %v3350 = vrot.slane %v3325, %v3349
    %v3351 = vlaneseq
    %v3352 = vshrl.u32 %v3351, 7
    %v3353 = vsub.s32 6, %v3352
    %v3354 = vrot.slane %v3325, %v3353
    %v3355 = vlaneseq
    %v3356 = vshrl.u32 %v3355, 7
    %v3357 = vsub.s32 7, %v3356
    %v3358 = vrot.slane %v3325, %v3357
    %v3623 = vunpack.c.l.b16 %v3069
    %v3624 = vunpack.c.h.b16 %v3069
    %v3625 = vunpack.c.l.b16 %v3070
    %v3626 = vunpack.c.h.b16 %v3070
    %v3627 = vunpack.c.l.b16 %v3071
    %v3628 = vunpack.c.h.b16 %v3071
    %v3629 = vunpack.c.l.b16 %v3072
    %v3630 = vunpack.c.h.b16 %v3072
    %v3631 = vunpack.c.l.b16 %v3073
    %v3632 = vunpack.c.h.b16 %v3073
    %v3633 = vunpack.c.l.b16 %v3074
    %v3634 = vunpack.c.h.b16 %v3074
    %v3635 = vunpack.c.l.b16 %v3075
    %v3636 = vunpack.c.h.b16 %v3075
    %v3637 = vunpack.c.l.b16 %v3076
    %v3638 = vunpack.c.h.b16 %v3076
    %v3639 = vunpack.c.l.b16 %v3077
    %v3640 = vunpack.c.h.b16 %v3077
    %v3641 = vunpack.c.l.b16 %v3078
    %v3642 = vunpack.c.h.b16 %v3078
    %v3643 = vunpack.c.l.b16 %v3079
    %v3644 = vunpack.c.h.b16 %v3079
    %v3645 = vunpack.c.l.b16 %v3080
    %v3646 = vunpack.c.h.b16 %v3080
    %v3647 = vunpack.c.l.b16 %v3081
    %v3648 = vunpack.c.h.b16 %v3081
    %v3649 = vunpack.c.l.b16 %v3082
    %v3650 = vunpack.c.h.b16 %v3082
    %v3651 = vunpack.c.l.b16 %v3083
    %v3652 = vunpack.c.h.b16 %v3083
    %v3653 = vunpack.c.l.b16 %v3084
    %v3654 = vunpack.c.h.b16 %v3084
    %v3655 = vunpack.c.l.b16 %v3085
    %v3656 = vunpack.c.h.b16 %v3085
    %v3657 = vunpack.c.l.b16 %v3086
    %v3658 = vunpack.c.h.b16 %v3086
    %v3659 = vunpack.c.l.b16 %v3087
    %v3660 = vunpack.c.h.b16 %v3087
    %v3661 = vunpack.c.l.b16 %v3088
    %v3662 = vunpack.c.h.b16 %v3088
    %v3663 = vunpack.c.l.b16 %v3089
    %v3664 = vunpack.c.h.b16 %v3089
    %v3665 = vunpack.c.l.b16 %v3090
    %v3666 = vunpack.c.h.b16 %v3090
    %v3667 = vunpack.c.l.b16 %v3091
    %v3668 = vunpack.c.h.b16 %v3091
    %v3669 = vunpack.c.l.b16 %v3092
    %v3670 = vunpack.c.h.b16 %v3092
    %v3671 = vunpack.c.l.b16 %v3093
    %v3672 = vunpack.c.h.b16 %v3093
    %v3673 = vunpack.c.l.b16 %v3094
    %v3674 = vunpack.c.h.b16 %v3094
    %v3675 = vunpack.c.l.b16 %v3095
    %v3676 = vunpack.c.h.b16 %v3095
    %v3677 = vunpack.c.l.b16 %v3096
    %v3678 = vunpack.c.h.b16 %v3096
    %v3679 = vunpack.c.l.b16 %v3097
    %v3680 = vunpack.c.h.b16 %v3097
    %v3681 = vunpack.c.l.b16 %v3098
    %v3682 = vunpack.c.h.b16 %v3098
    %v3683 = vunpack.c.l.b16 %v3099
    %v3684 = vunpack.c.h.b16 %v3099
    %v3685 = vunpack.c.l.b16 %v3100
    %v3686 = vunpack.c.h.b16 %v3100
    %v3687 = vunpack.c.l.b16 %v3101
    %v3688 = vunpack.c.h.b16 %v3101
    %v3689 = vunpack.c.l.b16 %v3102
    %v3690 = vunpack.c.h.b16 %v3102
    %v3691 = vunpack.c.l.b16 %v3103
    %v3692 = vunpack.c.h.b16 %v3103
    %v3693 = vunpack.c.l.b16 %v3104
    %v3694 = vunpack.c.h.b16 %v3104
    %v3695 = vunpack.c.l.b16 %v3105
    %v3696 = vunpack.c.h.b16 %v3105
    %v3697 = vunpack.c.l.b16 %v3106
    %v3698 = vunpack.c.h.b16 %v3106
    %v3699 = vunpack.c.l.b16 %v3107
    %v3700 = vunpack.c.h.b16 %v3107
    %v3701 = vunpack.c.l.b16 %v3108
    %v3702 = vunpack.c.h.b16 %v3108
    %v3703 = vunpack.c.l.b16 %v3109
    %v3704 = vunpack.c.h.b16 %v3109
    %v3705 = vunpack.c.l.b16 %v3110
    %v3706 = vunpack.c.h.b16 %v3110
    %v3707 = vunpack.c.l.b16 %v3111
    %v3708 = vunpack.c.h.b16 %v3111
    %v3709 = vunpack.c.l.b16 %v3112
    %v3710 = vunpack.c.h.b16 %v3112
    %v3711 = vunpack.c.l.b16 %v3113
    %v3712 = vunpack.c.h.b16 %v3113
    %v3713 = vunpack.c.l.b16 %v3114
    %v3714 = vunpack.c.h.b16 %v3114
    %v3715 = vunpack.c.l.b16 %v3115
    %v3716 = vunpack.c.h.b16 %v3115
    %v3717 = vunpack.c.l.b16 %v3116
    %v3718 = vunpack.c.h.b16 %v3116
    %v3719 = vunpack.c.l.b16 %v3117
    %v3720 = vunpack.c.h.b16 %v3117
    %v3721 = vunpack.c.l.b16 %v3118
    %v3722 = vunpack.c.h.b16 %v3118
    %v3723 = vunpack.c.l.b16 %v3119
    %v3724 = vunpack.c.h.b16 %v3119
    %v3725 = vunpack.c.l.b16 %v3120
    %v3726 = vunpack.c.h.b16 %v3120
    %v3727 = vunpack.c.l.b16 %v3121
    %v3728 = vunpack.c.h.b16 %v3121
    %v3729 = vunpack.c.l.b16 %v3122
    %v3730 = vunpack.c.h.b16 %v3122
    %v3731 = vunpack.c.l.b16 %v3123
    %v3732 = vunpack.c.h.b16 %v3123
    %v3733 = vunpack.c.l.b16 %v3124
    %v3734 = vunpack.c.h.b16 %v3124
    %v3735 = vunpack.c.l.b16 %v3125
    %v3736 = vunpack.c.h.b16 %v3125
    %v3737 = vunpack.c.l.b16 %v3126
    %v3738 = vunpack.c.h.b16 %v3126
    %v3739 = vunpack.c.l.b16 %v3127
    %v3740 = vunpack.c.h.b16 %v3127
    %v3741 = vunpack.c.l.b16 %v3128
    %v3742 = vunpack.c.h.b16 %v3128
    %v3743 = vunpack.c.l.b16 %v3129
    %v3744 = vunpack.c.h.b16 %v3129
    %v3745 = vunpack.c.l.b16 %v3130
    %v3746 = vunpack.c.h.b16 %v3130
    %v3747 = vunpack.c.l.b16 %v3131
    %v3748 = vunpack.c.h.b16 %v3131
    %v3749 = vunpack.c.l.b16 %v3132
    %v3750 = vunpack.c.h.b16 %v3132
    %v3751 = vunpack.c.l.b16 %v3133
    %v3752 = vunpack.c.h.b16 %v3133
    %v3753 = vunpack.c.l.b16 %v3134
    %v3754 = vunpack.c.h.b16 %v3134
    %v3755 = vunpack.c.l.b16 %v3135
    %v3756 = vunpack.c.h.b16 %v3135
    %v3757 = vunpack.c.l.b16 %v3136
    %v3758 = vunpack.c.h.b16 %v3136
    %v3759 = vunpack.c.l.b16 %v3137
    %v3760 = vunpack.c.h.b16 %v3137
    %v3761 = vunpack.c.l.b16 %v3138
    %v3762 = vunpack.c.h.b16 %v3138
    %v3763 = vunpack.c.l.b16 %v3139
    %v3764 = vunpack.c.h.b16 %v3139
    %v3765 = vunpack.c.l.b16 %v3140
    %v3766 = vunpack.c.h.b16 %v3140
    %v3767 = vunpack.c.l.b16 %v3141
    %v3768 = vunpack.c.h.b16 %v3141
    %v3769 = vunpack.c.l.b16 %v3142
    %v3770 = vunpack.c.h.b16 %v3142
    %v3771 = vunpack.c.l.b16 %v3143
    %v3772 = vunpack.c.h.b16 %v3143
    %v3773 = vunpack.c.l.b16 %v3144
    %v3774 = vunpack.c.h.b16 %v3144
    %v3775 = vunpack.c.l.b16 %v3145
    %v3776 = vunpack.c.h.b16 %v3145
    %v3777 = vunpack.c.l.b16 %v3146
    %v3778 = vunpack.c.h.b16 %v3146
    %v3779 = vunpack.c.l.b16 %v3147
    %v3780 = vunpack.c.h.b16 %v3147
    %v3781 = vunpack.c.l.b16 %v3148
    %v3782 = vunpack.c.h.b16 %v3148
    %v3783 = vunpack.c.l.b16 %v3149
    %v3784 = vunpack.c.h.b16 %v3149
    %v3785 = vunpack.c.l.b16 %v3150
    %v3786 = vunpack.c.h.b16 %v3150
    %v3787 = vunpack.c.l.b16 %v3151
    %v3788 = vunpack.c.h.b16 %v3151
    %v3789 = vunpack.c.l.b16 %v3152
    %v3790 = vunpack.c.h.b16 %v3152
    %v3791 = vunpack.c.l.b16 %v3153
    %v3792 = vunpack.c.h.b16 %v3153
    %v3793 = vunpack.c.l.b16 %v3154
    %v3794 = vunpack.c.h.b16 %v3154
    %v3795 = vunpack.c.l.b16 %v3155
    %v3796 = vunpack.c.h.b16 %v3155
    %v3797 = vunpack.c.l.b16 %v3156
    %v3798 = vunpack.c.h.b16 %v3156
    %v3799 = vunpack.c.l.b16 %v3157
    %v3800 = vunpack.c.h.b16 %v3157
    %v3801 = vunpack.c.l.b16 %v3158
    %v3802 = vunpack.c.h.b16 %v3158
    %v3803 = vunpack.c.l.b16 %v3159
    %v3804 = vunpack.c.h.b16 %v3159
    %v3805 = vunpack.c.l.b16 %v3160
    %v3806 = vunpack.c.h.b16 %v3160
    %v3807 = vunpack.c.l.b16 %v3161
    %v3808 = vunpack.c.h.b16 %v3161
    %v3809 = vunpack.c.l.b16 %v3162
    %v3810 = vunpack.c.h.b16 %v3162
    %v3811 = vunpack.c.l.b16 %v3163
    %v3812 = vunpack.c.h.b16 %v3163
    %v3813 = vunpack.c.l.b16 %v3164
    %v3814 = vunpack.c.h.b16 %v3164
    %v3815 = vunpack.c.l.b16 %v3165
    %v3816 = vunpack.c.h.b16 %v3165
    %v3817 = vunpack.c.l.b16 %v3166
    %v3818 = vunpack.c.h.b16 %v3166
    %v3819 = vunpack.c.l.b16 %v3167
    %v3820 = vunpack.c.h.b16 %v3167
    %v3821 = vunpack.c.l.b16 %v3168
    %v3822 = vunpack.c.h.b16 %v3168
    %v3823 = vunpack.c.l.b16 %v3169
    %v3824 = vunpack.c.h.b16 %v3169
    %v3825 = vunpack.c.l.b16 %v3170
    %v3826 = vunpack.c.h.b16 %v3170
    %v3827 = vunpack.c.l.b16 %v3171
    %v3828 = vunpack.c.h.b16 %v3171
    %v3829 = vunpack.c.l.b16 %v3172
    %v3830 = vunpack.c.h.b16 %v3172
    %v3831 = vunpack.c.l.b16 %v3173
    %v3832 = vunpack.c.h.b16 %v3173
    %v3833 = vunpack.c.l.b16 %v3174
    %v3834 = vunpack.c.h.b16 %v3174
    %v3835 = vunpack.c.l.b16 %v3175
    %v3836 = vunpack.c.h.b16 %v3175
    %v3837 = vunpack.c.l.b16 %v3176
    %v3838 = vunpack.c.h.b16 %v3176
    %v3839 = vunpack.c.l.b16 %v3177
    %v3840 = vunpack.c.h.b16 %v3177
    %v3841 = vunpack.c.l.b16 %v3178
    %v3842 = vunpack.c.h.b16 %v3178
    %v3843 = vunpack.c.l.b16 %v3179
    %v3844 = vunpack.c.h.b16 %v3179
    %v3845 = vunpack.c.l.b16 %v3180
    %v3846 = vunpack.c.h.b16 %v3180
    %v3847 = vunpack.c.l.b16 %v3181
    %v3848 = vunpack.c.h.b16 %v3181
    %v3849 = vunpack.c.l.b16 %v3182
    %v3850 = vunpack.c.h.b16 %v3182
    %v3851 = vunpack.c.l.b16 %v3183
    %v3852 = vunpack.c.h.b16 %v3183
    %v3853 = vunpack.c.l.b16 %v3184
    %v3854 = vunpack.c.h.b16 %v3184
    %v3855 = vunpack.c.l.b16 %v3185
    %v3856 = vunpack.c.h.b16 %v3185
    %v3857 = vunpack.c.l.b16 %v3186
    %v3858 = vunpack.c.h.b16 %v3186
    %v3859 = vunpack.c.l.b16 %v3187
    %v3860 = vunpack.c.h.b16 %v3187
    %v3861 = vunpack.c.l.b16 %v3188
    %v3862 = vunpack.c.h.b16 %v3188
    %v3863 = vunpack.c.l.b16 %v3189
    %v3864 = vunpack.c.h.b16 %v3189
    %v3865 = vunpack.c.l.b16 %v3190
    %v3866 = vunpack.c.h.b16 %v3190
    %v3867 = vunpack.c.l.b16 %v3191
    %v3868 = vunpack.c.h.b16 %v3191
    %v3869 = vunpack.c.l.b16 %v3192
    %v3870 = vunpack.c.h.b16 %v3192
    %v3871 = vunpack.c.l.b16 %v3193
    %v3872 = vunpack.c.h.b16 %v3193
    %v3873 = vunpack.c.l.b16 %v3194
    %v3874 = vunpack.c.h.b16 %v3194
    %v3875 = vunpack.c.l.b16 %v3195
    %v3876 = vunpack.c.h.b16 %v3195
    %v3877 = vunpack.c.l.b16 %v3196
    %v3878 = vunpack.c.h.b16 %v3196
    %v3879 = vunpack.c.l.b16 %v3197
    %v3880 = vunpack.c.h.b16 %v3197
    %v3881 = vunpack.c.l.b16 %v3198
    %v3882 = vunpack.c.h.b16 %v3198
    %v3883 = vunpack.c.l.b16 %v3199
    %v3884 = vunpack.c.h.b16 %v3199
    %v3885 = vunpack.c.l.b16 %v3200
    %v3886 = vunpack.c.h.b16 %v3200
    %v3887 = vunpack.c.l.b16 %v3201
    %v3888 = vunpack.c.h.b16 %v3201
    %v3889 = vunpack.c.l.b16 %v3202
    %v3890 = vunpack.c.h.b16 %v3202
    %v3891 = vunpack.c.l.b16 %v3203
    %v3892 = vunpack.c.h.b16 %v3203
    %v3893 = vunpack.c.l.b16 %v3204
    %v3894 = vunpack.c.h.b16 %v3204
    %v3895 = vunpack.c.l.b16 %v3205
    %v3896 = vunpack.c.h.b16 %v3205
    %v3897 = vunpack.c.l.b16 %v3206
    %v3898 = vunpack.c.h.b16 %v3206
    %v3899 = vunpack.c.l.b16 %v3207
    %v3900 = vunpack.c.h.b16 %v3207
    %v3901 = vunpack.c.l.b16 %v3208
    %v3902 = vunpack.c.h.b16 %v3208
    %v3903 = vunpack.c.l.b16 %v3209
    %v3904 = vunpack.c.h.b16 %v3209
    %v3905 = vunpack.c.l.b16 %v3210
    %v3906 = vunpack.c.h.b16 %v3210
    %v3907 = vunpack.c.l.b16 %v3211
    %v3908 = vunpack.c.h.b16 %v3211
    %v3909 = vunpack.c.l.b16 %v3212
    %v3910 = vunpack.c.h.b16 %v3212
    %v3911 = vunpack.c.l.b16 %v3213
    %v3912 = vunpack.c.h.b16 %v3213
    %v3913 = vunpack.c.l.b16 %v3214
    %v3914 = vunpack.c.h.b16 %v3214
    %v3915 = vunpack.c.l.b16 %v3215
    %v3916 = vunpack.c.h.b16 %v3215
    %v3917 = vunpack.c.l.b16 %v3216
    %v3918 = vunpack.c.h.b16 %v3216
    %v3919 = vunpack.c.l.b16 %v3217
    %v3920 = vunpack.c.h.b16 %v3217
    %v3921 = vunpack.c.l.b16 %v3218
    %v3922 = vunpack.c.h.b16 %v3218
    %v3923 = vunpack.c.l.b16 %v3219
    %v3924 = vunpack.c.h.b16 %v3219
    %v3925 = vunpack.c.l.b16 %v3220
    %v3926 = vunpack.c.h.b16 %v3220
    %v3927 = vunpack.c.l.b16 %v3221
    %v3928 = vunpack.c.h.b16 %v3221
    %v3929 = vunpack.c.l.b16 %v3222
    %v3930 = vunpack.c.h.b16 %v3222
    %v3931 = vunpack.c.l.b16 %v3223
    %v3932 = vunpack.c.h.b16 %v3223
    %v3933 = vunpack.c.l.b16 %v3224
    %v3934 = vunpack.c.h.b16 %v3224
    %v3935 = vunpack.c.l.b16 %v3225
    %v3936 = vunpack.c.h.b16 %v3225
    %v3937 = vunpack.c.l.b16 %v3226
    %v3938 = vunpack.c.h.b16 %v3226
    %v3939 = vunpack.c.l.b16 %v3227
    %v3940 = vunpack.c.h.b16 %v3227
    %v3941 = vunpack.c.l.b16 %v3228
    %v3942 = vunpack.c.h.b16 %v3228
    %v3943 = vunpack.c.l.b16 %v3229
    %v3944 = vunpack.c.h.b16 %v3229
    %v3945 = vunpack.c.l.b16 %v3230
    %v3946 = vunpack.c.h.b16 %v3230
    %v3947 = vunpack.c.l.b16 %v3231
    %v3948 = vunpack.c.h.b16 %v3231
    %v3949 = vunpack.c.l.b16 %v3232
    %v3950 = vunpack.c.h.b16 %v3232
    %v3951 = vunpack.c.l.b16 %v3233
    %v3952 = vunpack.c.h.b16 %v3233
    %v3953 = vunpack.c.l.b16 %v3234
    %v3954 = vunpack.c.h.b16 %v3234
    %v3955 = vunpack.c.l.b16 %v3235
    %v3956 = vunpack.c.h.b16 %v3235
    %v3957 = vunpack.c.l.b16 %v3236
    %v3958 = vunpack.c.h.b16 %v3236
    %v3959 = vunpack.c.l.b16 %v3237
    %v3960 = vunpack.c.h.b16 %v3237
    %v3961 = vunpack.c.l.b16 %v3238
    %v3962 = vunpack.c.h.b16 %v3238
    %v3963 = vunpack.c.l.b16 %v3239
    %v3964 = vunpack.c.h.b16 %v3239
    %v3965 = vunpack.c.l.b16 %v3240
    %v3966 = vunpack.c.h.b16 %v3240
    %v3967 = vunpack.c.l.b16 %v3241
    %v3968 = vunpack.c.h.b16 %v3241
    %v3969 = vunpack.c.l.b16 %v3242
    %v3970 = vunpack.c.h.b16 %v3242
    %v3971 = vunpack.c.l.b16 %v3243
    %v3972 = vunpack.c.h.b16 %v3243
    %v3973 = vunpack.c.l.b16 %v3244
    %v3974 = vunpack.c.h.b16 %v3244
    %v3975 = vunpack.c.l.b16 %v3245
    %v3976 = vunpack.c.h.b16 %v3245
    %v3977 = vunpack.c.l.b16 %v3246
    %v3978 = vunpack.c.h.b16 %v3246
    %v3979 = vunpack.c.l.b16 %v3247
    %v3980 = vunpack.c.h.b16 %v3247
    %v3981 = vunpack.c.l.b16 %v3248
    %v3982 = vunpack.c.h.b16 %v3248
    %v3983 = vunpack.c.l.b16 %v3249
    %v3984 = vunpack.c.h.b16 %v3249
    %v3985 = vunpack.c.l.b16 %v3250
    %v3986 = vunpack.c.h.b16 %v3250
    %v3987 = vunpack.c.l.b16 %v3251
    %v3988 = vunpack.c.h.b16 %v3251
    %v3989 = vunpack.c.l.b16 %v3252
    %v3990 = vunpack.c.h.b16 %v3252
    %v3991 = vunpack.c.l.b16 %v3253
    %v3992 = vunpack.c.h.b16 %v3253
    %v3993 = vunpack.c.l.b16 %v3254
    %v3994 = vunpack.c.h.b16 %v3254
    %v3995 = vunpack.c.l.b16 %v3255
    %v3996 = vunpack.c.h.b16 %v3255
    %v3997 = vunpack.c.l.b16 %v3256
    %v3998 = vunpack.c.h.b16 %v3256
    %v3999 = vunpack.c.l.b16 %v3257
    %v4000 = vunpack.c.h.b16 %v3257
    %v4001 = vunpack.c.l.b16 %v3258
    %v4002 = vunpack.c.h.b16 %v3258
    %v4003 = vunpack.c.l.b16 %v3259
    %v4004 = vunpack.c.h.b16 %v3259
    %v4005 = vunpack.c.l.b16 %v3260
    %v4006 = vunpack.c.h.b16 %v3260
    %v4007 = vunpack.c.l.b16 %v3261
    %v4008 = vunpack.c.h.b16 %v3261
    %v4009 = vunpack.c.l.b16 %v3262
    %v4010 = vunpack.c.h.b16 %v3262
    %v4011 = vunpack.c.l.b16 %v3263
    %v4012 = vunpack.c.h.b16 %v3263
    %v4013 = vunpack.c.l.b16 %v3264
    %v4014 = vunpack.c.h.b16 %v3264
    %v4015 = vunpack.c.l.b16 %v3265
    %v4016 = vunpack.c.h.b16 %v3265
    %v4017 = vunpack.c.l.b16 %v3266
    %v4018 = vunpack.c.h.b16 %v3266
    %v4019 = vunpack.c.l.b16 %v3267
    %v4020 = vunpack.c.h.b16 %v3267
    %v4021 = vunpack.c.l.b16 %v3268
    %v4022 = vunpack.c.h.b16 %v3268
    %v4023 = vunpack.c.l.b16 %v3269
    %v4024 = vunpack.c.h.b16 %v3269
    %v4025 = vunpack.c.l.b16 %v3270
    %v4026 = vunpack.c.h.b16 %v3270
    %v4027 = vunpack.c.l.b16 %v3271
    %v4028 = vunpack.c.h.b16 %v3271
    %v4029 = vunpack.c.l.b16 %v3272
    %v4030 = vunpack.c.h.b16 %v3272
    %v4031 = vunpack.c.l.b16 %v3273
    %v4032 = vunpack.c.h.b16 %v3273
    %v4033 = vunpack.c.l.b16 %v3274
    %v4034 = vunpack.c.h.b16 %v3274
    %v4035 = vunpack.c.l.b16 %v3275
    %v4036 = vunpack.c.h.b16 %v3275
    %v4037 = vunpack.c.l.b16 %v3276
    %v4038 = vunpack.c.h.b16 %v3276
    %v4039 = vunpack.c.l.b16 %v3277
    %v4040 = vunpack.c.h.b16 %v3277
    %v4041 = vunpack.c.l.b16 %v3278
    %v4042 = vunpack.c.h.b16 %v3278
    %v4043 = vunpack.c.l.b16 %v3279
    %v4044 = vunpack.c.h.b16 %v3279
    %v4045 = vunpack.c.l.b16 %v3280
    %v4046 = vunpack.c.h.b16 %v3280
    %v4047 = vunpack.c.l.b16 %v3281
    %v4048 = vunpack.c.h.b16 %v3281
    %v4049 = vunpack.c.l.b16 %v3282
    %v4050 = vunpack.c.h.b16 %v3282
    %v4051 = vunpack.c.l.b16 %v3283
    %v4052 = vunpack.c.h.b16 %v3283
    %v4053 = vunpack.c.l.b16 %v3284
    %v4054 = vunpack.c.h.b16 %v3284
    %v4055 = vunpack.c.l.b16 %v3285
    %v4056 = vunpack.c.h.b16 %v3285
    %v4057 = vunpack.c.l.b16 %v3286
    %v4058 = vunpack.c.h.b16 %v3286
    %v4059 = vunpack.c.l.b16 %v3287
    %v4060 = vunpack.c.h.b16 %v3287
    %v4061 = vunpack.c.l.b16 %v3288
    %v4062 = vunpack.c.h.b16 %v3288
    %v4063 = vunpack.c.l.b16 %v3289
    %v4064 = vunpack.c.h.b16 %v3289
    %v4065 = vunpack.c.l.b16 %v3290
    %v4066 = vunpack.c.h.b16 %v3290
    %v4067 = vunpack.c.l.b16 %v3291
    %v4068 = vunpack.c.h.b16 %v3291
    %v4069 = vunpack.c.l.b16 %v3292
    %v4070 = vunpack.c.h.b16 %v3292
    %v4071 = vunpack.c.l.b16 %v3293
    %v4072 = vunpack.c.h.b16 %v3293
    %v4073 = vunpack.c.l.b16 %v3294
    %v4074 = vunpack.c.h.b16 %v3294
    %v4075 = vunpack.c.l.b16 %v3295
    %v4076 = vunpack.c.h.b16 %v3295
    %v4077 = vunpack.c.l.b16 %v3296
    %v4078 = vunpack.c.h.b16 %v3296
    %v4079 = vunpack.c.l.b16 %v3297
    %v4080 = vunpack.c.h.b16 %v3297
    %v4081 = vunpack.c.l.b16 %v3298
    %v4082 = vunpack.c.h.b16 %v3298
    %v4083 = vunpack.c.l.b16 %v3299
    %v4084 = vunpack.c.h.b16 %v3299
    %v4085 = vunpack.c.l.b16 %v3300
    %v4086 = vunpack.c.h.b16 %v3300
    %v4087 = vunpack.c.l.b16 %v3301
    %v4088 = vunpack.c.h.b16 %v3301
    %v4089 = vunpack.c.l.b16 %v3302
    %v4090 = vunpack.c.h.b16 %v3302
    %v4091 = vunpack.c.l.b16 %v3303
    %v4092 = vunpack.c.h.b16 %v3303
    %v4093 = vunpack.c.l.b16 %v3304
    %v4094 = vunpack.c.h.b16 %v3304
    %v4095 = vunpack.c.l.b16 %v3305
    %v4096 = vunpack.c.h.b16 %v3305
    %v4097 = vunpack.c.l.b16 %v3306
    %v4098 = vunpack.c.h.b16 %v3306
    %v4099 = vunpack.c.l.b16 %v3307
    %v4100 = vunpack.c.h.b16 %v3307
    %v4101 = vunpack.c.l.b16 %v3308
    %v4102 = vunpack.c.h.b16 %v3308
    %v4103 = vunpack.c.l.b16 %v3309
    %v4104 = vunpack.c.h.b16 %v3309
    %v4105 = vunpack.c.l.b16 %v3310
    %v4106 = vunpack.c.h.b16 %v3310
    %v4107 = vunpack.c.l.b16 %v3311
    %v4108 = vunpack.c.h.b16 %v3311
    %v4109 = vunpack.c.l.b16 %v3312
    %v4110 = vunpack.c.h.b16 %v3312
    %v4111 = vunpack.c.l.b16 %v3313
    %v4112 = vunpack.c.h.b16 %v3313
    %v4113 = vunpack.c.l.b16 %v3314
    %v4114 = vunpack.c.h.b16 %v3314
    %v4115 = vunpack.c.l.b16 %v3315
    %v4116 = vunpack.c.h.b16 %v3315
    %v4117 = vunpack.c.l.b16 %v3316
    %v4118 = vunpack.c.h.b16 %v3316
    %v4119 = vunpack.c.l.b16 %v3317
    %v4120 = vunpack.c.h.b16 %v3317
    %v4121 = vunpack.c.l.b16 %v3318
    %v4122 = vunpack.c.h.b16 %v3318
    %v4123 = vunpack.c.l.b16 %v3319
    %v4124 = vunpack.c.h.b16 %v3319
    %v4125 = vunpack.c.l.b16 %v3320
    %v4126 = vunpack.c.h.b16 %v3320
    %v4127 = vunpack.c.l.b16 %v3321
    %v4128 = vunpack.c.h.b16 %v3321
    %v4129 = vunpack.c.l.b16 %v3322
    %v4130 = vunpack.c.h.b16 %v3322
    %v4131 = vunpack.c.l.b16 %v3323
    %v4132 = vunpack.c.h.b16 %v3323
    %v4133 = vunpack.c.l.b16 %v3324
    %v4134 = vunpack.c.h.b16 %v3324
    %v4135 = vpack.c.b16 %v3631, %v3623
    %v4136 = vpack.c.b16 %v3632, %v3624
    %v4137 = vpack.c.b16 %v3633, %v3625
    %v4138 = vpack.c.b16 %v3634, %v3626
    %v4139 = vpack.c.b16 %v3635, %v3627
    %v4140 = vpack.c.b16 %v3636, %v3628
    %v4141 = vpack.c.b16 %v3637, %v3629
    %v4142 = vpack.c.b16 %v3638, %v3630
    %v4143 = vpack.c.b16 %v3647, %v3639
    %v4144 = vpack.c.b16 %v3648, %v3640
    %v4145 = vpack.c.b16 %v3649, %v3641
    %v4146 = vpack.c.b16 %v3650, %v3642
    %v4147 = vpack.c.b16 %v3651, %v3643
    %v4148 = vpack.c.b16 %v3652, %v3644
    %v4149 = vpack.c.b16 %v3653, %v3645
    %v4150 = vpack.c.b16 %v3654, %v3646
    %v4151 = vpack.c.b16 %v3663, %v3655
    %v4152 = vpack.c.b16 %v3664, %v3656
    %v4153 = vpack.c.b16 %v3665, %v3657
    %v4154 = vpack.c.b16 %v3666, %v3658
    %v4155 = vpack.c.b16 %v3667, %v3659
    %v4156 = vpack.c.b16 %v3668, %v3660
    %v4157 = vpack.c.b16 %v3669, %v3661
    %v4158 = vpack.c.b16 %v3670, %v3662
    %v4159 = vpack.c.b16 %v3679, %v3671
    %v4160 = vpack.c.b16 %v3680, %v3672
    %v4161 = vpack.c.b16 %v3681, %v3673
    %v4162 = vpack.c.b16 %v3682, %v3674
    %v4163 = vpack.c.b16 %v3683, %v3675
    %v4164 = vpack.c.b16 %v3684, %v3676
    %v4165 = vpack.c.b16 %v3685, %v3677
    %v4166 = vpack.c.b16 %v3686, %v3678
    %v4167 = vpack.c.b16 %v3695, %v3687
    %v4168 = vpack.c.b16 %v3696, %v3688
    %v4169 = vpack.c.b16 %v3697, %v3689
    %v4170 = vpack.c.b16 %v3698, %v3690
    %v4171 = vpack.c.b16 %v3699, %v3691
    %v4172 = vpack.c.b16 %v3700, %v3692
    %v4173 = vpack.c.b16 %v3701, %v3693
    %v4174 = vpack.c.b16 %v3702, %v3694
    %v4175 = vpack.c.b16 %v3711, %v3703
    %v4176 = vpack.c.b16 %v3712, %v3704
    %v4177 = vpack.c.b16 %v3713, %v3705
    %v4178 = vpack.c.b16 %v3714, %v3706
    %v4179 = vpack.c.b16 %v3715, %v3707
    %v4180 = vpack.c.b16 %v3716, %v3708
    %v4181 = vpack.c.b16 %v3717, %v3709
    %v4182 = vpack.c.b16 %v3718, %v3710
    %v4183 = vpack.c.b16 %v3727, %v3719
    %v4184 = vpack.c.b16 %v3728, %v3720
    %v4185 = vpack.c.b16 %v3729, %v3721
    %v4186 = vpack.c.b16 %v3730, %v3722
    %v4187 = vpack.c.b16 %v3731, %v3723
    %v4188 = vpack.c.b16 %v3732, %v3724
    %v4189 = vpack.c.b16 %v3733, %v3725
    %v4190 = vpack.c.b16 %v3734, %v3726
    %v4191 = vpack.c.b16 %v3743, %v3735
    %v4192 = vpack.c.b16 %v3744, %v3736
    %v4193 = vpack.c.b16 %v3745, %v3737
    %v4194 = vpack.c.b16 %v3746, %v3738
    %v4195 = vpack.c.b16 %v3747, %v3739
    %v4196 = vpack.c.b16 %v3748, %v3740
    %v4197 = vpack.c.b16 %v3749, %v3741
    %v4198 = vpack.c.b16 %v3750, %v3742
    %v4199 = vpack.c.b16 %v3759, %v3751
    %v4200 = vpack.c.b16 %v3760, %v3752
    %v4201 = vpack.c.b16 %v3761, %v3753
    %v4202 = vpack.c.b16 %v3762, %v3754
    %v4203 = vpack.c.b16 %v3763, %v3755
    %v4204 = vpack.c.b16 %v3764, %v3756
    %v4205 = vpack.c.b16 %v3765, %v3757
    %v4206 = vpack.c.b16 %v3766, %v3758
    %v4207 = vpack.c.b16 %v3775, %v3767
    %v4208 = vpack.c.b16 %v3776, %v3768
    %v4209 = vpack.c.b16 %v3777, %v3769
    %v4210 = vpack.c.b16 %v3778, %v3770
    %v4211 = vpack.c.b16 %v3779, %v3771
    %v4212 = vpack.c.b16 %v3780, %v3772
    %v4213 = vpack.c.b16 %v3781, %v3773
    %v4214 = vpack.c.b16 %v3782, %v3774
    %v4215 = vpack.c.b16 %v3791, %v3783
    %v4216 = vpack.c.b16 %v3792, %v3784
    %v4217 = vpack.c.b16 %v3793, %v3785
    %v4218 = vpack.c.b16 %v3794, %v3786
    %v4219 = vpack.c.b16 %v3795, %v3787
    %v4220 = vpack.c.b16 %v3796, %v3788
    %v4221 = vpack.c.b16 %v3797, %v3789
    %v4222 = vpack.c.b16 %v3798, %v3790
    %v4223 = vpack.c.b16 %v3807, %v3799
    %v4224 = vpack.c.b16 %v3808, %v3800
    %v4225 = vpack.c.b16 %v3809, %v3801
    %v4226 = vpack.c.b16 %v3810, %v3802
    %v4227 = vpack.c.b16 %v3811, %v3803
    %v4228 = vpack.c.b16 %v3812, %v3804
    %v4229 = vpack.c.b16 %v3813, %v3805
    %v4230 = vpack.c.b16 %v3814, %v3806
    %v4231 = vpack.c.b16 %v3823, %v3815
    %v4232 = vpack.c.b16 %v3824, %v3816
    %v4233 = vpack.c.b16 %v3825, %v3817
    %v4234 = vpack.c.b16 %v3826, %v3818
    %v4235 = vpack.c.b16 %v3827, %v3819
    %v4236 = vpack.c.b16 %v3828, %v3820
    %v4237 = vpack.c.b16 %v3829, %v3821
    %v4238 = vpack.c.b16 %v3830, %v3822
    %v4239 = vpack.c.b16 %v3839, %v3831
    %v4240 = vpack.c.b16 %v3840, %v3832
    %v4241 = vpack.c.b16 %v3841, %v3833
    %v4242 = vpack.c.b16 %v3842, %v3834
    %v4243 = vpack.c.b16 %v3843, %v3835
    %v4244 = vpack.c.b16 %v3844, %v3836
    %v4245 = vpack.c.b16 %v3845, %v3837
    %v4246 = vpack.c.b16 %v3846, %v3838
    %v4247 = vpack.c.b16 %v3855, %v3847
    %v4248 = vpack.c.b16 %v3856, %v3848
    %v4249 = vpack.c.b16 %v3857, %v3849
    %v4250 = vpack.c.b16 %v3858, %v3850
    %v4251 = vpack.c.b16 %v3859, %v3851
    %v4252 = vpack.c.b16 %v3860, %v3852
    %v4253 = vpack.c.b16 %v3861, %v3853
    %v4254 = vpack.c.b16 %v3862, %v3854
    %v4255 = vpack.c.b16 %v3871, %v3863
    %v4256 = vpack.c.b16 %v3872, %v3864
    %v4257 = vpack.c.b16 %v3873, %v3865
    %v4258 = vpack.c.b16 %v3874, %v3866
    %v4259 = vpack.c.b16 %v3875, %v3867
    %v4260 = vpack.c.b16 %v3876, %v3868
    %v4261 = vpack.c.b16 %v3877, %v3869
    %v4262 = vpack.c.b16 %v3878, %v3870
    %v4263 = vpack.c.b16 %v3887, %v3879
    %v4264 = vpack.c.b16 %v3888, %v3880
    %v4265 = vpack.c.b16 %v3889, %v3881
    %v4266 = vpack.c.b16 %v3890, %v3882
    %v4267 = vpack.c.b16 %v3891, %v3883
    %v4268 = vpack.c.b16 %v3892, %v3884
    %v4269 = vpack.c.b16 %v3893, %v3885
    %v4270 = vpack.c.b16 %v3894, %v3886
    %v4271 = vpack.c.b16 %v3903, %v3895
    %v4272 = vpack.c.b16 %v3904, %v3896
    %v4273 = vpack.c.b16 %v3905, %v3897
    %v4274 = vpack.c.b16 %v3906, %v3898
    %v4275 = vpack.c.b16 %v3907, %v3899
    %v4276 = vpack.c.b16 %v3908, %v3900
    %v4277 = vpack.c.b16 %v3909, %v3901
    %v4278 = vpack.c.b16 %v3910, %v3902
    %v4279 = vpack.c.b16 %v3919, %v3911
    %v4280 = vpack.c.b16 %v3920, %v3912
    %v4281 = vpack.c.b16 %v3921, %v3913
    %v4282 = vpack.c.b16 %v3922, %v3914
    %v4283 = vpack.c.b16 %v3923, %v3915
    %v4284 = vpack.c.b16 %v3924, %v3916
    %v4285 = vpack.c.b16 %v3925, %v3917
    %v4286 = vpack.c.b16 %v3926, %v3918
    %v4287 = vpack.c.b16 %v3935, %v3927
    %v4288 = vpack.c.b16 %v3936, %v3928
    %v4289 = vpack.c.b16 %v3937, %v3929
    %v4290 = vpack.c.b16 %v3938, %v3930
    %v4291 = vpack.c.b16 %v3939, %v3931
    %v4292 = vpack.c.b16 %v3940, %v3932
    %v4293 = vpack.c.b16 %v3941, %v3933
    %v4294 = vpack.c.b16 %v3942, %v3934
    %v4295 = vpack.c.b16 %v3951, %v3943
    %v4296 = vpack.c.b16 %v3952, %v3944
    %v4297 = vpack.c.b16 %v3953, %v3945
    %v4298 = vpack.c.b16 %v3954, %v3946
    %v4299 = vpack.c.b16 %v3955, %v3947
    %v4300 = vpack.c.b16 %v3956, %v3948
    %v4301 = vpack.c.b16 %v3957, %v3949
    %v4302 = vpack.c.b16 %v3958, %v3950
    %v4303 = vpack.c.b16 %v3967, %v3959
    %v4304 = vpack.c.b16 %v3968, %v3960
    %v4305 = vpack.c.b16 %v3969, %v3961
    %v4306 = vpack.c.b16 %v3970, %v3962
    %v4307 = vpack.c.b16 %v3971, %v3963
    %v4308 = vpack.c.b16 %v3972, %v3964
    %v4309 = vpack.c.b16 %v3973, %v3965
    %v4310 = vpack.c.b16 %v3974, %v3966
    %v4311 = vpack.c.b16 %v3983, %v3975
    %v4312 = vpack.c.b16 %v3984, %v3976
    %v4313 = vpack.c.b16 %v3985, %v3977
    %v4314 = vpack.c.b16 %v3986, %v3978
    %v4315 = vpack.c.b16 %v3987, %v3979
    %v4316 = vpack.c.b16 %v3988, %v3980
    %v4317 = vpack.c.b16 %v3989, %v3981
    %v4318 = vpack.c.b16 %v3990, %v3982
    %v4319 = vpack.c.b16 %v3999, %v3991
    %v4320 = vpack.c.b16 %v4000, %v3992
    %v4321 = vpack.c.b16 %v4001, %v3993
    %v4322 = vpack.c.b16 %v4002, %v3994
    %v4323 = vpack.c.b16 %v4003, %v3995
    %v4324 = vpack.c.b16 %v4004, %v3996
    %v4325 = vpack.c.b16 %v4005, %v3997
    %v4326 = vpack.c.b16 %v4006, %v3998
    %v4327 = vpack.c.b16 %v4015, %v4007
    %v4328 = vpack.c.b16 %v4016, %v4008
    %v4329 = vpack.c.b16 %v4017, %v4009
    %v4330 = vpack.c.b16 %v4018, %v4010
    %v4331 = vpack.c.b16 %v4019, %v4011
    %v4332 = vpack.c.b16 %v4020, %v4012
    %v4333 = vpack.c.b16 %v4021, %v4013
    %v4334 = vpack.c.b16 %v4022, %v4014
    %v4335 = vpack.c.b16 %v4031, %v4023
    %v4336 = vpack.c.b16 %v4032, %v4024
    %v4337 = vpack.c.b16 %v4033, %v4025
    %v4338 = vpack.c.b16 %v4034, %v4026
    %v4339 = vpack.c.b16 %v4035, %v4027
    %v4340 = vpack.c.b16 %v4036, %v4028
    %v4341 = vpack.c.b16 %v4037, %v4029
    %v4342 = vpack.c.b16 %v4038, %v4030
    %v4343 = vpack.c.b16 %v4047, %v4039
    %v4344 = vpack.c.b16 %v4048, %v4040
    %v4345 = vpack.c.b16 %v4049, %v4041
    %v4346 = vpack.c.b16 %v4050, %v4042
    %v4347 = vpack.c.b16 %v4051, %v4043
    %v4348 = vpack.c.b16 %v4052, %v4044
    %v4349 = vpack.c.b16 %v4053, %v4045
    %v4350 = vpack.c.b16 %v4054, %v4046
    %v4351 = vpack.c.b16 %v4063, %v4055
    %v4352 = vpack.c.b16 %v4064, %v4056
    %v4353 = vpack.c.b16 %v4065, %v4057
    %v4354 = vpack.c.b16 %v4066, %v4058
    %v4355 = vpack.c.b16 %v4067, %v4059
    %v4356 = vpack.c.b16 %v4068, %v4060
    %v4357 = vpack.c.b16 %v4069, %v4061
    %v4358 = vpack.c.b16 %v4070, %v4062
    %v4359 = vpack.c.b16 %v4079, %v4071
    %v4360 = vpack.c.b16 %v4080, %v4072
    %v4361 = vpack.c.b16 %v4081, %v4073
    %v4362 = vpack.c.b16 %v4082, %v4074
    %v4363 = vpack.c.b16 %v4083, %v4075
    %v4364 = vpack.c.b16 %v4084, %v4076
    %v4365 = vpack.c.b16 %v4085, %v4077
    %v4366 = vpack.c.b16 %v4086, %v4078
    %v4367 = vpack.c.b16 %v4095, %v4087
    %v4368 = vpack.c.b16 %v4096, %v4088
    %v4369 = vpack.c.b16 %v4097, %v4089
    %v4370 = vpack.c.b16 %v4098, %v4090
    %v4371 = vpack.c.b16 %v4099, %v4091
    %v4372 = vpack.c.b16 %v4100, %v4092
    %v4373 = vpack.c.b16 %v4101, %v4093
    %v4374 = vpack.c.b16 %v4102, %v4094
    %v4375 = vpack.c.b16 %v4111, %v4103
    %v4376 = vpack.c.b16 %v4112, %v4104
    %v4377 = vpack.c.b16 %v4113, %v4105
    %v4378 = vpack.c.b16 %v4114, %v4106
    %v4379 = vpack.c.b16 %v4115, %v4107
    %v4380 = vpack.c.b16 %v4116, %v4108
    %v4381 = vpack.c.b16 %v4117, %v4109
    %v4382 = vpack.c.b16 %v4118, %v4110
    %v4383 = vpack.c.b16 %v4127, %v4119
    %v4384 = vpack.c.b16 %v4128, %v4120
    %v4385 = vpack.c.b16 %v4129, %v4121
    %v4386 = vpack.c.b16 %v4130, %v4122
    %v4387 = vpack.c.b16 %v4131, %v4123
    %v4388 = vpack.c.b16 %v4132, %v4124
    %v4389 = vpack.c.b16 %v4133, %v4125
    %v4390 = vpack.c.b16 %v4134, %v4126
    %4647 = vmatprep.subr.bf16.mxu0 %v4136
    %4648 = vmatpush1.bf16.msra.mxu0 %v4135
    %4649 = vmatprep.subr.bf16.mxu0 %v4144
    %4650 = vmatpush1.bf16.msra.mxu0 %v4143
    %4651 = vmatprep.subr.bf16.mxu0 %v4152
    %4652 = vmatpush1.bf16.msra.mxu0 %v4151
    %4653 = vmatprep.subr.bf16.mxu0 %v4160
    %4654 = vmatpush1.bf16.msra.mxu0 %v4159
    %4655 = vmatprep.subr.bf16.mxu0 %v4168
    %4656 = vmatpush1.bf16.msra.mxu0 %v4167
    %4657 = vmatprep.subr.bf16.mxu0 %v4176
    %4658 = vmatpush1.bf16.msra.mxu0 %v4175
    %4659 = vmatprep.subr.bf16.mxu0 %v4184
    %4660 = vmatpush1.bf16.msra.mxu0 %v4183
    %4661 = vmatprep.subr.bf16.mxu0 %v4192
    %4662 = vmatpush1.bf16.msra.mxu0 %v4191
    %4663 = vmatprep.subr.bf16.mxu0 %v4200
    %4664 = vmatpush1.bf16.msra.mxu0 %v4199
    %4665 = vmatprep.subr.bf16.mxu0 %v4208
    %4666 = vmatpush1.bf16.msra.mxu0 %v4207
    %4667 = vmatprep.subr.bf16.mxu0 %v4216
    %4668 = vmatpush1.bf16.msra.mxu0 %v4215
    %4669 = vmatprep.subr.bf16.mxu0 %v4224
    %4670 = vmatpush1.bf16.msra.mxu0 %v4223
    %4671 = vmatprep.subr.bf16.mxu0 %v4232
    %4672 = vmatpush1.bf16.msra.mxu0 %v4231
    %4673 = vmatprep.subr.bf16.mxu0 %v4240
    %4674 = vmatpush1.bf16.msra.mxu0 %v4239
    %4675 = vmatprep.subr.bf16.mxu0 %v4248
    %4676 = vmatpush1.bf16.msra.mxu0 %v4247
    %4677 = vmatprep.subr.bf16.mxu0 %v4256
    %4678 = vmatpush1.bf16.msra.mxu0 %v4255
    %4679 = vmatprep.mubr.bf16.mxu0 %v3066
    %4680 = vmatmul.mubr.bf16.gmra.mrb[0].mxu0 %v3065
    %v4681 = vpop.f32.mrb[0].mxu0
    %v4682 = vadd.f32 %v3330, %v4681
    %v4683 = vpop.f32.mrb[0].mxu0
    %v4684 = vadd.f32 %v3334, %v4683
    %v4685 = vpop.f32.mrb[0].mxu0
    %v4686 = vadd.f32 %v3330, %v4685
    %v4687 = vpop.f32.mrb[0].mxu0
    %v4688 = vadd.f32 %v3334, %v4687
    %4689 = vdwg.mxu0
    %4690 = vmatprep.subr.bf16.mxu0 %v4264
    %4691 = vmatpush1.bf16.msra.mxu0 %v4263
    %4692 = vmatprep.subr.bf16.mxu0 %v4272
    %4693 = vmatpush1.bf16.msra.mxu0 %v4271
    %4694 = vmatprep.subr.bf16.mxu0 %v4280
    %4695 = vmatpush1.bf16.msra.mxu0 %v4279
    %4696 = vmatprep.subr.bf16.mxu0 %v4288
    %4697 = vmatpush1.bf16.msra.mxu0 %v4287
    %4698 = vmatprep.subr.bf16.mxu0 %v4296
    %4699 = vmatpush1.bf16.msra.mxu0 %v4295
    %4700 = vmatprep.subr.bf16.mxu0 %v4304
    %4701 = vmatpush1.bf16.msra.mxu0 %v4303
    %4702 = vmatprep.subr.bf16.mxu0 %v4312
    %4703 = vmatpush1.bf16.msra.mxu0 %v4311
    %4704 = vmatprep.subr.bf16.mxu0 %v4320
    %4705 = vmatpush1.bf16.msra.mxu0 %v4319
    %4706 = vmatprep.subr.bf16.mxu0 %v4328
    %4707 = vmatpush1.bf16.msra.mxu0 %v4327
    %4708 = vmatprep.subr.bf16.mxu0 %v4336
    %4709 = vmatpush1.bf16.msra.mxu0 %v4335
    %4710 = vmatprep.subr.bf16.mxu0 %v4344
    %4711 = vmatpush1.bf16.msra.mxu0 %v4343
    %4712 = vmatprep.subr.bf16.mxu0 %v4352
    %4713 = vmatpush1.bf16.msra.mxu0 %v4351
    %4714 = vmatprep.subr.bf16.mxu0 %v4360
    %4715 = vmatpush1.bf16.msra.mxu0 %v4359
    %4716 = vmatprep.subr.bf16.mxu0 %v4368
    %4717 = vmatpush1.bf16.msra.mxu0 %v4367
    %4718 = vmatprep.subr.bf16.mxu0 %v4376
    %4719 = vmatpush1.bf16.msra.mxu0 %v4375
    %4720 = vmatprep.subr.bf16.mxu0 %v4384
    %4721 = vmatpush1.bf16.msra.mxu0 %v4383
    %4722 = vmatprep.mubr.bf16.mxu0 %v3068
    %4723 = vmatmul.mubr.bf16.gmra.mrb[0].mxu0 %v3067
    %v4724 = vpop.f32.mrb[0].mxu0
    %v4725 = vadd.f32 %v4682, %v4724
    %v4726 = vpop.f32.mrb[0].mxu0
    %v4727 = vadd.f32 %v4684, %v4726
    %v4728 = vpop.f32.mrb[0].mxu0
    %v4729 = vadd.f32 %v4686, %v4728
    %v4730 = vpop.f32.mrb[0].mxu0
    %v4731 = vadd.f32 %v4688, %v4730
    %4732 = vdwg.mxu0
    %4733 = vmatprep.subr.bf16.mxu0 %v4138
    %4734 = vmatpush1.bf16.msra.mxu0 %v4137
    %4735 = vmatprep.subr.bf16.mxu0 %v4146
    %4736 = vmatpush1.bf16.msra.mxu0 %v4145
    %4737 = vmatprep.subr.bf16.mxu0 %v4154
    %4738 = vmatpush1.bf16.msra.mxu0 %v4153
    %4739 = vmatprep.subr.bf16.mxu0 %v4162
    %4740 = vmatpush1.bf16.msra.mxu0 %v4161
    %4741 = vmatprep.subr.bf16.mxu0 %v4170
    %4742 = vmatpush1.bf16.msra.mxu0 %v4169
    %4743 = vmatprep.subr.bf16.mxu0 %v4178
    %4744 = vmatpush1.bf16.msra.mxu0 %v4177
    %4745 = vmatprep.subr.bf16.mxu0 %v4186
    %4746 = vmatpush1.bf16.msra.mxu0 %v4185
    %4747 = vmatprep.subr.bf16.mxu0 %v4194
    %4748 = vmatpush1.bf16.msra.mxu0 %v4193
    %4749 = vmatprep.subr.bf16.mxu0 %v4202
    %4750 = vmatpush1.bf16.msra.mxu0 %v4201
    %4751 = vmatprep.subr.bf16.mxu0 %v4210
    %4752 = vmatpush1.bf16.msra.mxu0 %v4209
    %4753 = vmatprep.subr.bf16.mxu0 %v4218
    %4754 = vmatpush1.bf16.msra.mxu0 %v4217
    %4755 = vmatprep.subr.bf16.mxu0 %v4226
    %4756 = vmatpush1.bf16.msra.mxu0 %v4225
    %4757 = vmatprep.subr.bf16.mxu0 %v4234
    %4758 = vmatpush1.bf16.msra.mxu0 %v4233
    %4759 = vmatprep.subr.bf16.mxu0 %v4242
    %4760 = vmatpush1.bf16.msra.mxu0 %v4241
    %4761 = vmatprep.subr.bf16.mxu0 %v4250
    %4762 = vmatpush1.bf16.msra.mxu0 %v4249
    %4763 = vmatprep.subr.bf16.mxu0 %v4258
    %4764 = vmatpush1.bf16.msra.mxu0 %v4257
    %4765 = vmatprep.mubr.bf16.mxu0 %v3066
    %4766 = vmatmul.mubr.bf16.gmra.mrb[0].mxu0 %v3065
    %v4767 = vpop.f32.mrb[0].mxu0
    %v4768 = vadd.f32 %v3338, %v4767
    %v4769 = vpop.f32.mrb[0].mxu0
    %v4770 = vadd.f32 %v3342, %v4769
    %v4771 = vpop.f32.mrb[0].mxu0
    %v4772 = vadd.f32 %v3338, %v4771
    %v4773 = vpop.f32.mrb[0].mxu0
    %v4774 = vadd.f32 %v3342, %v4773
    %4775 = vdwg.mxu0
    %4776 = vmatprep.subr.bf16.mxu0 %v4266
    %4777 = vmatpush1.bf16.msra.mxu0 %v4265
    %4778 = vmatprep.subr.bf16.mxu0 %v4274
    %4779 = vmatpush1.bf16.msra.mxu0 %v4273
    %4780 = vmatprep.subr.bf16.mxu0 %v4282
    %4781 = vmatpush1.bf16.msra.mxu0 %v4281
    %4782 = vmatprep.subr.bf16.mxu0 %v4290
    %4783 = vmatpush1.bf16.msra.mxu0 %v4289
    %4784 = vmatprep.subr.bf16.mxu0 %v4298
    %4785 = vmatpush1.bf16.msra.mxu0 %v4297
    %4786 = vmatprep.subr.bf16.mxu0 %v4306
    %4787 = vmatpush1.bf16.msra.mxu0 %v4305
    %4788 = vmatprep.subr.bf16.mxu0 %v4314
    %4789 = vmatpush1.bf16.msra.mxu0 %v4313
    %4790 = vmatprep.subr.bf16.mxu0 %v4322
    %4791 = vmatpush1.bf16.msra.mxu0 %v4321
    %4792 = vmatprep.subr.bf16.mxu0 %v4330
    %4793 = vmatpush1.bf16.msra.mxu0 %v4329
    %4794 = vmatprep.subr.bf16.mxu0 %v4338
    %4795 = vmatpush1.bf16.msra.mxu0 %v4337
    %4796 = vmatprep.subr.bf16.mxu0 %v4346
    %4797 = vmatpush1.bf16.msra.mxu0 %v4345
    %4798 = vmatprep.subr.bf16.mxu0 %v4354
    %4799 = vmatpush1.bf16.msra.mxu0 %v4353
    %4800 = vmatprep.subr.bf16.mxu0 %v4362
    %4801 = vmatpush1.bf16.msra.mxu0 %v4361
    %4802 = vmatprep.subr.bf16.mxu0 %v4370
    %4803 = vmatpush1.bf16.msra.mxu0 %v4369
    %4804 = vmatprep.subr.bf16.mxu0 %v4378
    %4805 = vmatpush1.bf16.msra.mxu0 %v4377
    %4806 = vmatprep.subr.bf16.mxu0 %v4386
    %4807 = vmatpush1.bf16.msra.mxu0 %v4385
    %4808 = vmatprep.mubr.bf16.mxu0 %v3068
    %4809 = vmatmul.mubr.bf16.gmra.mrb[0].mxu0 %v3067
    %v4810 = vpop.f32.mrb[0].mxu0
    %v4811 = vadd.f32 %v4768, %v4810
    %v4812 = vpop.f32.mrb[0].mxu0
    %v4813 = vadd.f32 %v4770, %v4812
    %v4814 = vpop.f32.mrb[0].mxu0
    %v4815 = vadd.f32 %v4772, %v4814
    %v4816 = vpop.f32.mrb[0].mxu0
    %v4817 = vadd.f32 %v4774, %v4816
    %4818 = vdwg.mxu0
    %4819 = vmatprep.subr.bf16.mxu0 %v4140
    %4820 = vmatpush1.bf16.msra.mxu0 %v4139
    %4821 = vmatprep.subr.bf16.mxu0 %v4148
    %4822 = vmatpush1.bf16.msra.mxu0 %v4147
    %4823 = vmatprep.subr.bf16.mxu0 %v4156
    %4824 = vmatpush1.bf16.msra.mxu0 %v4155
    %4825 = vmatprep.subr.bf16.mxu0 %v4164
    %4826 = vmatpush1.bf16.msra.mxu0 %v4163
    %4827 = vmatprep.subr.bf16.mxu0 %v4172
    %4828 = vmatpush1.bf16.msra.mxu0 %v4171
    %4829 = vmatprep.subr.bf16.mxu0 %v4180
    %4830 = vmatpush1.bf16.msra.mxu0 %v4179
    %4831 = vmatprep.subr.bf16.mxu0 %v4188
    %4832 = vmatpush1.bf16.msra.mxu0 %v4187
    %4833 = vmatprep.subr.bf16.mxu0 %v4196
    %4834 = vmatpush1.bf16.msra.mxu0 %v4195
    %4835 = vmatprep.subr.bf16.mxu0 %v4204
    %4836 = vmatpush1.bf16.msra.mxu0 %v4203
    %4837 = vmatprep.subr.bf16.mxu0 %v4212
    %4838 = vmatpush1.bf16.msra.mxu0 %v4211
    %4839 = vmatprep.subr.bf16.mxu0 %v4220
    %4840 = vmatpush1.bf16.msra.mxu0 %v4219
    %4841 = vmatprep.subr.bf16.mxu0 %v4228
    %4842 = vmatpush1.bf16.msra.mxu0 %v4227
    %4843 = vmatprep.subr.bf16.mxu0 %v4236
    %4844 = vmatpush1.bf16.msra.mxu0 %v4235
    %4845 = vmatprep.subr.bf16.mxu0 %v4244
    %4846 = vmatpush1.bf16.msra.mxu0 %v4243
    %4847 = vmatprep.subr.bf16.mxu0 %v4252
    %4848 = vmatpush1.bf16.msra.mxu0 %v4251
    %4849 = vmatprep.subr.bf16.mxu0 %v4260
    %4850 = vmatpush1.bf16.msra.mxu0 %v4259
    %4851 = vmatprep.mubr.bf16.mxu0 %v3066
    %4852 = vmatmul.mubr.bf16.gmra.mrb[0].mxu0 %v3065
    %v4853 = vpop.f32.mrb[0].mxu0
    %v4854 = vadd.f32 %v3346, %v4853
    %v4855 = vpop.f32.mrb[0].mxu0
    %v4856 = vadd.f32 %v3350, %v4855
    %v4857 = vpop.f32.mrb[0].mxu0
    %v4858 = vadd.f32 %v3346, %v4857
    %v4859 = vpop.f32.mrb[0].mxu0
    %v4860 = vadd.f32 %v3350, %v4859
    %4861 = vdwg.mxu0
    %4862 = vmatprep.subr.bf16.mxu0 %v4268
    %4863 = vmatpush1.bf16.msra.mxu0 %v4267
    %4864 = vmatprep.subr.bf16.mxu0 %v4276
    %4865 = vmatpush1.bf16.msra.mxu0 %v4275
    %4866 = vmatprep.subr.bf16.mxu0 %v4284
    %4867 = vmatpush1.bf16.msra.mxu0 %v4283
    %4868 = vmatprep.subr.bf16.mxu0 %v4292
    %4869 = vmatpush1.bf16.msra.mxu0 %v4291
    %4870 = vmatprep.subr.bf16.mxu0 %v4300
    %4871 = vmatpush1.bf16.msra.mxu0 %v4299
    %4872 = vmatprep.subr.bf16.mxu0 %v4308
    %4873 = vmatpush1.bf16.msra.mxu0 %v4307
    %4874 = vmatprep.subr.bf16.mxu0 %v4316
    %4875 = vmatpush1.bf16.msra.mxu0 %v4315
    %4876 = vmatprep.subr.bf16.mxu0 %v4324
    %4877 = vmatpush1.bf16.msra.mxu0 %v4323
    %4878 = vmatprep.subr.bf16.mxu0 %v4332
    %4879 = vmatpush1.bf16.msra.mxu0 %v4331
    %4880 = vmatprep.subr.bf16.mxu0 %v4340
    %4881 = vmatpush1.bf16.msra.mxu0 %v4339
    %4882 = vmatprep.subr.bf16.mxu0 %v4348
    %4883 = vmatpush1.bf16.msra.mxu0 %v4347
    %4884 = vmatprep.subr.bf16.mxu0 %v4356
    %4885 = vmatpush1.bf16.msra.mxu0 %v4355
    %4886 = vmatprep.subr.bf16.mxu0 %v4364
    %4887 = vmatpush1.bf16.msra.mxu0 %v4363
    %4888 = vmatprep.subr.bf16.mxu0 %v4372
    %4889 = vmatpush1.bf16.msra.mxu0 %v4371
    %4890 = vmatprep.subr.bf16.mxu0 %v4380
    %4891 = vmatpush1.bf16.msra.mxu0 %v4379
    %4892 = vmatprep.subr.bf16.mxu0 %v4388
    %4893 = vmatpush1.bf16.msra.mxu0 %v4387
    %4894 = vmatprep.mubr.bf16.mxu0 %v3068
    %4895 = vmatmul.mubr.bf16.gmra.mrb[0].mxu0 %v3067
    %v4896 = vpop.f32.mrb[0].mxu0
    %v4897 = vadd.f32 %v4854, %v4896
    %v4898 = vpop.f32.mrb[0].mxu0
    %v4899 = vadd.f32 %v4856, %v4898
    %v4900 = vpop.f32.mrb[0].mxu0
    %v4901 = vadd.f32 %v4858, %v4900
    %v4902 = vpop.f32.mrb[0].mxu0
    %v4903 = vadd.f32 %v4860, %v4902
    %4904 = vdwg.mxu0
    %4905 = vmatprep.subr.bf16.mxu0 %v4142
    %4906 = vmatpush1.bf16.msra.mxu0 %v4141
    %4907 = vmatprep.subr.bf16.mxu0 %v4150
    %4908 = vmatpush1.bf16.msra.mxu0 %v4149
    %4909 = vmatprep.subr.bf16.mxu0 %v4158
    %4910 = vmatpush1.bf16.msra.mxu0 %v4157
    %4911 = vmatprep.subr.bf16.mxu0 %v4166
    %4912 = vmatpush1.bf16.msra.mxu0 %v4165
    %4913 = vmatprep.subr.bf16.mxu0 %v4174
    %4914 = vmatpush1.bf16.msra.mxu0 %v4173
    %4915 = vmatprep.subr.bf16.mxu0 %v4182
    %4916 = vmatpush1.bf16.msra.mxu0 %v4181
    %4917 = vmatprep.subr.bf16.mxu0 %v4190
    %4918 = vmatpush1.bf16.msra.mxu0 %v4189
    %4919 = vmatprep.subr.bf16.mxu0 %v4198
    %4920 = vmatpush1.bf16.msra.mxu0 %v4197
    %4921 = vmatprep.subr.bf16.mxu0 %v4206
    %4922 = vmatpush1.bf16.msra.mxu0 %v4205
    %4923 = vmatprep.subr.bf16.mxu0 %v4214
    %4924 = vmatpush1.bf16.msra.mxu0 %v4213
    %4925 = vmatprep.subr.bf16.mxu0 %v4222
    %4926 = vmatpush1.bf16.msra.mxu0 %v4221
    %4927 = vmatprep.subr.bf16.mxu0 %v4230
    %4928 = vmatpush1.bf16.msra.mxu0 %v4229
    %4929 = vmatprep.subr.bf16.mxu0 %v4238
    %4930 = vmatpush1.bf16.msra.mxu0 %v4237
    %4931 = vmatprep.subr.bf16.mxu0 %v4246
    %4932 = vmatpush1.bf16.msra.mxu0 %v4245
    %4933 = vmatprep.subr.bf16.mxu0 %v4254
    %4934 = vmatpush1.bf16.msra.mxu0 %v4253
    %4935 = vmatprep.subr.bf16.mxu0 %v4262
    %4936 = vmatpush1.bf16.msra.mxu0 %v4261
    %4937 = vmatprep.mubr.bf16.mxu0 %v3066
    %4938 = vmatmul.mubr.bf16.gmra.mrb[0].mxu0 %v3065
    %v4939 = vpop.f32.mrb[0].mxu0
    %v4940 = vadd.f32 %v3354, %v4939
    %v4941 = vpop.f32.mrb[0].mxu0
    %v4942 = vadd.f32 %v3358, %v4941
    %v4943 = vpop.f32.mrb[0].mxu0
    %v4944 = vadd.f32 %v3354, %v4943
    %v4945 = vpop.f32.mrb[0].mxu0
    %v4946 = vadd.f32 %v3358, %v4945
    %4947 = vdwg.mxu0
    %4948 = vmatprep.subr.bf16.mxu0 %v4270
    %4949 = vmatpush1.bf16.msra.mxu0 %v4269
    %4950 = vmatprep.subr.bf16.mxu0 %v4278
    %4951 = vmatpush1.bf16.msra.mxu0 %v4277
    %4952 = vmatprep.subr.bf16.mxu0 %v4286
    %4953 = vmatpush1.bf16.msra.mxu0 %v4285
    %4954 = vmatprep.subr.bf16.mxu0 %v4294
    %4955 = vmatpush1.bf16.msra.mxu0 %v4293
    %4956 = vmatprep.subr.bf16.mxu0 %v4302
    %4957 = vmatpush1.bf16.msra.mxu0 %v4301
    %4958 = vmatprep.subr.bf16.mxu0 %v4310
    %4959 = vmatpush1.bf16.msra.mxu0 %v4309
    %4960 = vmatprep.subr.bf16.mxu0 %v4318
    %4961 = vmatpush1.bf16.msra.mxu0 %v4317
    %4962 = vmatprep.subr.bf16.mxu0 %v4326
    %4963 = vmatpush1.bf16.msra.mxu0 %v4325
    %4964 = vmatprep.subr.bf16.mxu0 %v4334
    %4965 = vmatpush1.bf16.msra.mxu0 %v4333
    %4966 = vmatprep.subr.bf16.mxu0 %v4342
    %4967 = vmatpush1.bf16.msra.mxu0 %v4341
    %4968 = vmatprep.subr.bf16.mxu0 %v4350
    %4969 = vmatpush1.bf16.msra.mxu0 %v4349
    %4970 = vmatprep.subr.bf16.mxu0 %v4358
    %4971 = vmatpush1.bf16.msra.mxu0 %v4357
    %4972 = vmatprep.subr.bf16.mxu0 %v4366
    %4973 = vmatpush1.bf16.msra.mxu0 %v4365
    %4974 = vmatprep.subr.bf16.mxu0 %v4374
    %4975 = vmatpush1.bf16.msra.mxu0 %v4373
    %4976 = vmatprep.subr.bf16.mxu0 %v4382
    %4977 = vmatpush1.bf16.msra.mxu0 %v4381
    %4978 = vmatprep.subr.bf16.mxu0 %v4390
    %4979 = vmatpush1.bf16.msra.mxu0 %v4389
    %4980 = vmatprep.mubr.bf16.mxu0 %v3068
    %4981 = vmatmul.mubr.bf16.gmra.mrb[0].mxu0 %v3067
    %v4982 = vpop.f32.mrb[0].mxu0
    %v4983 = vadd.f32 %v4940, %v4982
    %v4984 = vpop.f32.mrb[0].mxu0
    %v4985 = vadd.f32 %v4942, %v4984
    %v4986 = vpop.f32.mrb[0].mxu0
    %v4987 = vadd.f32 %v4944, %v4986
    %v4988 = vpop.f32.mrb[0].mxu0
    %v4989 = vadd.f32 %v4946, %v4988
    %4990 = vdwg.mxu0
    %4991 = vst [vmem:[#allocation11] sm:$0xff] %v4725
    %4992 = vst [vmem:[#allocation11 + $0x8] sm:$0xff] %v4727
    %4993 = vst [vmem:[#allocation11 + $0x10] sm:$0xff] %v4811
    %4994 = vst [vmem:[#allocation11 + $0x18] sm:$0xff] %v4813
    %4995 = vst [vmem:[#allocation11 + $0x20] sm:$0xff] %v4897
    %4996 = vst [vmem:[#allocation11 + $0x28] sm:$0xff] %v4899
    %4997 = vst [vmem:[#allocation11 + $0x30] sm:$0xff] %v4983
    %4998 = vst [vmem:[#allocation11 + $0x38] sm:$0xff] %v4985
    %4999 = vst [vmem:[#allocation11 + $0x40] sm:$0xff] %v4729
    %5000 = vst [vmem:[#allocation11 + $0x48] sm:$0xff] %v4731
    %5001 = vst [vmem:[#allocation11 + $0x50] sm:$0xff] %v4815
    %5002 = vst [vmem:[#allocation11 + $0x58] sm:$0xff] %v4817
    %5003 = vst [vmem:[#allocation11 + $0x60] sm:$0xff] %v4901
    %5004 = vst [vmem:[#allocation11 + $0x68] sm:$0xff] %v4903
    %5005 = vst [vmem:[#allocation11 + $0x70] sm:$0xff] %v4987
    %5006 = vst [vmem:[#allocation11 + $0x78] sm:$0xff] %v4989
    // Predicated region
    $region54: #{small_decoder_forward.1} parent=1 // pred_check
      _
    $region55: #{small_decoder_forward.1} parent=1 // pred_check_branch
      %5008 = sbr.rel (0) target = $region57
    $region56: #{small_decoder_forward.1} parent=1 // pred_region
      %s5010 = ssub.s32 1024, 1024
      %5011 = vsyncadd [#allocation4], %s5010
      %s5012 = sshll.u32 [#allocation10], 4
      %s5013 = int_to_ptr.vmem [resolvable:$true] %s5012
      %5018 = dma.vmem_to_hbm [thread:$0]  %s5013, 1024, %s9, [#allocation4], 512, 512, 32
    $region57: #{small_decoder_forward.1} parent=1 // pred_fallthru
      _
    // Predicated region
    $region58: #{small_decoder_forward.1} parent=1 // pred_check
      _
    $region59: #{small_decoder_forward.1} parent=1 // pred_check_branch
      %5020 = sbr.rel (0) target = $region61
    $region60: #{small_decoder_forward.1} parent=1 // pred_region
      %s5022 = ssub.s32 2048, 2048
      %5023 = vsyncadd [#allocation12], %s5022
      %s5024 = sshll.u32 [#allocation11], 4
      %s5025 = int_to_ptr.vmem [resolvable:$true] %s5024
      %5030 = dma.vmem_to_hbm [thread:$0]  %s5025, 2048, %s10, [#allocation12], 1024, 1024, 64
    $region61: #{small_decoder_forward.1} parent=1 // pred_fallthru
      _
    // Predicated region
    $region62: #{small_decoder_forward.1} parent=1 // pred_check
      _
    $region63: #{small_decoder_forward.1} parent=1 // pred_check_branch
      %5032 = sbr.rel (0) target = $region65
    $region64: #{small_decoder_forward.1} parent=1 // pred_region
      %5033 = dma.done [#allocation4], 1024
    $region65: #{small_decoder_forward.1} parent=1 // pred_fallthru
      _
    // Predicated region
    $region66: #{small_decoder_forward.1} parent=1 // pred_check
      _
    $region67: #{small_decoder_forward.1} parent=1 // pred_check_branch
      %5035 = sbr.rel (0) target = $region69
    $region68: #{small_decoder_forward.1} parent=1 // pred_region
      %5036 = dma.done [#allocation12], 2048
    $region69: #{small_decoder_forward.1} parent=1 // pred_fallthru
      _
    %5037 = vsyncpa [#allocation3], 1
    %5038 = vsyncpa [#allocation6], 1
    %5039 = vsyncpa [#allocation9], 1
    %5040 = vsyncpa [#allocation4], 1
    %5041 = vsyncpa [#allocation12], 1

</llo_original>
